<compile_context>
chip_gen: v5e
topology: v5e:2x2
jax: 0.10.0
libtpu: 0.0.40
codegen_flags: <defaults>
</compile_context>

<pallas_src>
import numpy as np
import jax
import jax.numpy as jnp
from jax.experimental import pallas as pl
from jax.experimental.pallas import tpu as pltpu

F32 = jnp.float32
BF16 = jnp.bfloat16


# ------------------------------ Pallas kernel -------------------------------

def _fused_policy_kernel(ximg_ref, xst_ref, h0p_ref, hcp_ref,
                         w0_ref, s0_ref, w1_ref, s1_ref, w2_ref, s2_ref,
                         wih0_ref, whh0_ref, b0_ref,
                         wci_ref, wch_ref, whhc_ref, bc_ref,
                         wo_ref, bo_ref,
                         y_ref, h0_ref, hc_ref):
    t = pl.program_id(0)

    # Recurrent state lives in the constant-index output blocks (VMEM-resident
    # across the whole T grid); initialize from the previous-state inputs.
    @pl.when(t == 0)
    def _():
        h0_ref[...] = h0p_ref[...]
        hc_ref[...] = hcp_ref[...]

    def mm(a, w_ref):
        # bf16 MXU operands, f32 accumulation.
        return jnp.dot(a.astype(BF16), w_ref[...],
                       preferred_element_type=jnp.float32)

    # Conv stack: each layer is a BN-folded Toeplitz GEMM + shift + ReLU.
    a0 = jnp.maximum(mm(ximg_ref[...], w0_ref) + s0_ref[...], 0.0)
    a1 = jnp.maximum(mm(a0, w1_ref) + s1_ref[...], 0.0)
    a2 = jnp.maximum(mm(a1, w2_ref) + s2_ref[...], 0.0)   # == himg_2.view(B,-1)

    # IRNN cell 0 on the state input (hidden width padded 80 -> 128 lanes).
    h0 = jnp.maximum(mm(xst_ref[...], wih0_ref) + mm(h0_ref[...], whh0_ref)
                     + b0_ref[...], 0.0)
    h0_ref[...] = h0

    # IRNN cell on concat([flat_img, h0]) -> concat removed via split matmul.
    hc = jnp.maximum(mm(a2, wci_ref) + mm(h0, wch_ref)
                     + mm(hc_ref[...], whhc_ref) + bc_ref[...], 0.0)
    hc_ref[...] = hc

    # Output linear + softmax (max-stabilized, EUP reciprocal).
    logits = mm(hc, wo_ref) + bo_ref[...]
    m = jnp.max(logits, axis=-1, keepdims=True)
    e = jnp.exp(logits - m)
    y_ref[...] = e * pl.reciprocal(jnp.sum(e, axis=-1, keepdims=True),
                                   approx=True)


# ------------------------- conv+BN -> Toeplitz GEMM --------------------------

def _conv_bn_to_toeplitz(w_oihw, b, gamma, beta, mean, var, hin, win,
                         stride=2, pad=2, eps=1e-5):
    """Lower Conv2d(stride,pad)+BatchNorm2d(eval) to a GEMM:
       relu(x_flat @ W_toep + shift) == layer(x), with x_flat / output
       flattened in NCHW (c, h, w) order per image."""
    cout, cin, khs, kws = w_oihw.shape
    hout = (hin + 2 * pad - khs) // stride + 1
    wout = (win + 2 * pad - kws) // stride + 1

    scale = gamma / jnp.sqrt(var + eps)                     # (Cout,)
    w_eff = w_oihw * scale[:, None, None, None]             # fold BN scale
    shift_c = b * scale + beta - mean * scale               # (Cout,)

    # Static kernel-tap index / validity tables (pure numpy, trace-time).
    kh = np.arange(hin)[:, None] - stride * np.arange(hout)[None, :] + pad
    kw = np.arange(win)[:, None] - stride * np.arange(wout)[None, :] + pad
    vh = (kh >= 0) & (kh < khs)
    vw = (kw >= 0) & (kw < kws)
    kidx = (np.clip(kh, 0, khs - 1)[:, None, :, None] * kws
            + np.clip(kw, 0, kws - 1)[None, :, None, :]).astype(np.int32)
    valid = (vh[:, None, :, None] & vw[None, :, None, :]).astype(np.float32)

    # (KH*KW, Cin, Cout) gathered to (Hin, Win, Hout, Wout, Cin, Cout).
    w_k = jnp.transpose(w_eff, (2, 3, 1, 0)).reshape(khs * kws, cin, cout)
    t = w_k[kidx] * valid[..., None, None]
    # rows (ci, hi, wi), cols (co, ho, wo)  (both == NCHW flatten order)
    t = jnp.transpose(t, (4, 0, 1, 5, 2, 3))
    w_toep = t.reshape(cin * hin * win, cout * hout * wout)
    shift_row = jnp.repeat(shift_c, hout * wout).reshape(1, cout * hout * wout)
    return w_toep, shift_row, hout, wout


def prepare_params(params, inp_img_shp, n0_pad=128):
    """One-time lowering of the module parameters to kernel-ready tensors
    (bf16 matmul weights, f32 shifts, IRNN-0 hidden padded to 128 lanes)."""
    _, hh, ww = inp_img_shp
    c0, c1, c2 = params["conv0"], params["conv1"], params["conv2"]
    w0, s0, hh, ww = _conv_bn_to_toeplitz(c0["w"], c0["b"], c0["gamma"],
                                          c0["beta"], c0["mean"], c0["var"], hh, ww)
    w1, s1, hh, ww = _conv_bn_to_toeplitz(c1["w"], c1["b"], c1["gamma"],
                                          c1["beta"], c1["mean"], c1["var"], hh, ww)
    w2, s2, hh, ww = _conv_bn_to_toeplitz(c2["w"], c2["b"], c2["gamma"],
                                          c2["beta"], c2["mean"], c2["var"], hh, ww)
    conv_flat = w2.shape[1]

    i0, ic, out = params["irnn0"], params["irnn_cat"], params["out"]
    n0 = i0["w_hh"].shape[0]
    p = n0_pad - n0
    wih0 = jnp.pad(i0["w_ih"], ((0, 0), (0, p)))           # (in, 128)
    whh0 = jnp.pad(i0["w_hh"], ((0, p), (0, p)))           # (128, 128)
    b0 = jnp.pad(i0["b"], (0, p)).reshape(1, -1)           # (1, 128)
    wc_img = ic["w_ih"][:conv_flat]                        # (1280, n1)
    wc_h0 = jnp.pad(ic["w_ih"][conv_flat:], ((0, p), (0, 0)))  # (128, n1)

    return dict(
        w0=w0.astype(BF16), s0=s0, w1=w1.astype(BF16), s1=s1,
        w2=w2.astype(BF16), s2=s2,
        wih0=wih0.astype(BF16), whh0=whh0.astype(BF16), b0=b0,
        wc_img=wc_img.astype(BF16), wc_h0=wc_h0.astype(BF16),
        whhc=ic["w_hh"].astype(BF16), bc=ic["b"].reshape(1, -1),
        wout=out["w"].astype(BF16), bout=out["b"].reshape(1, -1),
    )


# ------------------------------ fused forward --------------------------------

def fused_forward(prep, x_st_seq, x_img_seq, h0_prev, hcat_prev):
    """Fused rollout: T sequential policy-forward steps in one pallas_call.

    x_st_seq: (T, B, in_st), x_img_seq: (T, B, C, H, W) NCHW like PyTorch.
    Returns (y (T,B,out), h0_final (B,n0), hcat_final (B,n1))."""
    T, B = x_st_seq.shape[:2]
    ximg_flat = x_img_seq.reshape(T, B, -1)     # NCHW flatten == (ci,hi,wi) rows
    dimg = ximg_flat.shape[-1]
    dst = x_st_seq.shape[-1]
    n0 = h0_prev.shape[1]
    n0p = prep["whh0"].shape[0]                 # padded (128)
    n1 = prep["whhc"].shape[0]
    nout = prep["wout"].shape[1]
    h0p = jnp.pad(h0_prev, ((0, 0), (0, n0p - n0)))

    weight_args = (prep["w0"], prep["s0"], prep["w1"], prep["s1"],
                   prep["w2"], prep["s2"],
                   prep["wih0"], prep["whh0"], prep["b0"],
                   prep["wc_img"], prep["wc_h0"], prep["whhc"], prep["bc"],
                   prep["wout"], prep["bout"])

    in_specs = [
        # Per-step inputs: blocked over the T grid axis (squeezed in-kernel).
        pl.BlockSpec((None, B, dimg), lambda t: (t, 0, 0)),
        pl.BlockSpec((None, B, dst), lambda t: (t, 0, 0)),
        # Initial hidden states: fetched once (constant index).
        pl.BlockSpec((B, n0p), lambda t: (0, 0)),
        pl.BlockSpec((B, n1), lambda t: (0, 0)),
        # Weights: constant index_map -> DMA'd once, VMEM-resident across T.
    ] + [pl.BlockSpec(w.shape, lambda t: (0, 0)) for w in weight_args]

    out_specs = (
        pl.BlockSpec((None, B, nout), lambda t: (t, 0, 0)),
        pl.BlockSpec((B, n0p), lambda t: (0, 0)),   # recurrent carry (resident)
        pl.BlockSpec((B, n1), lambda t: (0, 0)),    # recurrent carry (resident)
    )
    out_shape = (jax.ShapeDtypeStruct((T, B, nout), F32),
                 jax.ShapeDtypeStruct((B, n0p), F32),
                 jax.ShapeDtypeStruct((B, n1), F32))

    y, h0_pad_out, hc_out = pl.pallas_call(
        _fused_policy_kernel,
        grid=(T,),
        in_specs=in_specs,
        out_specs=out_specs,
        out_shape=out_shape,
        # Update the recurrent state buffers in place.
        input_output_aliases={2: 1, 3: 2},
        compiler_params=pltpu.CompilerParams(
            dimension_semantics=("arbitrary",)),   # T axis is a recurrence
    )(ximg_flat, x_st_seq, h0p, hcat_prev, *weight_args)
    return y, h0_pad_out[:, :n0], hc_out


# ------------------------------ parameters -----------------------------------

def init_params(key, input_shp_st, inp_img_shp, f0, f1, f2, ksz, n0, n1, out_shp):
    keys = iter(jax.random.split(key, 32))

    def conv_block(cin, cout):
        return dict(
            w=0.05 * jax.random.normal(next(keys), (cout, cin, ksz, ksz), F32),
            b=0.05 * jax.random.normal(next(keys), (cout,), F32),
            gamma=1.0 + 0.1 * jax.random.normal(next(keys), (cout,), F32),
            beta=0.1 * jax.random.normal(next(keys), (cout,), F32),
            mean=0.05 * jax.random.normal(next(keys), (cout,), F32),
            var=1.0 + 0.1 * jnp.abs(jax.random.normal(next(keys), (cout,), F32)),
        )

    def irnn_block(inp, hid):
        return dict(
            w_ih=0.05 * jax.random.normal(next(keys), (inp, hid), F32),
            w_hh=jnp.eye(hid, dtype=F32),            # IRNN identity recurrent init
            b=jnp.zeros((hid,), F32),
        )

    conv_flat = (inp_img_shp[1] // 8) * (inp_img_shp[2] // 8) * f2  # 3x stride-2
    cat_size = conv_flat + n0
    assert cat_size == 1360, "shapes chosen so concat size matches hard-coded 1360"

    return dict(
        conv0=conv_block(inp_img_shp[0], f0),
        conv1=conv_block(f0, f1),
        conv2=conv_block(f1, f2),
        irnn0=irnn_block(input_shp_st, n0),
        irnn_cat=irnn_block(cat_size, n1),
        out=dict(w=0.1 * jax.random.normal(next(keys), (n1, out_shp), F32),
                 b=0.05 * jax.random.normal(next(keys), (out_shp,), F32)),
    )


# --------------------------- pure-JAX reference -------------------------------

def forward_ref(params, x_st, x_img, h0_prev, hcat_prev, eps=1e-5):
    """Single policy step, f32, mirrors the PyTorch module forward."""
    hp = jax.lax.Precision.HIGHEST

    def conv_bn_relu(x, p):
        y = jax.lax.conv_general_dilated(
            x, p["w"], window_strides=(2, 2), padding=((2, 2), (2, 2)),
            dimension_numbers=("NCHW", "OIHW", "NCHW"), precision=hp)
        y = y + p["b"][None, :, None, None]
        scale = p["gamma"] / jnp.sqrt(p["var"] + eps)
        y = (scale[None, :, None, None] * (y - p["mean"][None, :, None, None])
             + p["beta"][None, :, None, None])
        return jnp.maximum(y, 0.0)

    h = conv_bn_relu(x_img, params["conv0"])
    h = conv_bn_relu(h, params["conv1"])
    h = conv_bn_relu(h, params["conv2"])
    flat_img = h.reshape(h.shape[0], -1)
    i0 = params["irnn0"]
    h0 = jnp.maximum(jnp.dot(x_st, i0["w_ih"], precision=hp)
                     + jnp.dot(h0_prev, i0["w_hh"], precision=hp) + i0["b"], 0.0)
    flat = jnp.concatenate([flat_img, h0], axis=1)
    ic = params["irnn_cat"]
    hcat = jnp.maximum(jnp.dot(flat, ic["w_ih"], precision=hp)
                       + jnp.dot(hcat_prev, ic["w_hh"], precision=hp) + ic["b"], 0.0)
    logits = jnp.dot(hcat, params["out"]["w"], precision=hp) + params["out"]["b"]
    return jax.nn.softmax(logits, axis=1), h0, hcat


# ---------------------------------- main --------------------------------------

if __name__ == "__main__":
    # Module hyper-parameters (chosen so the concat size is exactly the 1360
    # hard-coded in the original module: 2*2*320 + 80 = 1360).
    input_shp_st = 10
    inp_img_shp = (4, 16, 16)
    filter_0, filter_1, filter_2 = 8, 16, 320
    filter_size = 5
    num_neurons_0, num_neurons_1 = 80, 32
    output_shp = 6
    batch = 8       # fills a sublane; per review, larger batches fill MXU rows
    steps = 4       # small rollout: weights are fetched once for all T steps

    key = jax.random.PRNGKey(0)
    kp, kx1, kx2 = jax.random.split(key, 3)

    params = init_params(kp, input_shp_st, inp_img_shp, filter_0, filter_1,
                         filter_2, filter_size, num_neurons_0, num_neurons_1,
                         output_shp)

    x_st = jax.random.normal(kx1, (steps, batch, input_shp_st), F32)
    x_img = jax.random.normal(kx2, (steps, batch) + inp_img_shp, F32)  # NCHW

    # reset(batch): zero-initialized hidden states
    h0_prev = jnp.zeros((batch, num_neurons_0), F32)
    hcat_prev = jnp.zeros((batch, num_neurons_1), F32)

    # One-time lowering of conv+BN weights to bf16 GEMM form.
    prep = prepare_params(params, inp_img_shp)

    fwd = jax.jit(fused_forward)
    y, h0, hcat = fwd(prep, x_st, x_img, h0_prev, hcat_prev)
    y = jax.block_until_ready(y)

    # Pure-JAX reference: T sequential single-step forwards (f32, HIGHEST).
    step_ref = jax.jit(forward_ref)
    ys = []
    h0_r, hc_r = h0_prev, hcat_prev
    for t in range(steps):
        y_t, h0_r, hc_r = step_ref(params, x_st[t], x_img[t], h0_r, hc_r)
        ys.append(y_t)
    y_ref = jnp.stack(ys, axis=0)

    assert y.shape == (steps, batch, output_shp)
    assert bool(jnp.all(jnp.isfinite(y)))
    assert bool(jnp.allclose(jnp.sum(y, axis=-1), 1.0, atol=1e-2))  # softmax rows
    tol = dict(atol=5e-2, rtol=5e-2)   # bf16 MXU weights -> relaxed vs f32 ref
    assert bool(jnp.allclose(h0, h0_r, **tol))
    assert bool(jnp.allclose(hcat, hc_r, **tol))
    assert bool(jnp.allclose(y, y_ref, **tol))
    print("KERNEL_OK")
</pallas_src>

<mosaic_0001>
module attributes {stable_mosaic.version = 11 : i64} {
  func.func @_fused_policy_kernel(%arg0: i32, %arg1: memref<1x8x1024xf32, #tpu.memory_space<vmem>>, %arg2: memref<1x8x10xf32, #tpu.memory_space<vmem>>, %arg3: memref<8x128xf32, #tpu.memory_space<vmem>>, %arg4: memref<8x32xf32, #tpu.memory_space<vmem>>, %arg5: memref<1024x512xbf16, #tpu.memory_space<vmem>>, %arg6: memref<1x512xf32, #tpu.memory_space<vmem>>, %arg7: memref<512x256xbf16, #tpu.memory_space<vmem>>, %arg8: memref<1x256xf32, #tpu.memory_space<vmem>>, %arg9: memref<256x1280xbf16, #tpu.memory_space<vmem>>, %arg10: memref<1x1280xf32, #tpu.memory_space<vmem>>, %arg11: memref<10x128xbf16, #tpu.memory_space<vmem>>, %arg12: memref<128x128xbf16, #tpu.memory_space<vmem>>, %arg13: memref<1x128xf32, #tpu.memory_space<vmem>>, %arg14: memref<1280x32xbf16, #tpu.memory_space<vmem>>, %arg15: memref<128x32xbf16, #tpu.memory_space<vmem>>, %arg16: memref<32x32xbf16, #tpu.memory_space<vmem>>, %arg17: memref<1x32xf32, #tpu.memory_space<vmem>>, %arg18: memref<32x6xbf16, #tpu.memory_space<vmem>>, %arg19: memref<1x6xf32, #tpu.memory_space<vmem>>, %arg20: memref<1x8x6xf32, #tpu.memory_space<vmem>>, %arg21: memref<8x128xf32, #tpu.memory_space<vmem>>, %arg22: memref<8x32xf32, #tpu.memory_space<vmem>>) attributes {dimension_semantics = [#tpu.dimension_semantics<arbitrary>], iteration_bounds = array<i64: 4>, scalar_prefetch = 0 : i64, scratch_operands = 0 : i64, tpu.core_type = #tpu.core_type<tc>, window_params = [{transform_indices = @transform_0, window_bounds = array<i64: 1, 8, 1024>}, {transform_indices = @transform_1, window_bounds = array<i64: 1, 8, 10>}, {pipeline_mode = #tpu.pipeline_mode<synchronous>, transform_indices = @transform_2, window_bounds = array<i64: 8, 128>}, {pipeline_mode = #tpu.pipeline_mode<synchronous>, transform_indices = @transform_3, window_bounds = array<i64: 8, 32>}, {pipeline_mode = #tpu.pipeline_mode<synchronous>, transform_indices = @transform_4, window_bounds = array<i64: 1024, 512>}, {pipeline_mode = #tpu.pipeline_mode<synchronous>, transform_indices = @transform_5, window_bounds = array<i64: 1, 512>}, {pipeline_mode = #tpu.pipeline_mode<synchronous>, transform_indices = @transform_6, window_bounds = array<i64: 512, 256>}, {pipeline_mode = #tpu.pipeline_mode<synchronous>, transform_indices = @transform_7, window_bounds = array<i64: 1, 256>}, {pipeline_mode = #tpu.pipeline_mode<synchronous>, transform_indices = @transform_8, window_bounds = array<i64: 256, 1280>}, {pipeline_mode = #tpu.pipeline_mode<synchronous>, transform_indices = @transform_9, window_bounds = array<i64: 1, 1280>}, {pipeline_mode = #tpu.pipeline_mode<synchronous>, transform_indices = @transform_10, window_bounds = array<i64: 10, 128>}, {pipeline_mode = #tpu.pipeline_mode<synchronous>, transform_indices = @transform_11, window_bounds = array<i64: 128, 128>}, {pipeline_mode = #tpu.pipeline_mode<synchronous>, transform_indices = @transform_12, window_bounds = array<i64: 1, 128>}, {pipeline_mode = #tpu.pipeline_mode<synchronous>, transform_indices = @transform_13, window_bounds = array<i64: 1280, 32>}, {pipeline_mode = #tpu.pipeline_mode<synchronous>, transform_indices = @transform_14, window_bounds = array<i64: 128, 32>}, {pipeline_mode = #tpu.pipeline_mode<synchronous>, transform_indices = @transform_15, window_bounds = array<i64: 32, 32>}, {pipeline_mode = #tpu.pipeline_mode<synchronous>, transform_indices = @transform_16, window_bounds = array<i64: 1, 32>}, {pipeline_mode = #tpu.pipeline_mode<synchronous>, transform_indices = @transform_17, window_bounds = array<i64: 32, 6>}, {pipeline_mode = #tpu.pipeline_mode<synchronous>, transform_indices = @transform_18, window_bounds = array<i64: 1, 6>}, {transform_indices = @transform_19, window_bounds = array<i64: 1, 8, 6>}, {pipeline_mode = #tpu.pipeline_mode<synchronous>, transform_indices = @transform_20, window_bounds = array<i64: 8, 128>}, {pipeline_mode = #tpu.pipeline_mode<synchronous>, transform_indices = @transform_21, window_bounds = array<i64: 8, 32>}]} {
    %c0_i32 = arith.constant 0 : i32
    %0 = arith.cmpi eq, %arg0, %c0_i32 : i32
    %1 = arith.extui %0 : i1 to i32
    %c0_i32_0 = arith.constant 0 : i32
    %2 = arith.cmpi ne, %1, %c0_i32_0 : i32
    scf.if %2 {
      %c0_62 = arith.constant 0 : index
      %c0_63 = arith.constant 0 : index
      %82 = vector.load %arg3[%c0_62, %c0_63] : memref<8x128xf32, #tpu.memory_space<vmem>>, vector<8x128xf32>
      %c0_64 = arith.constant 0 : index
      %c0_65 = arith.constant 0 : index
      %83 = vector.load %arg21[%c0_64, %c0_65] : memref<8x128xf32, #tpu.memory_space<vmem>>, vector<8x128xf32>
      tpu.vector_store %arg21[%c0_64, %c0_65], %82 {strides = array<i32>} : memref<8x128xf32, #tpu.memory_space<vmem>>, vector<8x128xf32>,
      %c0_66 = arith.constant 0 : index
      %c0_67 = arith.constant 0 : index
      %84 = vector.load %arg4[%c0_66, %c0_67] : memref<8x32xf32, #tpu.memory_space<vmem>>, vector<8x32xf32>
      %c0_68 = arith.constant 0 : index
      %c0_69 = arith.constant 0 : index
      %85 = vector.load %arg22[%c0_68, %c0_69] : memref<8x32xf32, #tpu.memory_space<vmem>>, vector<8x32xf32>
      tpu.vector_store %arg22[%c0_68, %c0_69], %84 {strides = array<i32>} : memref<8x32xf32, #tpu.memory_space<vmem>>, vector<8x32xf32>,
    } else {
    }
    %c0 = arith.constant 0 : index
    %c0_1 = arith.constant 0 : index
    %c0_2 = arith.constant 0 : index
    %3 = vector.load %arg1[%c0, %c0_1, %c0_2] : memref<1x8x1024xf32, #tpu.memory_space<vmem>>, vector<1x8x1024xf32>
    %4 = vector.shape_cast %3 : vector<1x8x1024xf32> to vector<8x1024xf32>
    %5 = arith.truncf %4 : vector<8x1024xf32> to vector<8x1024xbf16>
    %c0_3 = arith.constant 0 : index
    %c0_4 = arith.constant 0 : index
    %6 = vector.load %arg5[%c0_3, %c0_4] : memref<1024x512xbf16, #tpu.memory_space<vmem>>, vector<1024x512xbf16>
    %cst = arith.constant dense<0.000000e+00> : vector<8x512xf32>
    %7 = tpu.matmul %5, %6, %cst {dimension_numbers = #tpu.dot_dimension_numbers<[1], [0], [0], [1], [0, 0, 1, 1], [], []>} : vector<8x1024xbf16>, vector<1024x512xbf16>, vector<8x512xf32> -> vector<8x512xf32>
    %c0_5 = arith.constant 0 : index
    %c0_6 = arith.constant 0 : index
    %8 = vector.load %arg6[%c0_5, %c0_6] : memref<1x512xf32, #tpu.memory_space<vmem>>, vector<1x512xf32>
    %9 = vector.broadcast %8 : vector<1x512xf32> to vector<8x512xf32>
    %10 = arith.addf %7, %9 : vector<8x512xf32>
    %cst_7 = arith.constant 0.000000e+00 : f32
    %11 = vector.broadcast %cst_7 : f32 to vector<8x512xf32>
    %12 = arith.maximumf %10, %11 : vector<8x512xf32>
    %13 = arith.truncf %12 : vector<8x512xf32> to vector<8x512xbf16>
    %c0_8 = arith.constant 0 : index
    %c0_9 = arith.constant 0 : index
    %14 = vector.load %arg7[%c0_8, %c0_9] : memref<512x256xbf16, #tpu.memory_space<vmem>>, vector<512x256xbf16>
    %cst_10 = arith.constant dense<0.000000e+00> : vector<8x256xf32>
    %15 = tpu.matmul %13, %14, %cst_10 {dimension_numbers = #tpu.dot_dimension_numbers<[1], [0], [0], [1], [0, 0, 1, 1], [], []>} : vector<8x512xbf16>, vector<512x256xbf16>, vector<8x256xf32> -> vector<8x256xf32>
    %c0_11 = arith.constant 0 : index
    %c0_12 = arith.constant 0 : index
    %16 = vector.load %arg8[%c0_11, %c0_12] : memref<1x256xf32, #tpu.memory_space<vmem>>, vector<1x256xf32>
    %17 = vector.broadcast %16 : vector<1x256xf32> to vector<8x256xf32>
    %18 = arith.addf %15, %17 : vector<8x256xf32>
    %cst_13 = arith.constant 0.000000e+00 : f32
    %19 = vector.broadcast %cst_13 : f32 to vector<8x256xf32>
    %20 = arith.maximumf %18, %19 : vector<8x256xf32>
    %21 = arith.truncf %20 : vector<8x256xf32> to vector<8x256xbf16>
    %c0_14 = arith.constant 0 : index
    %c0_15 = arith.constant 0 : index
    %22 = vector.load %arg9[%c0_14, %c0_15] : memref<256x1280xbf16, #tpu.memory_space<vmem>>, vector<256x1280xbf16>
    %cst_16 = arith.constant dense<0.000000e+00> : vector<8x1280xf32>
    %23 = tpu.matmul %21, %22, %cst_16 {dimension_numbers = #tpu.dot_dimension_numbers<[1], [0], [0], [1], [0, 0, 1, 1], [], []>} : vector<8x256xbf16>, vector<256x1280xbf16>, vector<8x1280xf32> -> vector<8x1280xf32>
    %c0_17 = arith.constant 0 : index
    %c0_18 = arith.constant 0 : index
    %24 = vector.load %arg10[%c0_17, %c0_18] : memref<1x1280xf32, #tpu.memory_space<vmem>>, vector<1x1280xf32>
    %25 = vector.broadcast %24 : vector<1x1280xf32> to vector<8x1280xf32>
    %26 = arith.addf %23, %25 : vector<8x1280xf32>
    %cst_19 = arith.constant 0.000000e+00 : f32
    %27 = vector.broadcast %cst_19 : f32 to vector<8x1280xf32>
    %28 = arith.maximumf %26, %27 : vector<8x1280xf32>
    %c0_20 = arith.constant 0 : index
    %c0_21 = arith.constant 0 : index
    %c0_22 = arith.constant 0 : index
    %29 = vector.load %arg2[%c0_20, %c0_21, %c0_22] : memref<1x8x10xf32, #tpu.memory_space<vmem>>, vector<1x8x10xf32>
    %30 = vector.shape_cast %29 : vector<1x8x10xf32> to vector<8x10xf32>
    %31 = arith.truncf %30 : vector<8x10xf32> to vector<8x10xbf16>
    %c0_23 = arith.constant 0 : index
    %c0_24 = arith.constant 0 : index
    %32 = vector.load %arg11[%c0_23, %c0_24] : memref<10x128xbf16, #tpu.memory_space<vmem>>, vector<10x128xbf16>
    %cst_25 = arith.constant dense<0.000000e+00> : vector<8x128xf32>
    %33 = tpu.matmul %31, %32, %cst_25 {dimension_numbers = #tpu.dot_dimension_numbers<[1], [0], [0], [1], [0, 0, 1, 1], [], []>} : vector<8x10xbf16>, vector<10x128xbf16>, vector<8x128xf32> -> vector<8x128xf32>
    %c0_26 = arith.constant 0 : index
    %c0_27 = arith.constant 0 : index
    %34 = vector.load %arg21[%c0_26, %c0_27] : memref<8x128xf32, #tpu.memory_space<vmem>>, vector<8x128xf32>
    %35 = arith.truncf %34 : vector<8x128xf32> to vector<8x128xbf16>
    %c0_28 = arith.constant 0 : index
    %c0_29 = arith.constant 0 : index
    %36 = vector.load %arg12[%c0_28, %c0_29] : memref<128x128xbf16, #tpu.memory_space<vmem>>, vector<128x128xbf16>
    %cst_30 = arith.constant dense<0.000000e+00> : vector<8x128xf32>
    %37 = tpu.matmul %35, %36, %cst_30 {dimension_numbers = #tpu.dot_dimension_numbers<[1], [0], [0], [1], [0, 0, 1, 1], [], []>} : vector<8x128xbf16>, vector<128x128xbf16>, vector<8x128xf32> -> vector<8x128xf32>
    %38 = arith.addf %33, %37 : vector<8x128xf32>
    %c0_31 = arith.constant 0 : index
    %c0_32 = arith.constant 0 : index
    %39 = vector.load %arg13[%c0_31, %c0_32] : memref<1x128xf32, #tpu.memory_space<vmem>>, vector<1x128xf32>
    %40 = vector.broadcast %39 : vector<1x128xf32> to vector<8x128xf32>
    %41 = arith.addf %38, %40 : vector<8x128xf32>
    %cst_33 = arith.constant 0.000000e+00 : f32
    %42 = vector.broadcast %cst_33 : f32 to vector<8x128xf32>
    %43 = arith.maximumf %41, %42 : vector<8x128xf32>
    %c0_34 = arith.constant 0 : index
    %c0_35 = arith.constant 0 : index
    %44 = vector.load %arg21[%c0_34, %c0_35] : memref<8x128xf32, #tpu.memory_space<vmem>>, vector<8x128xf32>
    tpu.vector_store %arg21[%c0_34, %c0_35], %43 {strides = array<i32>} : memref<8x128xf32, #tpu.memory_space<vmem>>, vector<8x128xf32>,
    %45 = arith.truncf %28 : vector<8x1280xf32> to vector<8x1280xbf16>
    %c0_36 = arith.constant 0 : index
    %c0_37 = arith.constant 0 : index
    %46 = vector.load %arg14[%c0_36, %c0_37] : memref<1280x32xbf16, #tpu.memory_space<vmem>>, vector<1280x32xbf16>
    %cst_38 = arith.constant dense<0.000000e+00> : vector<8x32xf32>
    %47 = tpu.matmul %45, %46, %cst_38 {dimension_numbers = #tpu.dot_dimension_numbers<[1], [0], [0], [1], [0, 0, 1, 1], [], []>} : vector<8x1280xbf16>, vector<1280x32xbf16>, vector<8x32xf32> -> vector<8x32xf32>
    %48 = arith.truncf %43 : vector<8x128xf32> to vector<8x128xbf16>
    %c0_39 = arith.constant 0 : index
    %c0_40 = arith.constant 0 : index
    %49 = vector.load %arg15[%c0_39, %c0_40] : memref<128x32xbf16, #tpu.memory_space<vmem>>, vector<128x32xbf16>
    %cst_41 = arith.constant dense<0.000000e+00> : vector<8x32xf32>
    %50 = tpu.matmul %48, %49, %cst_41 {dimension_numbers = #tpu.dot_dimension_numbers<[1], [0], [0], [1], [0, 0, 1, 1], [], []>} : vector<8x128xbf16>, vector<128x32xbf16>, vector<8x32xf32> -> vector<8x32xf32>
    %51 = arith.addf %47, %50 : vector<8x32xf32>
    %c0_42 = arith.constant 0 : index
    %c0_43 = arith.constant 0 : index
    %52 = vector.load %arg22[%c0_42, %c0_43] : memref<8x32xf32, #tpu.memory_space<vmem>>, vector<8x32xf32>
    %53 = arith.truncf %52 : vector<8x32xf32> to vector<8x32xbf16>
    %c0_44 = arith.constant 0 : index
    %c0_45 = arith.constant 0 : index
    %54 = vector.load %arg16[%c0_44, %c0_45] : memref<32x32xbf16, #tpu.memory_space<vmem>>, vector<32x32xbf16>
    %cst_46 = arith.constant dense<0.000000e+00> : vector<8x32xf32>
    %55 = tpu.matmul %53, %54, %cst_46 {dimension_numbers = #tpu.dot_dimension_numbers<[1], [0], [0], [1], [0, 0, 1, 1], [], []>} : vector<8x32xbf16>, vector<32x32xbf16>, vector<8x32xf32> -> vector<8x32xf32>
    %56 = arith.addf %51, %55 : vector<8x32xf32>
    %c0_47 = arith.constant 0 : index
    %c0_48 = arith.constant 0 : index
    %57 = vector.load %arg17[%c0_47, %c0_48] : memref<1x32xf32, #tpu.memory_space<vmem>>, vector<1x32xf32>
    %58 = vector.broadcast %57 : vector<1x32xf32> to vector<8x32xf32>
    %59 = arith.addf %56, %58 : vector<8x32xf32>
    %cst_49 = arith.constant 0.000000e+00 : f32
    %60 = vector.broadcast %cst_49 : f32 to vector<8x32xf32>
    %61 = arith.maximumf %59, %60 : vector<8x32xf32>
    %c0_50 = arith.constant 0 : index
    %c0_51 = arith.constant 0 : index
    %62 = vector.load %arg22[%c0_50, %c0_51] : memref<8x32xf32, #tpu.memory_space<vmem>>, vector<8x32xf32>
    tpu.vector_store %arg22[%c0_50, %c0_51], %61 {strides = array<i32>} : memref<8x32xf32, #tpu.memory_space<vmem>>, vector<8x32xf32>,
    %63 = arith.truncf %61 : vector<8x32xf32> to vector<8x32xbf16>
    %c0_52 = arith.constant 0 : index
    %c0_53 = arith.constant 0 : index
    %64 = vector.load %arg18[%c0_52, %c0_53] : memref<32x6xbf16, #tpu.memory_space<vmem>>, vector<32x6xbf16>
    %cst_54 = arith.constant dense<0.000000e+00> : vector<8x6xf32>
    %65 = tpu.matmul %63, %64, %cst_54 {dimension_numbers = #tpu.dot_dimension_numbers<[1], [0], [0], [1], [0, 0, 1, 1], [], []>} : vector<8x32xbf16>, vector<32x6xbf16>, vector<8x6xf32> -> vector<8x6xf32>
    %c0_55 = arith.constant 0 : index
    %c0_56 = arith.constant 0 : index
    %66 = vector.load %arg19[%c0_55, %c0_56] : memref<1x6xf32, #tpu.memory_space<vmem>>, vector<1x6xf32>
    %67 = vector.broadcast %66 : vector<1x6xf32> to vector<8x6xf32>
    %68 = arith.addf %65, %67 : vector<8x6xf32>
    %cst_57 = arith.constant dense<0xFF800000> : vector<8xf32>
    %69 = vector.multi_reduction <maximumf>, %68, %cst_57 [1] : vector<8x6xf32> to vector<8xf32>
    %70 = vector.shape_cast %69 : vector<8xf32> to vector<8x1xf32>
    %71 = vector.broadcast %70 : vector<8x1xf32> to vector<8x6xf32>
    %72 = arith.subf %68, %71 : vector<8x6xf32>
    %73 = math.exp %72 : vector<8x6xf32>
    %cst_58 = arith.constant dense<0.000000e+00> : vector<8xf32>
    %74 = vector.multi_reduction <add>, %73, %cst_58 [1] : vector<8x6xf32> to vector<8xf32>
    %75 = vector.shape_cast %74 : vector<8xf32> to vector<8x1xf32>
    %76 = tpu.reciprocal %75 {approx = true} : vector<8x1xf32> -> vector<8x1xf32>
    %77 = vector.broadcast %76 : vector<8x1xf32> to vector<8x6xf32>
    %78 = arith.mulf %73, %77 : vector<8x6xf32>
    %c0_59 = arith.constant 0 : index
    %c0_60 = arith.constant 0 : index
    %c0_61 = arith.constant 0 : index
    %79 = vector.load %arg20[%c0_59, %c0_60, %c0_61] : memref<1x8x6xf32, #tpu.memory_space<vmem>>, vector<1x8x6xf32>
    %80 = vector.shape_cast %79 : vector<1x8x6xf32> to vector<8x6xf32>
    %81 = vector.shape_cast %78 : vector<8x6xf32> to vector<1x8x6xf32>
    tpu.vector_store %arg20[%c0_59, %c0_60, %c0_61], %81 {strides = array<i32>} : memref<1x8x6xf32, #tpu.memory_space<vmem>>, vector<1x8x6xf32>,
    return
  }
  func.func @transform_0(%arg0: i32) -> (i32, i32, i32) {
    %c0_i32 = arith.constant 0 : i32
    %c0_i32_0 = arith.constant 0 : i32
    %c0_i32_1 = arith.constant 0 : i32
    return %arg0, %c0_i32, %c0_i32_0 : i32, i32, i32
  }
  func.func @transform_1(%arg0: i32) -> (i32, i32, i32) {
    %c0_i32 = arith.constant 0 : i32
    %c0_i32_0 = arith.constant 0 : i32
    %c0_i32_1 = arith.constant 0 : i32
    return %arg0, %c0_i32, %c0_i32_0 : i32, i32, i32
  }
  func.func @transform_2(%arg0: i32) -> (i32, i32) {
    %c0_i32 = arith.constant 0 : i32
    %c0_i32_0 = arith.constant 0 : i32
    %c0_i32_1 = arith.constant 0 : i32
    return %c0_i32, %c0_i32_0 : i32, i32
  }
  func.func @transform_3(%arg0: i32) -> (i32, i32) {
    %c0_i32 = arith.constant 0 : i32
    %c0_i32_0 = arith.constant 0 : i32
    %c0_i32_1 = arith.constant 0 : i32
    return %c0_i32, %c0_i32_0 : i32, i32
  }
  func.func @transform_4(%arg0: i32) -> (i32, i32) {
    %c0_i32 = arith.constant 0 : i32
    %c0_i32_0 = arith.constant 0 : i32
    %c0_i32_1 = arith.constant 0 : i32
    return %c0_i32, %c0_i32_0 : i32, i32
  }
  func.func @transform_5(%arg0: i32) -> (i32, i32) {
    %c0_i32 = arith.constant 0 : i32
    %c0_i32_0 = arith.constant 0 : i32
    %c0_i32_1 = arith.constant 0 : i32
    return %c0_i32, %c0_i32_0 : i32, i32
  }
  func.func @transform_6(%arg0: i32) -> (i32, i32) {
    %c0_i32 = arith.constant 0 : i32
    %c0_i32_0 = arith.constant 0 : i32
    %c0_i32_1 = arith.constant 0 : i32
    return %c0_i32, %c0_i32_0 : i32, i32
  }
  func.func @transform_7(%arg0: i32) -> (i32, i32) {
    %c0_i32 = arith.constant 0 : i32
    %c0_i32_0 = arith.constant 0 : i32
    %c0_i32_1 = arith.constant 0 : i32
    return %c0_i32, %c0_i32_0 : i32, i32
  }
  func.func @transform_8(%arg0: i32) -> (i32, i32) {
    %c0_i32 = arith.constant 0 : i32
    %c0_i32_0 = arith.constant 0 : i32
    %c0_i32_1 = arith.constant 0 : i32
    return %c0_i32, %c0_i32_0 : i32, i32
  }
  func.func @transform_9(%arg0: i32) -> (i32, i32) {
    %c0_i32 = arith.constant 0 : i32
    %c0_i32_0 = arith.constant 0 : i32
    %c0_i32_1 = arith.constant 0 : i32
    return %c0_i32, %c0_i32_0 : i32, i32
  }
  func.func @transform_10(%arg0: i32) -> (i32, i32) {
    %c0_i32 = arith.constant 0 : i32
    %c0_i32_0 = arith.constant 0 : i32
    %c0_i32_1 = arith.constant 0 : i32
    return %c0_i32, %c0_i32_0 : i32, i32
  }
  func.func @transform_11(%arg0: i32) -> (i32, i32) {
    %c0_i32 = arith.constant 0 : i32
    %c0_i32_0 = arith.constant 0 : i32
    %c0_i32_1 = arith.constant 0 : i32
    return %c0_i32, %c0_i32_0 : i32, i32
  }
  func.func @transform_12(%arg0: i32) -> (i32, i32) {
    %c0_i32 = arith.constant 0 : i32
    %c0_i32_0 = arith.constant 0 : i32
    %c0_i32_1 = arith.constant 0 : i32
    return %c0_i32, %c0_i32_0 : i32, i32
  }
  func.func @transform_13(%arg0: i32) -> (i32, i32) {
    %c0_i32 = arith.constant 0 : i32
    %c0_i32_0 = arith.constant 0 : i32
    %c0_i32_1 = arith.constant 0 : i32
    return %c0_i32, %c0_i32_0 : i32, i32
  }
  func.func @transform_14(%arg0: i32) -> (i32, i32) {
    %c0_i32 = arith.constant 0 : i32
    %c0_i32_0 = arith.constant 0 : i32
    %c0_i32_1 = arith.constant 0 : i32
    return %c0_i32, %c0_i32_0 : i32, i32
  }
  func.func @transform_15(%arg0: i32) -> (i32, i32) {
    %c0_i32 = arith.constant 0 : i32
    %c0_i32_0 = arith.constant 0 : i32
    %c0_i32_1 = arith.constant 0 : i32
    return %c0_i32, %c0_i32_0 : i32, i32
  }
  func.func @transform_16(%arg0: i32) -> (i32, i32) {
    %c0_i32 = arith.constant 0 : i32
    %c0_i32_0 = arith.constant 0 : i32
    %c0_i32_1 = arith.constant 0 : i32
    return %c0_i32, %c0_i32_0 : i32, i32
  }
  func.func @transform_17(%arg0: i32) -> (i32, i32) {
    %c0_i32 = arith.constant 0 : i32
    %c0_i32_0 = arith.constant 0 : i32
    %c0_i32_1 = arith.constant 0 : i32
    return %c0_i32, %c0_i32_0 : i32, i32
  }
  func.func @transform_18(%arg0: i32) -> (i32, i32) {
    %c0_i32 = arith.constant 0 : i32
    %c0_i32_0 = arith.constant 0 : i32
    %c0_i32_1 = arith.constant 0 : i32
    return %c0_i32, %c0_i32_0 : i32, i32
  }
  func.func @transform_19(%arg0: i32) -> (i32, i32, i32) {
    %c0_i32 = arith.constant 0 : i32
    %c0_i32_0 = arith.constant 0 : i32
    %c0_i32_1 = arith.constant 0 : i32
    return %arg0, %c0_i32, %c0_i32_0 : i32, i32, i32
  }
  func.func @transform_20(%arg0: i32) -> (i32, i32) {
    %c0_i32 = arith.constant 0 : i32
    %c0_i32_0 = arith.constant 0 : i32
    %c0_i32_1 = arith.constant 0 : i32
    return %c0_i32, %c0_i32_0 : i32, i32
  }
  func.func @transform_21(%arg0: i32) -> (i32, i32) {
    %c0_i32 = arith.constant 0 : i32
    %c0_i32_0 = arith.constant 0 : i32
    %c0_i32_1 = arith.constant 0 : i32
    return %c0_i32, %c0_i32_0 : i32, i32
  }
}

</mosaic_0001>

<llo_original>
// kernel: fused_forward.1
$region0: #{fused_forward.1}
  #allocation0 [shape = 'u32[]', space=smem, size = 0x4, offset = 0x4, fixed_abs, tag = 'smem constant byte address 0x4 - core index']
  #allocation1 [shape = 'u32[72,128]{1,0:T(1,128)}', space=vmem, size = 0x9000, scoped, tag = 'internal scratch']
  %s0 = inlined_call_operand.vmem [shape: f32[4,8,1024], index: 0, kind: input, shape index: {}]
  %s1 = inlined_call_operand.vmem [shape: f32[4,8,10], index: 1, kind: input, shape index: {}]
  %s2 = inlined_call_operand.vmem [shape: f32[8,128], index: 2, kind: input, shape index: {}, may-alias: {2,20}]
  %s3 = inlined_call_operand.vmem [shape: f32[8,32], index: 3, kind: input, shape index: {}, may-alias: {3,21}]
  %s4 = inlined_call_operand.vmem [shape: bf16[1024,512], index: 4, kind: input, shape index: {}]
  %s5 = inlined_call_operand.vmem [shape: f32[1,512], index: 5, kind: input, shape index: {}]
  %s6 = inlined_call_operand.vmem [shape: bf16[512,256], index: 6, kind: input, shape index: {}]
  %s7 = inlined_call_operand.vmem [shape: f32[1,256], index: 7, kind: input, shape index: {}]
  %s8 = inlined_call_operand.hbm [shape: bf16[256,1280], index: 8, kind: input, shape index: {}]
  %s9 = inlined_call_operand.vmem [shape: f32[1,1280], index: 9, kind: input, shape index: {}]
  %s10 = inlined_call_operand.vmem [shape: bf16[10,128], index: 10, kind: input, shape index: {}]
  %s11 = inlined_call_operand.vmem [shape: bf16[128,128], index: 11, kind: input, shape index: {}]
  %s12 = inlined_call_operand.vmem [shape: f32[1,128], index: 12, kind: input, shape index: {}]
  %s13 = inlined_call_operand.vmem [shape: bf16[1280,32], index: 13, kind: input, shape index: {}]
  %s14 = inlined_call_operand.vmem [shape: bf16[128,32], index: 14, kind: input, shape index: {}]
  %s15 = inlined_call_operand.vmem [shape: bf16[32,32], index: 15, kind: input, shape index: {}]
  %s16 = inlined_call_operand.vmem [shape: f32[1,32], index: 16, kind: input, shape index: {}]
  %s17 = inlined_call_operand.vmem [shape: bf16[32,6], index: 17, kind: input, shape index: {}]
  %s18 = inlined_call_operand.vmem [shape: f32[1,6], index: 18, kind: input, shape index: {}]
  %s19 = inlined_call_operand.vmem [shape: f32[4,8,6], index: 19, kind: output, shape index: {0}]
  %s20 = inlined_call_operand.vmem [shape: f32[8,128], index: 20, kind: output, shape index: {1}, may-alias: {2,20}]
  %s21 = inlined_call_operand.vmem [shape: f32[8,32], index: 21, kind: output, shape index: {2}, may-alias: {3,21}]
  %22 = xla_tuple %s19, %s20, %s21
  %s23 = sld [smem:[#allocation0]]
  $region133: #{fused_forward.1} parent=0
    _
  %s25 = ssub.s32 1, %s23
  %s26 = scalar_select 0, %s25, %s23
  $region1: #{fused_forward.1} parent=0
    #allocation2 [shape = 'u8[655360]{0}', space=vmem, size = 0xa0000, scoped, tag = 'input window, operand 8, single buffered']
    #allocation3 [shape = 's32[2]{0}', space=sflag, size = 0x8, scoped, tag = 'scoped memory for fused_forward.1']
    %27 = vsyncpa [#allocation3], 0
    loop: start=0, step=1, limit=6
    $region2: #{fused_forward.1} parent=1 // loop_pre_header
      _
    $region3: #{fused_forward.1} parent=1 // loop_header
      %s29 = sphi 0, %s33
      %p30 = scmp.ge.s32.totalorder %s29, 6
      %s39 = sphi 0, %s41
      %s42 = sphi 0, %s39
      %s43 = sphi 0, %s42
      %s59 = sphi 0, %s43
      %s65 = sphi 0, %s67
      %s68 = sphi 0, %s65
      %s69 = sphi 0, %s68
      %s85 = sphi 0, %s69
      %s89 = sphi 0, %s89
      %s91 = sphi 0, %s89
      %s92 = sphi 0, %s91
      %s106 = sphi 0, %s92
      %s110 = sphi 0, %s110
      %s112 = sphi 0, %s110
      %s113 = sphi 0, %s112
      %s127 = sphi 0, %s113
      %s131 = sphi 0, %s131
      %s133 = sphi 0, %s131
      %s134 = sphi 0, %s133
      %s148 = sphi 0, %s134
      %s152 = sphi 0, %s152
      %s154 = sphi 0, %s152
      %s155 = sphi 0, %s154
      %s169 = sphi 0, %s155
      %s173 = sphi 0, %s173
      %s175 = sphi 0, %s173
      %s176 = sphi 0, %s175
      %s190 = sphi 0, %s176
      %s194 = sphi 0, %s194
      %s196 = sphi 0, %s194
      %s197 = sphi 0, %s196
      %s211 = sphi 0, %s197
      %s215 = sphi 0, %s215
      %s217 = sphi 0, %s215
      %s218 = sphi 0, %s217
      %s232 = sphi 0, %s218
      %s236 = sphi 0, %s236
      %s238 = sphi 0, %s236
      %s239 = sphi 0, %s238
      %s253 = sphi 0, %s239
      %s257 = sphi 0, %s257
      %s259 = sphi 0, %s257
      %s260 = sphi 0, %s259
      %s274 = sphi 0, %s260
      %s278 = sphi 0, %s278
      %s280 = sphi 0, %s278
      %s281 = sphi 0, %s280
      %s295 = sphi 0, %s281
      %s299 = sphi 0, %s299
      %s301 = sphi 0, %s299
      %s302 = sphi 0, %s301
      %s316 = sphi 0, %s302
      %s320 = sphi 0, %s320
      %s322 = sphi 0, %s320
      %s323 = sphi 0, %s322
      %s337 = sphi 0, %s323
      %s341 = sphi 0, %s341
      %s343 = sphi 0, %s341
      %s344 = sphi 0, %s343
      %s358 = sphi 0, %s344
      %s362 = sphi 0, %s362
      %s364 = sphi 0, %s362
      %s365 = sphi 0, %s364
      %s379 = sphi 0, %s365
      %s383 = sphi 0, %s383
      %s385 = sphi 0, %s383
      %s386 = sphi 0, %s385
      %s400 = sphi 0, %s386
      %s404 = sphi 0, %s404
      %s406 = sphi 0, %s404
      %s407 = sphi 0, %s406
      %s421 = sphi 0, %s407
      %s425 = sphi 0, %s425
      %s427 = sphi 0, %s425
      %s428 = sphi 0, %s427
      %s442 = sphi 0, %s428
      %s448 = sphi 0, %s450
      %s451 = sphi 0, %s448
      %s452 = sphi 0, %s451
      %s468 = sphi 0, %s452
      %s472 = sphi 0, %s472
      %s474 = sphi 0, %s472
      %s475 = sphi 0, %s474
      %s489 = sphi 0, %s475
      %s493 = sphi 0, %s493
      %s495 = sphi 0, %s493
      %s496 = sphi 0, %s495
      %s510 = sphi 0, %s496
    $region4: #{fused_forward.1} parent=1 // loop_header_branch
      %32 = sbr.rel (%p30) target = $region8
    $region5: #{fused_forward.1} parent=1 // loop_body
      %s34 = ssub.s32 %s29, 1
      %s35 = ssub.s32 %s29, 2
      %s36 = sadd.s32 %s29, 1
      %s37 = ssub.s32 %s29, %s36
      %p38 = scmp.eq.s32.totalorder %s37, 0
      %s40 = sadd.s32 %s39, 1
      %s41 = scalar_select %p38, %s39, %s40
      %p44 = pneg %p38
      %p45 = scmp.eq.s32.totalorder %s29, 3
      %p46 = por %p44, %p45
      %p47 = scmp.ne.s32.totalorder %s39, %s42
      %p48 = scmp.eq.s32.totalorder %s29, 0
      %p49 = por %p47, %p48
      %p50 = scmp.ne.s32.totalorder %s39, %s42
      %p51 = scmp.eq.s32.totalorder %s34, 3
      %p52 = por %p50, %p51
      %p53 = scmp.ne.s32.totalorder %s42, %s43
      %p54 = scmp.eq.s32.totalorder %s34, 0
      %p55 = por %p53, %p54
      %p56 = scmp.ne.s32.totalorder %s42, %s43
      %p57 = scmp.eq.s32.totalorder %s35, 3
      %p58 = por %p56, %p57
      %p60 = scmp.ne.s32.totalorder %s43, %s59
      %p61 = scmp.eq.s32.totalorder %s35, 0
      %p62 = por %p60, %p61
      %s63 = ssub.s32 %s29, %s36
      %p64 = scmp.eq.s32.totalorder %s63, 0
      %s66 = sadd.s32 %s65, 1
      %s67 = scalar_select %p64, %s65, %s66
      %p70 = pneg %p64
      %p71 = scmp.eq.s32.totalorder %s29, 3
      %p72 = por %p70, %p71
      %p73 = scmp.ne.s32.totalorder %s65, %s68
      %p74 = scmp.eq.s32.totalorder %s29, 0
      %p75 = por %p73, %p74
      %p76 = scmp.ne.s32.totalorder %s65, %s68
      %p77 = scmp.eq.s32.totalorder %s34, 3
      %p78 = por %p76, %p77
      %p79 = scmp.ne.s32.totalorder %s68, %s69
      %p80 = scmp.eq.s32.totalorder %s34, 0
      %p81 = por %p79, %p80
      %p82 = scmp.ne.s32.totalorder %s68, %s69
      %p83 = scmp.eq.s32.totalorder %s35, 3
      %p84 = por %p82, %p83
      %p86 = scmp.ne.s32.totalorder %s69, %s85
      %p87 = scmp.eq.s32.totalorder %s35, 0
      %p88 = por %p86, %p87
      %s90 = sadd.s32 %s89, 1
      %p93 = scmp.eq.s32.totalorder %s29, 3
      %p94 = scmp.ne.s32.totalorder %s89, %s91
      %p95 = scmp.eq.s32.totalorder %s29, 0
      %p96 = por %p94, %p95
      %p97 = scmp.ne.s32.totalorder %s89, %s91
      %p98 = scmp.eq.s32.totalorder %s34, 3
      %p99 = por %p97, %p98
      %p100 = scmp.ne.s32.totalorder %s91, %s92
      %p101 = scmp.eq.s32.totalorder %s34, 0
      %p102 = por %p100, %p101
      %p103 = scmp.ne.s32.totalorder %s91, %s92
      %p104 = scmp.eq.s32.totalorder %s35, 3
      %p105 = por %p103, %p104
      %p107 = scmp.ne.s32.totalorder %s92, %s106
      %p108 = scmp.eq.s32.totalorder %s35, 0
      %p109 = por %p107, %p108
      %s111 = sadd.s32 %s110, 1
      %p114 = scmp.eq.s32.totalorder %s29, 3
      %p115 = scmp.ne.s32.totalorder %s110, %s112
      %p116 = scmp.eq.s32.totalorder %s29, 0
      %p117 = por %p115, %p116
      %p118 = scmp.ne.s32.totalorder %s110, %s112
      %p119 = scmp.eq.s32.totalorder %s34, 3
      %p120 = por %p118, %p119
      %p121 = scmp.ne.s32.totalorder %s112, %s113
      %p122 = scmp.eq.s32.totalorder %s34, 0
      %p123 = por %p121, %p122
      %p124 = scmp.ne.s32.totalorder %s112, %s113
      %p125 = scmp.eq.s32.totalorder %s35, 3
      %p126 = por %p124, %p125
      %p128 = scmp.ne.s32.totalorder %s113, %s127
      %p129 = scmp.eq.s32.totalorder %s35, 0
      %p130 = por %p128, %p129
      %s132 = sadd.s32 %s131, 1
      %p135 = scmp.eq.s32.totalorder %s29, 3
      %p136 = scmp.ne.s32.totalorder %s131, %s133
      %p137 = scmp.eq.s32.totalorder %s29, 0
      %p138 = por %p136, %p137
      %p139 = scmp.ne.s32.totalorder %s131, %s133
      %p140 = scmp.eq.s32.totalorder %s34, 3
      %p141 = por %p139, %p140
      %p142 = scmp.ne.s32.totalorder %s133, %s134
      %p143 = scmp.eq.s32.totalorder %s34, 0
      %p144 = por %p142, %p143
      %p145 = scmp.ne.s32.totalorder %s133, %s134
      %p146 = scmp.eq.s32.totalorder %s35, 3
      %p147 = por %p145, %p146
      %p149 = scmp.ne.s32.totalorder %s134, %s148
      %p150 = scmp.eq.s32.totalorder %s35, 0
      %p151 = por %p149, %p150
      %s153 = sadd.s32 %s152, 1
      %p156 = scmp.eq.s32.totalorder %s29, 3
      %p157 = scmp.ne.s32.totalorder %s152, %s154
      %p158 = scmp.eq.s32.totalorder %s29, 0
      %p159 = por %p157, %p158
      %p160 = scmp.ne.s32.totalorder %s152, %s154
      %p161 = scmp.eq.s32.totalorder %s34, 3
      %p162 = por %p160, %p161
      %p163 = scmp.ne.s32.totalorder %s154, %s155
      %p164 = scmp.eq.s32.totalorder %s34, 0
      %p165 = por %p163, %p164
      %p166 = scmp.ne.s32.totalorder %s154, %s155
      %p167 = scmp.eq.s32.totalorder %s35, 3
      %p168 = por %p166, %p167
      %p170 = scmp.ne.s32.totalorder %s155, %s169
      %p171 = scmp.eq.s32.totalorder %s35, 0
      %p172 = por %p170, %p171
      %s174 = sadd.s32 %s173, 1
      %p177 = scmp.eq.s32.totalorder %s29, 3
      %p178 = scmp.ne.s32.totalorder %s173, %s175
      %p179 = scmp.eq.s32.totalorder %s29, 0
      %p180 = por %p178, %p179
      %p181 = scmp.ne.s32.totalorder %s173, %s175
      %p182 = scmp.eq.s32.totalorder %s34, 3
      %p183 = por %p181, %p182
      %p184 = scmp.ne.s32.totalorder %s175, %s176
      %p185 = scmp.eq.s32.totalorder %s34, 0
      %p186 = por %p184, %p185
      %p187 = scmp.ne.s32.totalorder %s175, %s176
      %p188 = scmp.eq.s32.totalorder %s35, 3
      %p189 = por %p187, %p188
      %p191 = scmp.ne.s32.totalorder %s176, %s190
      %p192 = scmp.eq.s32.totalorder %s35, 0
      %p193 = por %p191, %p192
      %s195 = sadd.s32 %s194, 1
      %p198 = scmp.eq.s32.totalorder %s29, 3
      %p199 = scmp.ne.s32.totalorder %s194, %s196
      %p200 = scmp.eq.s32.totalorder %s29, 0
      %p201 = por %p199, %p200
      %p202 = scmp.ne.s32.totalorder %s194, %s196
      %p203 = scmp.eq.s32.totalorder %s34, 3
      %p204 = por %p202, %p203
      %p205 = scmp.ne.s32.totalorder %s196, %s197
      %p206 = scmp.eq.s32.totalorder %s34, 0
      %p207 = por %p205, %p206
      %p208 = scmp.ne.s32.totalorder %s196, %s197
      %p209 = scmp.eq.s32.totalorder %s35, 3
      %p210 = por %p208, %p209
      %p212 = scmp.ne.s32.totalorder %s197, %s211
      %p213 = scmp.eq.s32.totalorder %s35, 0
      %p214 = por %p212, %p213
      %s216 = sadd.s32 %s215, 1
      %p219 = scmp.eq.s32.totalorder %s29, 3
      %p220 = scmp.ne.s32.totalorder %s215, %s217
      %p221 = scmp.eq.s32.totalorder %s29, 0
      %p222 = por %p220, %p221
      %p223 = scmp.ne.s32.totalorder %s215, %s217
      %p224 = scmp.eq.s32.totalorder %s34, 3
      %p225 = por %p223, %p224
      %p226 = scmp.ne.s32.totalorder %s217, %s218
      %p227 = scmp.eq.s32.totalorder %s34, 0
      %p228 = por %p226, %p227
      %p229 = scmp.ne.s32.totalorder %s217, %s218
      %p230 = scmp.eq.s32.totalorder %s35, 3
      %p231 = por %p229, %p230
      %p233 = scmp.ne.s32.totalorder %s218, %s232
      %p234 = scmp.eq.s32.totalorder %s35, 0
      %p235 = por %p233, %p234
      %s237 = sadd.s32 %s236, 1
      %p240 = scmp.eq.s32.totalorder %s29, 3
      %p241 = scmp.ne.s32.totalorder %s236, %s238
      %p242 = scmp.eq.s32.totalorder %s29, 0
      %p243 = por %p241, %p242
      %p244 = scmp.ne.s32.totalorder %s236, %s238
      %p245 = scmp.eq.s32.totalorder %s34, 3
      %p246 = por %p244, %p245
      %p247 = scmp.ne.s32.totalorder %s238, %s239
      %p248 = scmp.eq.s32.totalorder %s34, 0
      %p249 = por %p247, %p248
      %p250 = scmp.ne.s32.totalorder %s238, %s239
      %p251 = scmp.eq.s32.totalorder %s35, 3
      %p252 = por %p250, %p251
      %p254 = scmp.ne.s32.totalorder %s239, %s253
      %p255 = scmp.eq.s32.totalorder %s35, 0
      %p256 = por %p254, %p255
      %s258 = sadd.s32 %s257, 1
      %p261 = scmp.eq.s32.totalorder %s29, 3
      %p262 = scmp.ne.s32.totalorder %s257, %s259
      %p263 = scmp.eq.s32.totalorder %s29, 0
      %p264 = por %p262, %p263
      %p265 = scmp.ne.s32.totalorder %s257, %s259
      %p266 = scmp.eq.s32.totalorder %s34, 3
      %p267 = por %p265, %p266
      %p268 = scmp.ne.s32.totalorder %s259, %s260
      %p269 = scmp.eq.s32.totalorder %s34, 0
      %p270 = por %p268, %p269
      %p271 = scmp.ne.s32.totalorder %s259, %s260
      %p272 = scmp.eq.s32.totalorder %s35, 3
      %p273 = por %p271, %p272
      %p275 = scmp.ne.s32.totalorder %s260, %s274
      %p276 = scmp.eq.s32.totalorder %s35, 0
      %p277 = por %p275, %p276
      %s279 = sadd.s32 %s278, 1
      %p282 = scmp.eq.s32.totalorder %s29, 3
      %p283 = scmp.ne.s32.totalorder %s278, %s280
      %p284 = scmp.eq.s32.totalorder %s29, 0
      %p285 = por %p283, %p284
      %p286 = scmp.ne.s32.totalorder %s278, %s280
      %p287 = scmp.eq.s32.totalorder %s34, 3
      %p288 = por %p286, %p287
      %p289 = scmp.ne.s32.totalorder %s280, %s281
      %p290 = scmp.eq.s32.totalorder %s34, 0
      %p291 = por %p289, %p290
      %p292 = scmp.ne.s32.totalorder %s280, %s281
      %p293 = scmp.eq.s32.totalorder %s35, 3
      %p294 = por %p292, %p293
      %p296 = scmp.ne.s32.totalorder %s281, %s295
      %p297 = scmp.eq.s32.totalorder %s35, 0
      %p298 = por %p296, %p297
      %s300 = sadd.s32 %s299, 1
      %p303 = scmp.eq.s32.totalorder %s29, 3
      %p304 = scmp.ne.s32.totalorder %s299, %s301
      %p305 = scmp.eq.s32.totalorder %s29, 0
      %p306 = por %p304, %p305
      %p307 = scmp.ne.s32.totalorder %s299, %s301
      %p308 = scmp.eq.s32.totalorder %s34, 3
      %p309 = por %p307, %p308
      %p310 = scmp.ne.s32.totalorder %s301, %s302
      %p311 = scmp.eq.s32.totalorder %s34, 0
      %p312 = por %p310, %p311
      %p313 = scmp.ne.s32.totalorder %s301, %s302
      %p314 = scmp.eq.s32.totalorder %s35, 3
      %p315 = por %p313, %p314
      %p317 = scmp.ne.s32.totalorder %s302, %s316
      %p318 = scmp.eq.s32.totalorder %s35, 0
      %p319 = por %p317, %p318
      %s321 = sadd.s32 %s320, 1
      %p324 = scmp.eq.s32.totalorder %s29, 3
      %p325 = scmp.ne.s32.totalorder %s320, %s322
      %p326 = scmp.eq.s32.totalorder %s29, 0
      %p327 = por %p325, %p326
      %p328 = scmp.ne.s32.totalorder %s320, %s322
      %p329 = scmp.eq.s32.totalorder %s34, 3
      %p330 = por %p328, %p329
      %p331 = scmp.ne.s32.totalorder %s322, %s323
      %p332 = scmp.eq.s32.totalorder %s34, 0
      %p333 = por %p331, %p332
      %p334 = scmp.ne.s32.totalorder %s322, %s323
      %p335 = scmp.eq.s32.totalorder %s35, 3
      %p336 = por %p334, %p335
      %p338 = scmp.ne.s32.totalorder %s323, %s337
      %p339 = scmp.eq.s32.totalorder %s35, 0
      %p340 = por %p338, %p339
      %s342 = sadd.s32 %s341, 1
      %p345 = scmp.eq.s32.totalorder %s29, 3
      %p346 = scmp.ne.s32.totalorder %s341, %s343
      %p347 = scmp.eq.s32.totalorder %s29, 0
      %p348 = por %p346, %p347
      %p349 = scmp.ne.s32.totalorder %s341, %s343
      %p350 = scmp.eq.s32.totalorder %s34, 3
      %p351 = por %p349, %p350
      %p352 = scmp.ne.s32.totalorder %s343, %s344
      %p353 = scmp.eq.s32.totalorder %s34, 0
      %p354 = por %p352, %p353
      %p355 = scmp.ne.s32.totalorder %s343, %s344
      %p356 = scmp.eq.s32.totalorder %s35, 3
      %p357 = por %p355, %p356
      %p359 = scmp.ne.s32.totalorder %s344, %s358
      %p360 = scmp.eq.s32.totalorder %s35, 0
      %p361 = por %p359, %p360
      %s363 = sadd.s32 %s362, 1
      %p366 = scmp.eq.s32.totalorder %s29, 3
      %p367 = scmp.ne.s32.totalorder %s362, %s364
      %p368 = scmp.eq.s32.totalorder %s29, 0
      %p369 = por %p367, %p368
      %p370 = scmp.ne.s32.totalorder %s362, %s364
      %p371 = scmp.eq.s32.totalorder %s34, 3
      %p372 = por %p370, %p371
      %p373 = scmp.ne.s32.totalorder %s364, %s365
      %p374 = scmp.eq.s32.totalorder %s34, 0
      %p375 = por %p373, %p374
      %p376 = scmp.ne.s32.totalorder %s364, %s365
      %p377 = scmp.eq.s32.totalorder %s35, 3
      %p378 = por %p376, %p377
      %p380 = scmp.ne.s32.totalorder %s365, %s379
      %p381 = scmp.eq.s32.totalorder %s35, 0
      %p382 = por %p380, %p381
      %s384 = sadd.s32 %s383, 1
      %p387 = scmp.eq.s32.totalorder %s29, 3
      %p388 = scmp.ne.s32.totalorder %s383, %s385
      %p389 = scmp.eq.s32.totalorder %s29, 0
      %p390 = por %p388, %p389
      %p391 = scmp.ne.s32.totalorder %s383, %s385
      %p392 = scmp.eq.s32.totalorder %s34, 3
      %p393 = por %p391, %p392
      %p394 = scmp.ne.s32.totalorder %s385, %s386
      %p395 = scmp.eq.s32.totalorder %s34, 0
      %p396 = por %p394, %p395
      %p397 = scmp.ne.s32.totalorder %s385, %s386
      %p398 = scmp.eq.s32.totalorder %s35, 3
      %p399 = por %p397, %p398
      %p401 = scmp.ne.s32.totalorder %s386, %s400
      %p402 = scmp.eq.s32.totalorder %s35, 0
      %p403 = por %p401, %p402
      %s405 = sadd.s32 %s404, 1
      %p408 = scmp.eq.s32.totalorder %s29, 3
      %p409 = scmp.ne.s32.totalorder %s404, %s406
      %p410 = scmp.eq.s32.totalorder %s29, 0
      %p411 = por %p409, %p410
      %p412 = scmp.ne.s32.totalorder %s404, %s406
      %p413 = scmp.eq.s32.totalorder %s34, 3
      %p414 = por %p412, %p413
      %p415 = scmp.ne.s32.totalorder %s406, %s407
      %p416 = scmp.eq.s32.totalorder %s34, 0
      %p417 = por %p415, %p416
      %p418 = scmp.ne.s32.totalorder %s406, %s407
      %p419 = scmp.eq.s32.totalorder %s35, 3
      %p420 = por %p418, %p419
      %p422 = scmp.ne.s32.totalorder %s407, %s421
      %p423 = scmp.eq.s32.totalorder %s35, 0
      %p424 = por %p422, %p423
      %s426 = sadd.s32 %s425, 1
      %p429 = scmp.eq.s32.totalorder %s29, 3
      %p430 = scmp.ne.s32.totalorder %s425, %s427
      %p431 = scmp.eq.s32.totalorder %s29, 0
      %p432 = por %p430, %p431
      %p433 = scmp.ne.s32.totalorder %s425, %s427
      %p434 = scmp.eq.s32.totalorder %s34, 3
      %p435 = por %p433, %p434
      %p436 = scmp.ne.s32.totalorder %s427, %s428
      %p437 = scmp.eq.s32.totalorder %s34, 0
      %p438 = por %p436, %p437
      %p439 = scmp.ne.s32.totalorder %s427, %s428
      %p440 = scmp.eq.s32.totalorder %s35, 3
      %p441 = por %p439, %p440
      %p443 = scmp.ne.s32.totalorder %s428, %s442
      %p444 = scmp.eq.s32.totalorder %s35, 0
      %p445 = por %p443, %p444
      %s446 = ssub.s32 %s29, %s36
      %p447 = scmp.eq.s32.totalorder %s446, 0
      %s449 = sadd.s32 %s448, 1
      %s450 = scalar_select %p447, %s448, %s449
      %p453 = pneg %p447
      %p454 = scmp.eq.s32.totalorder %s29, 3
      %p455 = por %p453, %p454
      %p456 = scmp.ne.s32.totalorder %s448, %s451
      %p457 = scmp.eq.s32.totalorder %s29, 0
      %p458 = por %p456, %p457
      %p459 = scmp.ne.s32.totalorder %s448, %s451
      %p460 = scmp.eq.s32.totalorder %s34, 3
      %p461 = por %p459, %p460
      %p462 = scmp.ne.s32.totalorder %s451, %s452
      %p463 = scmp.eq.s32.totalorder %s34, 0
      %p464 = por %p462, %p463
      %p465 = scmp.ne.s32.totalorder %s451, %s452
      %p466 = scmp.eq.s32.totalorder %s35, 3
      %p467 = por %p465, %p466
      %p469 = scmp.ne.s32.totalorder %s452, %s468
      %p470 = scmp.eq.s32.totalorder %s35, 0
      %p471 = por %p469, %p470
      %s473 = sadd.s32 %s472, 1
      %p476 = scmp.eq.s32.totalorder %s29, 3
      %p477 = scmp.ne.s32.totalorder %s472, %s474
      %p478 = scmp.eq.s32.totalorder %s29, 0
      %p479 = por %p477, %p478
      %p480 = scmp.ne.s32.totalorder %s472, %s474
      %p481 = scmp.eq.s32.totalorder %s34, 3
      %p482 = por %p480, %p481
      %p483 = scmp.ne.s32.totalorder %s474, %s475
      %p484 = scmp.eq.s32.totalorder %s34, 0
      %p485 = por %p483, %p484
      %p486 = scmp.ne.s32.totalorder %s474, %s475
      %p487 = scmp.eq.s32.totalorder %s35, 3
      %p488 = por %p486, %p487
      %p490 = scmp.ne.s32.totalorder %s475, %s489
      %p491 = scmp.eq.s32.totalorder %s35, 0
      %p492 = por %p490, %p491
      %s494 = sadd.s32 %s493, 1
      %p497 = scmp.eq.s32.totalorder %s29, 3
      %p498 = scmp.ne.s32.totalorder %s493, %s495
      %p499 = scmp.eq.s32.totalorder %s29, 0
      %p500 = por %p498, %p499
      %p501 = scmp.ne.s32.totalorder %s493, %s495
      %p502 = scmp.eq.s32.totalorder %s34, 3
      %p503 = por %p501, %p502
      %p504 = scmp.ne.s32.totalorder %s495, %s496
      %p505 = scmp.eq.s32.totalorder %s34, 0
      %p506 = por %p504, %p505
      %p507 = scmp.ne.s32.totalorder %s495, %s496
      %p508 = scmp.eq.s32.totalorder %s35, 3
      %p509 = por %p507, %p508
      %p511 = scmp.ne.s32.totalorder %s496, %s510
      %p512 = scmp.eq.s32.totalorder %s35, 0
      %p513 = por %p511, %p512
      %p514 = scmp.le.s32.totalorder 1, %s29
      %p515 = scmp.lt.s32.totalorder %s29, 5
      %p516 = pnand %p514, %p515
      %p517 = pneg %p516
      // Predicated region
      $region9: #{fused_forward.1} parent=5 // pred_check
        _
      $region10: #{fused_forward.1} parent=5 // pred_check_branch
        %519 = sbr.rel (%p516) target = $region12
      $region11: #{fused_forward.1} parent=5 // pred_region
        %s520 = ssub.s32 %s29, 1
        // Predicated region
        $region13: #{fused_forward.1} parent=11 // pred_check
          %p521 = pneg %p102
        $region14: #{fused_forward.1} parent=11 // pred_check_branch
          %523 = sbr.rel (%p521) target = $region16
        $region15: #{fused_forward.1} parent=11 // pred_region
          _
        $region16: #{fused_forward.1} parent=11 // pred_fallthru
          _
        // Predicated region
        $region17: #{fused_forward.1} parent=11 // pred_check
          %p524 = pneg %p123
        $region18: #{fused_forward.1} parent=11 // pred_check_branch
          %526 = sbr.rel (%p524) target = $region20
        $region19: #{fused_forward.1} parent=11 // pred_region
          _
        $region20: #{fused_forward.1} parent=11 // pred_fallthru
          _
        // Predicated region
        $region21: #{fused_forward.1} parent=11 // pred_check
          %p527 = pneg %p144
        $region22: #{fused_forward.1} parent=11 // pred_check_branch
          %529 = sbr.rel (%p527) target = $region24
        $region23: #{fused_forward.1} parent=11 // pred_region
          _
        $region24: #{fused_forward.1} parent=11 // pred_fallthru
          _
        // Predicated region
        $region25: #{fused_forward.1} parent=11 // pred_check
          %p530 = pneg %p165
        $region26: #{fused_forward.1} parent=11 // pred_check_branch
          %532 = sbr.rel (%p530) target = $region28
        $region27: #{fused_forward.1} parent=11 // pred_region
          _
        $region28: #{fused_forward.1} parent=11 // pred_fallthru
          _
        // Predicated region
        $region29: #{fused_forward.1} parent=11 // pred_check
          %p533 = pneg %p186
        $region30: #{fused_forward.1} parent=11 // pred_check_branch
          %535 = sbr.rel (%p533) target = $region32
        $region31: #{fused_forward.1} parent=11 // pred_region
          _
        $region32: #{fused_forward.1} parent=11 // pred_fallthru
          _
        // Predicated region
        $region33: #{fused_forward.1} parent=11 // pred_check
          %p536 = pneg %p207
        $region34: #{fused_forward.1} parent=11 // pred_check_branch
          %538 = sbr.rel (%p536) target = $region36
        $region35: #{fused_forward.1} parent=11 // pred_region
          _
        $region36: #{fused_forward.1} parent=11 // pred_fallthru
          _
        // Predicated region
        $region37: #{fused_forward.1} parent=11 // pred_check
          %p539 = pneg %p228
        $region38: #{fused_forward.1} parent=11 // pred_check_branch
          %541 = sbr.rel (%p539) target = $region40
        $region39: #{fused_forward.1} parent=11 // pred_region
          %543 = vsyncadd [#allocation3], 0
          %s544 = sshll.u32 %s8, 4
          %s545 = int_to_ptr.hbm [resolvable:$true] %s544
          %s546 = sshll.u32 [#allocation2], 4
          %s547 = int_to_ptr.vmem [resolvable:$true] %s546
          %552 = dma.hbm_to_vmem [thread:$0]  %s545, 20480, %s547, [#allocation3], 640, 640, 40
        $region40: #{fused_forward.1} parent=11 // pred_fallthru
          _
        // Predicated region
        $region41: #{fused_forward.1} parent=11 // pred_check
          %p553 = pneg %p249
        $region42: #{fused_forward.1} parent=11 // pred_check_branch
          %555 = sbr.rel (%p553) target = $region44
        $region43: #{fused_forward.1} parent=11 // pred_region
          _
        $region44: #{fused_forward.1} parent=11 // pred_fallthru
          _
        // Predicated region
        $region45: #{fused_forward.1} parent=11 // pred_check
          %p556 = pneg %p270
        $region46: #{fused_forward.1} parent=11 // pred_check_branch
          %558 = sbr.rel (%p556) target = $region48
        $region47: #{fused_forward.1} parent=11 // pred_region
          _
        $region48: #{fused_forward.1} parent=11 // pred_fallthru
          _
        // Predicated region
        $region49: #{fused_forward.1} parent=11 // pred_check
          %p559 = pneg %p291
        $region50: #{fused_forward.1} parent=11 // pred_check_branch
          %561 = sbr.rel (%p559) target = $region52
        $region51: #{fused_forward.1} parent=11 // pred_region
          _
        $region52: #{fused_forward.1} parent=11 // pred_fallthru
          _
        // Predicated region
        $region53: #{fused_forward.1} parent=11 // pred_check
          %p562 = pneg %p312
        $region54: #{fused_forward.1} parent=11 // pred_check_branch
          %564 = sbr.rel (%p562) target = $region56
        $region55: #{fused_forward.1} parent=11 // pred_region
          _
        $region56: #{fused_forward.1} parent=11 // pred_fallthru
          _
        // Predicated region
        $region57: #{fused_forward.1} parent=11 // pred_check
          %p565 = pneg %p333
        $region58: #{fused_forward.1} parent=11 // pred_check_branch
          %567 = sbr.rel (%p565) target = $region60
        $region59: #{fused_forward.1} parent=11 // pred_region
          _
        $region60: #{fused_forward.1} parent=11 // pred_fallthru
          _
        // Predicated region
        $region61: #{fused_forward.1} parent=11 // pred_check
          %p568 = pneg %p354
        $region62: #{fused_forward.1} parent=11 // pred_check_branch
          %570 = sbr.rel (%p568) target = $region64
        $region63: #{fused_forward.1} parent=11 // pred_region
          _
        $region64: #{fused_forward.1} parent=11 // pred_fallthru
          _
        // Predicated region
        $region65: #{fused_forward.1} parent=11 // pred_check
          %p571 = pneg %p375
        $region66: #{fused_forward.1} parent=11 // pred_check_branch
          %573 = sbr.rel (%p571) target = $region68
        $region67: #{fused_forward.1} parent=11 // pred_region
          _
        $region68: #{fused_forward.1} parent=11 // pred_fallthru
          _
        // Predicated region
        $region69: #{fused_forward.1} parent=11 // pred_check
          %p574 = pneg %p396
        $region70: #{fused_forward.1} parent=11 // pred_check_branch
          %576 = sbr.rel (%p574) target = $region72
        $region71: #{fused_forward.1} parent=11 // pred_region
          _
        $region72: #{fused_forward.1} parent=11 // pred_fallthru
          _
        // Predicated region
        $region73: #{fused_forward.1} parent=11 // pred_check
          %p577 = pneg %p417
        $region74: #{fused_forward.1} parent=11 // pred_check_branch
          %579 = sbr.rel (%p577) target = $region76
        $region75: #{fused_forward.1} parent=11 // pred_region
          _
        $region76: #{fused_forward.1} parent=11 // pred_fallthru
          _
        // Predicated region
        $region77: #{fused_forward.1} parent=11 // pred_check
          %p580 = pneg %p438
        $region78: #{fused_forward.1} parent=11 // pred_check_branch
          %582 = sbr.rel (%p580) target = $region80
        $region79: #{fused_forward.1} parent=11 // pred_region
          _
        $region80: #{fused_forward.1} parent=11 // pred_fallthru
          _
      $region12: #{fused_forward.1} parent=5 // pred_fallthru
        _
      %p583 = scmp.lt.s32.totalorder %s29, 4
      // Predicated region
      $region81: #{fused_forward.1} parent=5 // pred_check
        %p584 = pneg %p583
      $region82: #{fused_forward.1} parent=5 // pred_check_branch
        %586 = sbr.rel (%p584) target = $region84
      $region83: #{fused_forward.1} parent=5 // pred_region
        // Predicated region
        $region85: #{fused_forward.1} parent=83 // pred_check
          %p587 = pneg %p49
        $region86: #{fused_forward.1} parent=83 // pred_check_branch
          %589 = sbr.rel (%p587) target = $region88
        $region87: #{fused_forward.1} parent=83 // pred_region
          %p590 = scmp.lt.s32.totalorder %s29, 3
          %s591 = scalar_select %p590, %s29, 3
          %s592 = smul.addr %s591, 8
          %s593 = smul.addr %s592, 8
          %s594 = scalar_lea.vmem %s0, %s593
        $region88: #{fused_forward.1} parent=83 // pred_fallthru
          _
        // Predicated region
        $region89: #{fused_forward.1} parent=83 // pred_check
          %p595 = pneg %p75
        $region90: #{fused_forward.1} parent=83 // pred_check_branch
          %597 = sbr.rel (%p595) target = $region92
        $region91: #{fused_forward.1} parent=83 // pred_region
          %p598 = scmp.lt.s32.totalorder %s29, 3
          %s599 = scalar_select %p598, %s29, 3
          %s600 = smul.addr %s599, 8
          %s601 = scalar_lea.vmem %s1, %s600
        $region92: #{fused_forward.1} parent=83 // pred_fallthru
          _
      $region84: #{fused_forward.1} parent=5 // pred_fallthru
        _
      %p602 = scmp.le.s32.totalorder 1, %s29
      %p603 = scmp.lt.s32.totalorder %s29, 5
      %p604 = pnand %p602, %p603
      %p605 = pneg %p604
      // Predicated region
      $region93: #{fused_forward.1} parent=5 // pred_check
        _
      $region94: #{fused_forward.1} parent=5 // pred_check_branch
        %607 = sbr.rel (%p604) target = $region96
      $region95: #{fused_forward.1} parent=5 // pred_region
        %s608 = ssub.s32 %s29, 1
        // Predicated region
        $region97: #{fused_forward.1} parent=95 // pred_check
          %p609 = pneg %p228
        $region98: #{fused_forward.1} parent=95 // pred_check_branch
          %611 = sbr.rel (%p609) target = $region100
        $region99: #{fused_forward.1} parent=95 // pred_region
          %613 = dma.done [#allocation3], 20480
        $region100: #{fused_forward.1} parent=95 // pred_fallthru
          _
        %p614 = scmp.lt.s32.totalorder %s34, 3
        %s615 = scalar_select %p614, %s34, 3
        %s616 = smul.addr %s615, 8
        %s617 = smul.addr %s616, 8
        %s618 = scalar_lea.vmem %s0, %s617
        %p619 = pneg %p55
        %p620 = pneg %p52
        %p621 = scmp.lt.s32.totalorder %s34, 3
        %s622 = scalar_select %p621, %s34, 3
        %s623 = smul.addr %s622, 8
        %s624 = scalar_lea.vmem %s1, %s623
        %p625 = pneg %p81
        %p626 = pneg %p78
        %p627 = pneg %p102
        %p628 = pneg %p99
        %p629 = pneg %p123
        %p630 = pneg %p120
        %p631 = pneg %p144
        %p632 = pneg %p141
        %p633 = pneg %p165
        %p634 = pneg %p162
        %p635 = pneg %p186
        %p636 = pneg %p183
        %p637 = pneg %p207
        %p638 = pneg %p204
        %p639 = pneg %p228
        %p640 = pneg %p225
        %p641 = pneg %p249
        %p642 = pneg %p246
        %p643 = pneg %p270
        %p644 = pneg %p267
        %p645 = pneg %p291
        %p646 = pneg %p288
        %p647 = pneg %p312
        %p648 = pneg %p309
        %p649 = pneg %p333
        %p650 = pneg %p330
        %p651 = pneg %p354
        %p652 = pneg %p351
        %p653 = pneg %p375
        %p654 = pneg %p372
        %p655 = pneg %p396
        %p656 = pneg %p393
        %p657 = pneg %p417
        %p658 = pneg %p414
        %p659 = pneg %p438
        %p660 = pneg %p435
        %p661 = pneg %p464
        %p662 = pneg %p461
        %p663 = scmp.lt.s32.totalorder %s34, 3
        %s664 = scalar_select %p663, %s34, 3
        %s665 = smul.addr %s664, 8
        %s666 = scalar_lea.vmem %s19, %s665
        %p667 = pneg %p485
        %p668 = pneg %p482
        %p669 = pneg %p506
        %p670 = pneg %p503
        %p671 = scmp.lt.s32.totalorder %s34, 3
        %s672 = scalar_select %p671, %s34, 3
        %s673 = smul.addr %s672, 8
        %s674 = smul.addr %s673, 8
        %s675 = scalar_lea.vmem %s0, %s674
        %p676 = scmp.lt.s32.totalorder %s34, 3
        %s677 = scalar_select %p676, %s34, 3
        %s678 = smul.addr %s677, 8
        %s679 = scalar_lea.vmem %s1, %s678
        %p680 = scmp.lt.s32.totalorder %s34, 3
        %s681 = scalar_select %p680, %s34, 3
        %s682 = smul.addr %s681, 8
        %s683 = scalar_lea.vmem %s19, %s682
        %p685 = scmp.eq.s32.totalorder %s34, 0
        // Predicated region
        $region101: #{fused_forward.1} parent=95 // pred_check
          %p686 = pneg %p685
        $region102: #{fused_forward.1} parent=95 // pred_check_branch
          %688 = sbr.rel (%p686) target = $region104
        $region103: #{fused_forward.1} parent=95 // pred_region
          %v689 = vld [vmem:[%s2] sm:$0xff]
          %690 = vst [vmem:[%s20] sm:$0xff] %v689
          %v691 = vld [vmem:[%s3] sm:$0xff]
          %vm692 = vcmask 261120
          %693 = vst.msk [vmem:[%s21] sm:$0xff] %vm692, %v691
        $region104: #{fused_forward.1} parent=95 // pred_fallthru
          _
        %v694 = vld [vmem:[%s675] sm:$0xff]
        %v695 = vld [vmem:[%s675 + $0x8] sm:$0xff]
        %v696 = vld [vmem:[%s675 + $0x10] sm:$0xff]
        %v697 = vld [vmem:[%s675 + $0x18] sm:$0xff]
        %v698 = vld [vmem:[%s675 + $0x20] sm:$0xff]
        %v699 = vld [vmem:[%s675 + $0x28] sm:$0xff]
        %v700 = vld [vmem:[%s675 + $0x30] sm:$0xff]
        %v701 = vld [vmem:[%s675 + $0x38] sm:$0xff]
        %v702 = vpack.c.bf16 %v694, %v694
        %v703 = vpack.c.bf16 %v695, %v695
        %v704 = vpack.c.bf16 %v696, %v696
        %v705 = vpack.c.bf16 %v697, %v697
        %v706 = vpack.c.bf16 %v698, %v698
        %v707 = vpack.c.bf16 %v699, %v699
        %v708 = vpack.c.bf16 %v700, %v700
        %v709 = vpack.c.bf16 %v701, %v701
        %v710 = vld [vmem:[%s4] sm:$0xff]
        %v711 = vld [vmem:[%s4 + $0x8] sm:$0xff]
        %v712 = vld [vmem:[%s4 + $0x10] sm:$0xff]
        %v713 = vld [vmem:[%s4 + $0x18] sm:$0xff]
        %v714 = vld [vmem:[%s4 + $0x20] sm:$0xff]
        %v715 = vld [vmem:[%s4 + $0x28] sm:$0xff]
        %v716 = vld [vmem:[%s4 + $0x30] sm:$0xff]
        %v717 = vld [vmem:[%s4 + $0x38] sm:$0xff]
        %v718 = vld [vmem:[%s4 + $0x40] sm:$0xff]
        %v719 = vld [vmem:[%s4 + $0x48] sm:$0xff]
        %v720 = vld [vmem:[%s4 + $0x50] sm:$0xff]
        %v721 = vld [vmem:[%s4 + $0x58] sm:$0xff]
        %v722 = vld [vmem:[%s4 + $0x60] sm:$0xff]
        %v723 = vld [vmem:[%s4 + $0x68] sm:$0xff]
        %v724 = vld [vmem:[%s4 + $0x70] sm:$0xff]
        %v725 = vld [vmem:[%s4 + $0x78] sm:$0xff]
        %v726 = vld [vmem:[%s4 + $0x80] sm:$0xff]
        %v727 = vld [vmem:[%s4 + $0x88] sm:$0xff]
        %v728 = vld [vmem:[%s4 + $0x90] sm:$0xff]
        %v729 = vld [vmem:[%s4 + $0x98] sm:$0xff]
        %v730 = vld [vmem:[%s4 + $0xa0] sm:$0xff]
        %v731 = vld [vmem:[%s4 + $0xa8] sm:$0xff]
        %v732 = vld [vmem:[%s4 + $0xb0] sm:$0xff]
        %v733 = vld [vmem:[%s4 + $0xb8] sm:$0xff]
        %v734 = vld [vmem:[%s4 + $0xc0] sm:$0xff]
        %v735 = vld [vmem:[%s4 + $0xc8] sm:$0xff]
        %v736 = vld [vmem:[%s4 + $0xd0] sm:$0xff]
        %v737 = vld [vmem:[%s4 + $0xd8] sm:$0xff]
        %v738 = vld [vmem:[%s4 + $0xe0] sm:$0xff]
        %v739 = vld [vmem:[%s4 + $0xe8] sm:$0xff]
        %v740 = vld [vmem:[%s4 + $0xf0] sm:$0xff]
        %v741 = vld [vmem:[%s4 + $0xf8] sm:$0xff]
        %v742 = vld [vmem:[%s4 + $0x100] sm:$0xff]
        %v743 = vld [vmem:[%s4 + $0x108] sm:$0xff]
        %v744 = vld [vmem:[%s4 + $0x110] sm:$0xff]
        %v745 = vld [vmem:[%s4 + $0x118] sm:$0xff]
        %v746 = vld [vmem:[%s4 + $0x120] sm:$0xff]
        %v747 = vld [vmem:[%s4 + $0x128] sm:$0xff]
        %v748 = vld [vmem:[%s4 + $0x130] sm:$0xff]
        %v749 = vld [vmem:[%s4 + $0x138] sm:$0xff]
        %v750 = vld [vmem:[%s4 + $0x140] sm:$0xff]
        %v751 = vld [vmem:[%s4 + $0x148] sm:$0xff]
        %v752 = vld [vmem:[%s4 + $0x150] sm:$0xff]
        %v753 = vld [vmem:[%s4 + $0x158] sm:$0xff]
        %v754 = vld [vmem:[%s4 + $0x160] sm:$0xff]
        %v755 = vld [vmem:[%s4 + $0x168] sm:$0xff]
        %v756 = vld [vmem:[%s4 + $0x170] sm:$0xff]
        %v757 = vld [vmem:[%s4 + $0x178] sm:$0xff]
        %v758 = vld [vmem:[%s4 + $0x180] sm:$0xff]
        %v759 = vld [vmem:[%s4 + $0x188] sm:$0xff]
        %v760 = vld [vmem:[%s4 + $0x190] sm:$0xff]
        %v761 = vld [vmem:[%s4 + $0x198] sm:$0xff]
        %v762 = vld [vmem:[%s4 + $0x1a0] sm:$0xff]
        %v763 = vld [vmem:[%s4 + $0x1a8] sm:$0xff]
        %v764 = vld [vmem:[%s4 + $0x1b0] sm:$0xff]
        %v765 = vld [vmem:[%s4 + $0x1b8] sm:$0xff]
        %v766 = vld [vmem:[%s4 + $0x1c0] sm:$0xff]
        %v767 = vld [vmem:[%s4 + $0x1c8] sm:$0xff]
        %v768 = vld [vmem:[%s4 + $0x1d0] sm:$0xff]
        %v769 = vld [vmem:[%s4 + $0x1d8] sm:$0xff]
        %v770 = vld [vmem:[%s4 + $0x1e0] sm:$0xff]
        %v771 = vld [vmem:[%s4 + $0x1e8] sm:$0xff]
        %v772 = vld [vmem:[%s4 + $0x1f0] sm:$0xff]
        %v773 = vld [vmem:[%s4 + $0x1f8] sm:$0xff]
        %v774 = vld [vmem:[%s4 + $0x200] sm:$0xff]
        %v775 = vld [vmem:[%s4 + $0x208] sm:$0xff]
        %v776 = vld [vmem:[%s4 + $0x210] sm:$0xff]
        %v777 = vld [vmem:[%s4 + $0x218] sm:$0xff]
        %v778 = vld [vmem:[%s4 + $0x220] sm:$0xff]
        %v779 = vld [vmem:[%s4 + $0x228] sm:$0xff]
        %v780 = vld [vmem:[%s4 + $0x230] sm:$0xff]
        %v781 = vld [vmem:[%s4 + $0x238] sm:$0xff]
        %v782 = vld [vmem:[%s4 + $0x240] sm:$0xff]
        %v783 = vld [vmem:[%s4 + $0x248] sm:$0xff]
        %v784 = vld [vmem:[%s4 + $0x250] sm:$0xff]
        %v785 = vld [vmem:[%s4 + $0x258] sm:$0xff]
        %v786 = vld [vmem:[%s4 + $0x260] sm:$0xff]
        %v787 = vld [vmem:[%s4 + $0x268] sm:$0xff]
        %v788 = vld [vmem:[%s4 + $0x270] sm:$0xff]
        %v789 = vld [vmem:[%s4 + $0x278] sm:$0xff]
        %v790 = vld [vmem:[%s4 + $0x280] sm:$0xff]
        %v791 = vld [vmem:[%s4 + $0x288] sm:$0xff]
        %v792 = vld [vmem:[%s4 + $0x290] sm:$0xff]
        %v793 = vld [vmem:[%s4 + $0x298] sm:$0xff]
        %v794 = vld [vmem:[%s4 + $0x2a0] sm:$0xff]
        %v795 = vld [vmem:[%s4 + $0x2a8] sm:$0xff]
        %v796 = vld [vmem:[%s4 + $0x2b0] sm:$0xff]
        %v797 = vld [vmem:[%s4 + $0x2b8] sm:$0xff]
        %v798 = vld [vmem:[%s4 + $0x2c0] sm:$0xff]
        %v799 = vld [vmem:[%s4 + $0x2c8] sm:$0xff]
        %v800 = vld [vmem:[%s4 + $0x2d0] sm:$0xff]
        %v801 = vld [vmem:[%s4 + $0x2d8] sm:$0xff]
        %v802 = vld [vmem:[%s4 + $0x2e0] sm:$0xff]
        %v803 = vld [vmem:[%s4 + $0x2e8] sm:$0xff]
        %v804 = vld [vmem:[%s4 + $0x2f0] sm:$0xff]
        %v805 = vld [vmem:[%s4 + $0x2f8] sm:$0xff]
        %v806 = vld [vmem:[%s4 + $0x300] sm:$0xff]
        %v807 = vld [vmem:[%s4 + $0x308] sm:$0xff]
        %v808 = vld [vmem:[%s4 + $0x310] sm:$0xff]
        %v809 = vld [vmem:[%s4 + $0x318] sm:$0xff]
        %v810 = vld [vmem:[%s4 + $0x320] sm:$0xff]
        %v811 = vld [vmem:[%s4 + $0x328] sm:$0xff]
        %v812 = vld [vmem:[%s4 + $0x330] sm:$0xff]
        %v813 = vld [vmem:[%s4 + $0x338] sm:$0xff]
        %v814 = vld [vmem:[%s4 + $0x340] sm:$0xff]
        %v815 = vld [vmem:[%s4 + $0x348] sm:$0xff]
        %v816 = vld [vmem:[%s4 + $0x350] sm:$0xff]
        %v817 = vld [vmem:[%s4 + $0x358] sm:$0xff]
        %v818 = vld [vmem:[%s4 + $0x360] sm:$0xff]
        %v819 = vld [vmem:[%s4 + $0x368] sm:$0xff]
        %v820 = vld [vmem:[%s4 + $0x370] sm:$0xff]
        %v821 = vld [vmem:[%s4 + $0x378] sm:$0xff]
        %v822 = vld [vmem:[%s4 + $0x380] sm:$0xff]
        %v823 = vld [vmem:[%s4 + $0x388] sm:$0xff]
        %v824 = vld [vmem:[%s4 + $0x390] sm:$0xff]
        %v825 = vld [vmem:[%s4 + $0x398] sm:$0xff]
        %v826 = vld [vmem:[%s4 + $0x3a0] sm:$0xff]
        %v827 = vld [vmem:[%s4 + $0x3a8] sm:$0xff]
        %v828 = vld [vmem:[%s4 + $0x3b0] sm:$0xff]
        %v829 = vld [vmem:[%s4 + $0x3b8] sm:$0xff]
        %v830 = vld [vmem:[%s4 + $0x3c0] sm:$0xff]
        %v831 = vld [vmem:[%s4 + $0x3c8] sm:$0xff]
        %v832 = vld [vmem:[%s4 + $0x3d0] sm:$0xff]
        %v833 = vld [vmem:[%s4 + $0x3d8] sm:$0xff]
        %v834 = vld [vmem:[%s4 + $0x3e0] sm:$0xff]
        %v835 = vld [vmem:[%s4 + $0x3e8] sm:$0xff]
        %v836 = vld [vmem:[%s4 + $0x3f0] sm:$0xff]
        %v837 = vld [vmem:[%s4 + $0x3f8] sm:$0xff]
        %v838 = vld [vmem:[%s4 + $0x400] sm:$0xff]
        %v839 = vld [vmem:[%s4 + $0x408] sm:$0xff]
        %v840 = vld [vmem:[%s4 + $0x410] sm:$0xff]
        %v841 = vld [vmem:[%s4 + $0x418] sm:$0xff]
        %v842 = vld [vmem:[%s4 + $0x420] sm:$0xff]
        %v843 = vld [vmem:[%s4 + $0x428] sm:$0xff]
        %v844 = vld [vmem:[%s4 + $0x430] sm:$0xff]
        %v845 = vld [vmem:[%s4 + $0x438] sm:$0xff]
        %v846 = vld [vmem:[%s4 + $0x440] sm:$0xff]
        %v847 = vld [vmem:[%s4 + $0x448] sm:$0xff]
        %v848 = vld [vmem:[%s4 + $0x450] sm:$0xff]
        %v849 = vld [vmem:[%s4 + $0x458] sm:$0xff]
        %v850 = vld [vmem:[%s4 + $0x460] sm:$0xff]
        %v851 = vld [vmem:[%s4 + $0x468] sm:$0xff]
        %v852 = vld [vmem:[%s4 + $0x470] sm:$0xff]
        %v853 = vld [vmem:[%s4 + $0x478] sm:$0xff]
        %v854 = vld [vmem:[%s4 + $0x480] sm:$0xff]
        %v855 = vld [vmem:[%s4 + $0x488] sm:$0xff]
        %v856 = vld [vmem:[%s4 + $0x490] sm:$0xff]
        %v857 = vld [vmem:[%s4 + $0x498] sm:$0xff]
        %v858 = vld [vmem:[%s4 + $0x4a0] sm:$0xff]
        %v859 = vld [vmem:[%s4 + $0x4a8] sm:$0xff]
        %v860 = vld [vmem:[%s4 + $0x4b0] sm:$0xff]
        %v861 = vld [vmem:[%s4 + $0x4b8] sm:$0xff]
        %v862 = vld [vmem:[%s4 + $0x4c0] sm:$0xff]
        %v863 = vld [vmem:[%s4 + $0x4c8] sm:$0xff]
        %v864 = vld [vmem:[%s4 + $0x4d0] sm:$0xff]
        %v865 = vld [vmem:[%s4 + $0x4d8] sm:$0xff]
        %v866 = vld [vmem:[%s4 + $0x4e0] sm:$0xff]
        %v867 = vld [vmem:[%s4 + $0x4e8] sm:$0xff]
        %v868 = vld [vmem:[%s4 + $0x4f0] sm:$0xff]
        %v869 = vld [vmem:[%s4 + $0x4f8] sm:$0xff]
        %v870 = vld [vmem:[%s4 + $0x500] sm:$0xff]
        %v871 = vld [vmem:[%s4 + $0x508] sm:$0xff]
        %v872 = vld [vmem:[%s4 + $0x510] sm:$0xff]
        %v873 = vld [vmem:[%s4 + $0x518] sm:$0xff]
        %v874 = vld [vmem:[%s4 + $0x520] sm:$0xff]
        %v875 = vld [vmem:[%s4 + $0x528] sm:$0xff]
        %v876 = vld [vmem:[%s4 + $0x530] sm:$0xff]
        %v877 = vld [vmem:[%s4 + $0x538] sm:$0xff]
        %v878 = vld [vmem:[%s4 + $0x540] sm:$0xff]
        %v879 = vld [vmem:[%s4 + $0x548] sm:$0xff]
        %v880 = vld [vmem:[%s4 + $0x550] sm:$0xff]
        %v881 = vld [vmem:[%s4 + $0x558] sm:$0xff]
        %v882 = vld [vmem:[%s4 + $0x560] sm:$0xff]
        %v883 = vld [vmem:[%s4 + $0x568] sm:$0xff]
        %v884 = vld [vmem:[%s4 + $0x570] sm:$0xff]
        %v885 = vld [vmem:[%s4 + $0x578] sm:$0xff]
        %v886 = vld [vmem:[%s4 + $0x580] sm:$0xff]
        %v887 = vld [vmem:[%s4 + $0x588] sm:$0xff]
        %v888 = vld [vmem:[%s4 + $0x590] sm:$0xff]
        %v889 = vld [vmem:[%s4 + $0x598] sm:$0xff]
        %v890 = vld [vmem:[%s4 + $0x5a0] sm:$0xff]
        %v891 = vld [vmem:[%s4 + $0x5a8] sm:$0xff]
        %v892 = vld [vmem:[%s4 + $0x5b0] sm:$0xff]
        %v893 = vld [vmem:[%s4 + $0x5b8] sm:$0xff]
        %v894 = vld [vmem:[%s4 + $0x5c0] sm:$0xff]
        %v895 = vld [vmem:[%s4 + $0x5c8] sm:$0xff]
        %v896 = vld [vmem:[%s4 + $0x5d0] sm:$0xff]
        %v897 = vld [vmem:[%s4 + $0x5d8] sm:$0xff]
        %v898 = vld [vmem:[%s4 + $0x5e0] sm:$0xff]
        %v899 = vld [vmem:[%s4 + $0x5e8] sm:$0xff]
        %v900 = vld [vmem:[%s4 + $0x5f0] sm:$0xff]
        %v901 = vld [vmem:[%s4 + $0x5f8] sm:$0xff]
        %v902 = vld [vmem:[%s4 + $0x600] sm:$0xff]
        %v903 = vld [vmem:[%s4 + $0x608] sm:$0xff]
        %v904 = vld [vmem:[%s4 + $0x610] sm:$0xff]
        %v905 = vld [vmem:[%s4 + $0x618] sm:$0xff]
        %v906 = vld [vmem:[%s4 + $0x620] sm:$0xff]
        %v907 = vld [vmem:[%s4 + $0x628] sm:$0xff]
        %v908 = vld [vmem:[%s4 + $0x630] sm:$0xff]
        %v909 = vld [vmem:[%s4 + $0x638] sm:$0xff]
        %v910 = vld [vmem:[%s4 + $0x640] sm:$0xff]
        %v911 = vld [vmem:[%s4 + $0x648] sm:$0xff]
        %v912 = vld [vmem:[%s4 + $0x650] sm:$0xff]
        %v913 = vld [vmem:[%s4 + $0x658] sm:$0xff]
        %v914 = vld [vmem:[%s4 + $0x660] sm:$0xff]
        %v915 = vld [vmem:[%s4 + $0x668] sm:$0xff]
        %v916 = vld [vmem:[%s4 + $0x670] sm:$0xff]
        %v917 = vld [vmem:[%s4 + $0x678] sm:$0xff]
        %v918 = vld [vmem:[%s4 + $0x680] sm:$0xff]
        %v919 = vld [vmem:[%s4 + $0x688] sm:$0xff]
        %v920 = vld [vmem:[%s4 + $0x690] sm:$0xff]
        %v921 = vld [vmem:[%s4 + $0x698] sm:$0xff]
        %v922 = vld [vmem:[%s4 + $0x6a0] sm:$0xff]
        %v923 = vld [vmem:[%s4 + $0x6a8] sm:$0xff]
        %v924 = vld [vmem:[%s4 + $0x6b0] sm:$0xff]
        %v925 = vld [vmem:[%s4 + $0x6b8] sm:$0xff]
        %v926 = vld [vmem:[%s4 + $0x6c0] sm:$0xff]
        %v927 = vld [vmem:[%s4 + $0x6c8] sm:$0xff]
        %v928 = vld [vmem:[%s4 + $0x6d0] sm:$0xff]
        %v929 = vld [vmem:[%s4 + $0x6d8] sm:$0xff]
        %v930 = vld [vmem:[%s4 + $0x6e0] sm:$0xff]
        %v931 = vld [vmem:[%s4 + $0x6e8] sm:$0xff]
        %v932 = vld [vmem:[%s4 + $0x6f0] sm:$0xff]
        %v933 = vld [vmem:[%s4 + $0x6f8] sm:$0xff]
        %v934 = vld [vmem:[%s4 + $0x700] sm:$0xff]
        %v935 = vld [vmem:[%s4 + $0x708] sm:$0xff]
        %v936 = vld [vmem:[%s4 + $0x710] sm:$0xff]
        %v937 = vld [vmem:[%s4 + $0x718] sm:$0xff]
        %v938 = vld [vmem:[%s4 + $0x720] sm:$0xff]
        %v939 = vld [vmem:[%s4 + $0x728] sm:$0xff]
        %v940 = vld [vmem:[%s4 + $0x730] sm:$0xff]
        %v941 = vld [vmem:[%s4 + $0x738] sm:$0xff]
        %v942 = vld [vmem:[%s4 + $0x740] sm:$0xff]
        %v943 = vld [vmem:[%s4 + $0x748] sm:$0xff]
        %v944 = vld [vmem:[%s4 + $0x750] sm:$0xff]
        %v945 = vld [vmem:[%s4 + $0x758] sm:$0xff]
        %v946 = vld [vmem:[%s4 + $0x760] sm:$0xff]
        %v947 = vld [vmem:[%s4 + $0x768] sm:$0xff]
        %v948 = vld [vmem:[%s4 + $0x770] sm:$0xff]
        %v949 = vld [vmem:[%s4 + $0x778] sm:$0xff]
        %v950 = vld [vmem:[%s4 + $0x780] sm:$0xff]
        %v951 = vld [vmem:[%s4 + $0x788] sm:$0xff]
        %v952 = vld [vmem:[%s4 + $0x790] sm:$0xff]
        %v953 = vld [vmem:[%s4 + $0x798] sm:$0xff]
        %v954 = vld [vmem:[%s4 + $0x7a0] sm:$0xff]
        %v955 = vld [vmem:[%s4 + $0x7a8] sm:$0xff]
        %v956 = vld [vmem:[%s4 + $0x7b0] sm:$0xff]
        %v957 = vld [vmem:[%s4 + $0x7b8] sm:$0xff]
        %v958 = vld [vmem:[%s4 + $0x7c0] sm:$0xff]
        %v959 = vld [vmem:[%s4 + $0x7c8] sm:$0xff]
        %v960 = vld [vmem:[%s4 + $0x7d0] sm:$0xff]
        %v961 = vld [vmem:[%s4 + $0x7d8] sm:$0xff]
        %v962 = vld [vmem:[%s4 + $0x7e0] sm:$0xff]
        %v963 = vld [vmem:[%s4 + $0x7e8] sm:$0xff]
        %v964 = vld [vmem:[%s4 + $0x7f0] sm:$0xff]
        %v965 = vld [vmem:[%s4 + $0x7f8] sm:$0xff]
        %v966 = vld [vmem:[%s5] sm:$0xf]
        %v968 = vperm.slane %v966, 0
        %v969 = vperm.slane %v966, 1
        %v970 = vperm.slane %v966, 2
        %v971 = vperm.slane %v966, 3
        %v1232 = vunpack.c.l.b16 %v710
        %v1233 = vunpack.c.h.b16 %v710
        %v1234 = vunpack.c.l.b16 %v711
        %v1235 = vunpack.c.h.b16 %v711
        %v1236 = vunpack.c.l.b16 %v712
        %v1237 = vunpack.c.h.b16 %v712
        %v1238 = vunpack.c.l.b16 %v713
        %v1239 = vunpack.c.h.b16 %v713
        %v1240 = vunpack.c.l.b16 %v714
        %v1241 = vunpack.c.h.b16 %v714
        %v1242 = vunpack.c.l.b16 %v715
        %v1243 = vunpack.c.h.b16 %v715
        %v1244 = vunpack.c.l.b16 %v716
        %v1245 = vunpack.c.h.b16 %v716
        %v1246 = vunpack.c.l.b16 %v717
        %v1247 = vunpack.c.h.b16 %v717
        %v1248 = vunpack.c.l.b16 %v718
        %v1249 = vunpack.c.h.b16 %v718
        %v1250 = vunpack.c.l.b16 %v719
        %v1251 = vunpack.c.h.b16 %v719
        %v1252 = vunpack.c.l.b16 %v720
        %v1253 = vunpack.c.h.b16 %v720
        %v1254 = vunpack.c.l.b16 %v721
        %v1255 = vunpack.c.h.b16 %v721
        %v1256 = vunpack.c.l.b16 %v722
        %v1257 = vunpack.c.h.b16 %v722
        %v1258 = vunpack.c.l.b16 %v723
        %v1259 = vunpack.c.h.b16 %v723
        %v1260 = vunpack.c.l.b16 %v724
        %v1261 = vunpack.c.h.b16 %v724
        %v1262 = vunpack.c.l.b16 %v725
        %v1263 = vunpack.c.h.b16 %v725
        %v1264 = vunpack.c.l.b16 %v726
        %v1265 = vunpack.c.h.b16 %v726
        %v1266 = vunpack.c.l.b16 %v727
        %v1267 = vunpack.c.h.b16 %v727
        %v1268 = vunpack.c.l.b16 %v728
        %v1269 = vunpack.c.h.b16 %v728
        %v1270 = vunpack.c.l.b16 %v729
        %v1271 = vunpack.c.h.b16 %v729
        %v1272 = vunpack.c.l.b16 %v730
        %v1273 = vunpack.c.h.b16 %v730
        %v1274 = vunpack.c.l.b16 %v731
        %v1275 = vunpack.c.h.b16 %v731
        %v1276 = vunpack.c.l.b16 %v732
        %v1277 = vunpack.c.h.b16 %v732
        %v1278 = vunpack.c.l.b16 %v733
        %v1279 = vunpack.c.h.b16 %v733
        %v1280 = vunpack.c.l.b16 %v734
        %v1281 = vunpack.c.h.b16 %v734
        %v1282 = vunpack.c.l.b16 %v735
        %v1283 = vunpack.c.h.b16 %v735
        %v1284 = vunpack.c.l.b16 %v736
        %v1285 = vunpack.c.h.b16 %v736
        %v1286 = vunpack.c.l.b16 %v737
        %v1287 = vunpack.c.h.b16 %v737
        %v1288 = vunpack.c.l.b16 %v738
        %v1289 = vunpack.c.h.b16 %v738
        %v1290 = vunpack.c.l.b16 %v739
        %v1291 = vunpack.c.h.b16 %v739
        %v1292 = vunpack.c.l.b16 %v740
        %v1293 = vunpack.c.h.b16 %v740
        %v1294 = vunpack.c.l.b16 %v741
        %v1295 = vunpack.c.h.b16 %v741
        %v1296 = vunpack.c.l.b16 %v742
        %v1297 = vunpack.c.h.b16 %v742
        %v1298 = vunpack.c.l.b16 %v743
        %v1299 = vunpack.c.h.b16 %v743
        %v1300 = vunpack.c.l.b16 %v744
        %v1301 = vunpack.c.h.b16 %v744
        %v1302 = vunpack.c.l.b16 %v745
        %v1303 = vunpack.c.h.b16 %v745
        %v1304 = vunpack.c.l.b16 %v746
        %v1305 = vunpack.c.h.b16 %v746
        %v1306 = vunpack.c.l.b16 %v747
        %v1307 = vunpack.c.h.b16 %v747
        %v1308 = vunpack.c.l.b16 %v748
        %v1309 = vunpack.c.h.b16 %v748
        %v1310 = vunpack.c.l.b16 %v749
        %v1311 = vunpack.c.h.b16 %v749
        %v1312 = vunpack.c.l.b16 %v750
        %v1313 = vunpack.c.h.b16 %v750
        %v1314 = vunpack.c.l.b16 %v751
        %v1315 = vunpack.c.h.b16 %v751
        %v1316 = vunpack.c.l.b16 %v752
        %v1317 = vunpack.c.h.b16 %v752
        %v1318 = vunpack.c.l.b16 %v753
        %v1319 = vunpack.c.h.b16 %v753
        %v1320 = vunpack.c.l.b16 %v754
        %v1321 = vunpack.c.h.b16 %v754
        %v1322 = vunpack.c.l.b16 %v755
        %v1323 = vunpack.c.h.b16 %v755
        %v1324 = vunpack.c.l.b16 %v756
        %v1325 = vunpack.c.h.b16 %v756
        %v1326 = vunpack.c.l.b16 %v757
        %v1327 = vunpack.c.h.b16 %v757
        %v1328 = vunpack.c.l.b16 %v758
        %v1329 = vunpack.c.h.b16 %v758
        %v1330 = vunpack.c.l.b16 %v759
        %v1331 = vunpack.c.h.b16 %v759
        %v1332 = vunpack.c.l.b16 %v760
        %v1333 = vunpack.c.h.b16 %v760
        %v1334 = vunpack.c.l.b16 %v761
        %v1335 = vunpack.c.h.b16 %v761
        %v1336 = vunpack.c.l.b16 %v762
        %v1337 = vunpack.c.h.b16 %v762
        %v1338 = vunpack.c.l.b16 %v763
        %v1339 = vunpack.c.h.b16 %v763
        %v1340 = vunpack.c.l.b16 %v764
        %v1341 = vunpack.c.h.b16 %v764
        %v1342 = vunpack.c.l.b16 %v765
        %v1343 = vunpack.c.h.b16 %v765
        %v1344 = vunpack.c.l.b16 %v766
        %v1345 = vunpack.c.h.b16 %v766
        %v1346 = vunpack.c.l.b16 %v767
        %v1347 = vunpack.c.h.b16 %v767
        %v1348 = vunpack.c.l.b16 %v768
        %v1349 = vunpack.c.h.b16 %v768
        %v1350 = vunpack.c.l.b16 %v769
        %v1351 = vunpack.c.h.b16 %v769
        %v1352 = vunpack.c.l.b16 %v770
        %v1353 = vunpack.c.h.b16 %v770
        %v1354 = vunpack.c.l.b16 %v771
        %v1355 = vunpack.c.h.b16 %v771
        %v1356 = vunpack.c.l.b16 %v772
        %v1357 = vunpack.c.h.b16 %v772
        %v1358 = vunpack.c.l.b16 %v773
        %v1359 = vunpack.c.h.b16 %v773
        %v1360 = vunpack.c.l.b16 %v774
        %v1361 = vunpack.c.h.b16 %v774
        %v1362 = vunpack.c.l.b16 %v775
        %v1363 = vunpack.c.h.b16 %v775
        %v1364 = vunpack.c.l.b16 %v776
        %v1365 = vunpack.c.h.b16 %v776
        %v1366 = vunpack.c.l.b16 %v777
        %v1367 = vunpack.c.h.b16 %v777
        %v1368 = vunpack.c.l.b16 %v778
        %v1369 = vunpack.c.h.b16 %v778
        %v1370 = vunpack.c.l.b16 %v779
        %v1371 = vunpack.c.h.b16 %v779
        %v1372 = vunpack.c.l.b16 %v780
        %v1373 = vunpack.c.h.b16 %v780
        %v1374 = vunpack.c.l.b16 %v781
        %v1375 = vunpack.c.h.b16 %v781
        %v1376 = vunpack.c.l.b16 %v782
        %v1377 = vunpack.c.h.b16 %v782
        %v1378 = vunpack.c.l.b16 %v783
        %v1379 = vunpack.c.h.b16 %v783
        %v1380 = vunpack.c.l.b16 %v784
        %v1381 = vunpack.c.h.b16 %v784
        %v1382 = vunpack.c.l.b16 %v785
        %v1383 = vunpack.c.h.b16 %v785
        %v1384 = vunpack.c.l.b16 %v786
        %v1385 = vunpack.c.h.b16 %v786
        %v1386 = vunpack.c.l.b16 %v787
        %v1387 = vunpack.c.h.b16 %v787
        %v1388 = vunpack.c.l.b16 %v788
        %v1389 = vunpack.c.h.b16 %v788
        %v1390 = vunpack.c.l.b16 %v789
        %v1391 = vunpack.c.h.b16 %v789
        %v1392 = vunpack.c.l.b16 %v790
        %v1393 = vunpack.c.h.b16 %v790
        %v1394 = vunpack.c.l.b16 %v791
        %v1395 = vunpack.c.h.b16 %v791
        %v1396 = vunpack.c.l.b16 %v792
        %v1397 = vunpack.c.h.b16 %v792
        %v1398 = vunpack.c.l.b16 %v793
        %v1399 = vunpack.c.h.b16 %v793
        %v1400 = vunpack.c.l.b16 %v794
        %v1401 = vunpack.c.h.b16 %v794
        %v1402 = vunpack.c.l.b16 %v795
        %v1403 = vunpack.c.h.b16 %v795
        %v1404 = vunpack.c.l.b16 %v796
        %v1405 = vunpack.c.h.b16 %v796
        %v1406 = vunpack.c.l.b16 %v797
        %v1407 = vunpack.c.h.b16 %v797
        %v1408 = vunpack.c.l.b16 %v798
        %v1409 = vunpack.c.h.b16 %v798
        %v1410 = vunpack.c.l.b16 %v799
        %v1411 = vunpack.c.h.b16 %v799
        %v1412 = vunpack.c.l.b16 %v800
        %v1413 = vunpack.c.h.b16 %v800
        %v1414 = vunpack.c.l.b16 %v801
        %v1415 = vunpack.c.h.b16 %v801
        %v1416 = vunpack.c.l.b16 %v802
        %v1417 = vunpack.c.h.b16 %v802
        %v1418 = vunpack.c.l.b16 %v803
        %v1419 = vunpack.c.h.b16 %v803
        %v1420 = vunpack.c.l.b16 %v804
        %v1421 = vunpack.c.h.b16 %v804
        %v1422 = vunpack.c.l.b16 %v805
        %v1423 = vunpack.c.h.b16 %v805
        %v1424 = vunpack.c.l.b16 %v806
        %v1425 = vunpack.c.h.b16 %v806
        %v1426 = vunpack.c.l.b16 %v807
        %v1427 = vunpack.c.h.b16 %v807
        %v1428 = vunpack.c.l.b16 %v808
        %v1429 = vunpack.c.h.b16 %v808
        %v1430 = vunpack.c.l.b16 %v809
        %v1431 = vunpack.c.h.b16 %v809
        %v1432 = vunpack.c.l.b16 %v810
        %v1433 = vunpack.c.h.b16 %v810
        %v1434 = vunpack.c.l.b16 %v811
        %v1435 = vunpack.c.h.b16 %v811
        %v1436 = vunpack.c.l.b16 %v812
        %v1437 = vunpack.c.h.b16 %v812
        %v1438 = vunpack.c.l.b16 %v813
        %v1439 = vunpack.c.h.b16 %v813
        %v1440 = vunpack.c.l.b16 %v814
        %v1441 = vunpack.c.h.b16 %v814
        %v1442 = vunpack.c.l.b16 %v815
        %v1443 = vunpack.c.h.b16 %v815
        %v1444 = vunpack.c.l.b16 %v816
        %v1445 = vunpack.c.h.b16 %v816
        %v1446 = vunpack.c.l.b16 %v817
        %v1447 = vunpack.c.h.b16 %v817
        %v1448 = vunpack.c.l.b16 %v818
        %v1449 = vunpack.c.h.b16 %v818
        %v1450 = vunpack.c.l.b16 %v819
        %v1451 = vunpack.c.h.b16 %v819
        %v1452 = vunpack.c.l.b16 %v820
        %v1453 = vunpack.c.h.b16 %v820
        %v1454 = vunpack.c.l.b16 %v821
        %v1455 = vunpack.c.h.b16 %v821
        %v1456 = vunpack.c.l.b16 %v822
        %v1457 = vunpack.c.h.b16 %v822
        %v1458 = vunpack.c.l.b16 %v823
        %v1459 = vunpack.c.h.b16 %v823
        %v1460 = vunpack.c.l.b16 %v824
        %v1461 = vunpack.c.h.b16 %v824
        %v1462 = vunpack.c.l.b16 %v825
        %v1463 = vunpack.c.h.b16 %v825
        %v1464 = vunpack.c.l.b16 %v826
        %v1465 = vunpack.c.h.b16 %v826
        %v1466 = vunpack.c.l.b16 %v827
        %v1467 = vunpack.c.h.b16 %v827
        %v1468 = vunpack.c.l.b16 %v828
        %v1469 = vunpack.c.h.b16 %v828
        %v1470 = vunpack.c.l.b16 %v829
        %v1471 = vunpack.c.h.b16 %v829
        %v1472 = vunpack.c.l.b16 %v830
        %v1473 = vunpack.c.h.b16 %v830
        %v1474 = vunpack.c.l.b16 %v831
        %v1475 = vunpack.c.h.b16 %v831
        %v1476 = vunpack.c.l.b16 %v832
        %v1477 = vunpack.c.h.b16 %v832
        %v1478 = vunpack.c.l.b16 %v833
        %v1479 = vunpack.c.h.b16 %v833
        %v1480 = vunpack.c.l.b16 %v834
        %v1481 = vunpack.c.h.b16 %v834
        %v1482 = vunpack.c.l.b16 %v835
        %v1483 = vunpack.c.h.b16 %v835
        %v1484 = vunpack.c.l.b16 %v836
        %v1485 = vunpack.c.h.b16 %v836
        %v1486 = vunpack.c.l.b16 %v837
        %v1487 = vunpack.c.h.b16 %v837
        %v1488 = vunpack.c.l.b16 %v838
        %v1489 = vunpack.c.h.b16 %v838
        %v1490 = vunpack.c.l.b16 %v839
        %v1491 = vunpack.c.h.b16 %v839
        %v1492 = vunpack.c.l.b16 %v840
        %v1493 = vunpack.c.h.b16 %v840
        %v1494 = vunpack.c.l.b16 %v841
        %v1495 = vunpack.c.h.b16 %v841
        %v1496 = vunpack.c.l.b16 %v842
        %v1497 = vunpack.c.h.b16 %v842
        %v1498 = vunpack.c.l.b16 %v843
        %v1499 = vunpack.c.h.b16 %v843
        %v1500 = vunpack.c.l.b16 %v844
        %v1501 = vunpack.c.h.b16 %v844
        %v1502 = vunpack.c.l.b16 %v845
        %v1503 = vunpack.c.h.b16 %v845
        %v1504 = vunpack.c.l.b16 %v846
        %v1505 = vunpack.c.h.b16 %v846
        %v1506 = vunpack.c.l.b16 %v847
        %v1507 = vunpack.c.h.b16 %v847
        %v1508 = vunpack.c.l.b16 %v848
        %v1509 = vunpack.c.h.b16 %v848
        %v1510 = vunpack.c.l.b16 %v849
        %v1511 = vunpack.c.h.b16 %v849
        %v1512 = vunpack.c.l.b16 %v850
        %v1513 = vunpack.c.h.b16 %v850
        %v1514 = vunpack.c.l.b16 %v851
        %v1515 = vunpack.c.h.b16 %v851
        %v1516 = vunpack.c.l.b16 %v852
        %v1517 = vunpack.c.h.b16 %v852
        %v1518 = vunpack.c.l.b16 %v853
        %v1519 = vunpack.c.h.b16 %v853
        %v1520 = vunpack.c.l.b16 %v854
        %v1521 = vunpack.c.h.b16 %v854
        %v1522 = vunpack.c.l.b16 %v855
        %v1523 = vunpack.c.h.b16 %v855
        %v1524 = vunpack.c.l.b16 %v856
        %v1525 = vunpack.c.h.b16 %v856
        %v1526 = vunpack.c.l.b16 %v857
        %v1527 = vunpack.c.h.b16 %v857
        %v1528 = vunpack.c.l.b16 %v858
        %v1529 = vunpack.c.h.b16 %v858
        %v1530 = vunpack.c.l.b16 %v859
        %v1531 = vunpack.c.h.b16 %v859
        %v1532 = vunpack.c.l.b16 %v860
        %v1533 = vunpack.c.h.b16 %v860
        %v1534 = vunpack.c.l.b16 %v861
        %v1535 = vunpack.c.h.b16 %v861
        %v1536 = vunpack.c.l.b16 %v862
        %v1537 = vunpack.c.h.b16 %v862
        %v1538 = vunpack.c.l.b16 %v863
        %v1539 = vunpack.c.h.b16 %v863
        %v1540 = vunpack.c.l.b16 %v864
        %v1541 = vunpack.c.h.b16 %v864
        %v1542 = vunpack.c.l.b16 %v865
        %v1543 = vunpack.c.h.b16 %v865
        %v1544 = vunpack.c.l.b16 %v866
        %v1545 = vunpack.c.h.b16 %v866
        %v1546 = vunpack.c.l.b16 %v867
        %v1547 = vunpack.c.h.b16 %v867
        %v1548 = vunpack.c.l.b16 %v868
        %v1549 = vunpack.c.h.b16 %v868
        %v1550 = vunpack.c.l.b16 %v869
        %v1551 = vunpack.c.h.b16 %v869
        %v1552 = vunpack.c.l.b16 %v870
        %v1553 = vunpack.c.h.b16 %v870
        %v1554 = vunpack.c.l.b16 %v871
        %v1555 = vunpack.c.h.b16 %v871
        %v1556 = vunpack.c.l.b16 %v872
        %v1557 = vunpack.c.h.b16 %v872
        %v1558 = vunpack.c.l.b16 %v873
        %v1559 = vunpack.c.h.b16 %v873
        %v1560 = vunpack.c.l.b16 %v874
        %v1561 = vunpack.c.h.b16 %v874
        %v1562 = vunpack.c.l.b16 %v875
        %v1563 = vunpack.c.h.b16 %v875
        %v1564 = vunpack.c.l.b16 %v876
        %v1565 = vunpack.c.h.b16 %v876
        %v1566 = vunpack.c.l.b16 %v877
        %v1567 = vunpack.c.h.b16 %v877
        %v1568 = vunpack.c.l.b16 %v878
        %v1569 = vunpack.c.h.b16 %v878
        %v1570 = vunpack.c.l.b16 %v879
        %v1571 = vunpack.c.h.b16 %v879
        %v1572 = vunpack.c.l.b16 %v880
        %v1573 = vunpack.c.h.b16 %v880
        %v1574 = vunpack.c.l.b16 %v881
        %v1575 = vunpack.c.h.b16 %v881
        %v1576 = vunpack.c.l.b16 %v882
        %v1577 = vunpack.c.h.b16 %v882
        %v1578 = vunpack.c.l.b16 %v883
        %v1579 = vunpack.c.h.b16 %v883
        %v1580 = vunpack.c.l.b16 %v884
        %v1581 = vunpack.c.h.b16 %v884
        %v1582 = vunpack.c.l.b16 %v885
        %v1583 = vunpack.c.h.b16 %v885
        %v1584 = vunpack.c.l.b16 %v886
        %v1585 = vunpack.c.h.b16 %v886
        %v1586 = vunpack.c.l.b16 %v887
        %v1587 = vunpack.c.h.b16 %v887
        %v1588 = vunpack.c.l.b16 %v888
        %v1589 = vunpack.c.h.b16 %v888
        %v1590 = vunpack.c.l.b16 %v889
        %v1591 = vunpack.c.h.b16 %v889
        %v1592 = vunpack.c.l.b16 %v890
        %v1593 = vunpack.c.h.b16 %v890
        %v1594 = vunpack.c.l.b16 %v891
        %v1595 = vunpack.c.h.b16 %v891
        %v1596 = vunpack.c.l.b16 %v892
        %v1597 = vunpack.c.h.b16 %v892
        %v1598 = vunpack.c.l.b16 %v893
        %v1599 = vunpack.c.h.b16 %v893
        %v1600 = vunpack.c.l.b16 %v894
        %v1601 = vunpack.c.h.b16 %v894
        %v1602 = vunpack.c.l.b16 %v895
        %v1603 = vunpack.c.h.b16 %v895
        %v1604 = vunpack.c.l.b16 %v896
        %v1605 = vunpack.c.h.b16 %v896
        %v1606 = vunpack.c.l.b16 %v897
        %v1607 = vunpack.c.h.b16 %v897
        %v1608 = vunpack.c.l.b16 %v898
        %v1609 = vunpack.c.h.b16 %v898
        %v1610 = vunpack.c.l.b16 %v899
        %v1611 = vunpack.c.h.b16 %v899
        %v1612 = vunpack.c.l.b16 %v900
        %v1613 = vunpack.c.h.b16 %v900
        %v1614 = vunpack.c.l.b16 %v901
        %v1615 = vunpack.c.h.b16 %v901
        %v1616 = vunpack.c.l.b16 %v902
        %v1617 = vunpack.c.h.b16 %v902
        %v1618 = vunpack.c.l.b16 %v903
        %v1619 = vunpack.c.h.b16 %v903
        %v1620 = vunpack.c.l.b16 %v904
        %v1621 = vunpack.c.h.b16 %v904
        %v1622 = vunpack.c.l.b16 %v905
        %v1623 = vunpack.c.h.b16 %v905
        %v1624 = vunpack.c.l.b16 %v906
        %v1625 = vunpack.c.h.b16 %v906
        %v1626 = vunpack.c.l.b16 %v907
        %v1627 = vunpack.c.h.b16 %v907
        %v1628 = vunpack.c.l.b16 %v908
        %v1629 = vunpack.c.h.b16 %v908
        %v1630 = vunpack.c.l.b16 %v909
        %v1631 = vunpack.c.h.b16 %v909
        %v1632 = vunpack.c.l.b16 %v910
        %v1633 = vunpack.c.h.b16 %v910
        %v1634 = vunpack.c.l.b16 %v911
        %v1635 = vunpack.c.h.b16 %v911
        %v1636 = vunpack.c.l.b16 %v912
        %v1637 = vunpack.c.h.b16 %v912
        %v1638 = vunpack.c.l.b16 %v913
        %v1639 = vunpack.c.h.b16 %v913
        %v1640 = vunpack.c.l.b16 %v914
        %v1641 = vunpack.c.h.b16 %v914
        %v1642 = vunpack.c.l.b16 %v915
        %v1643 = vunpack.c.h.b16 %v915
        %v1644 = vunpack.c.l.b16 %v916
        %v1645 = vunpack.c.h.b16 %v916
        %v1646 = vunpack.c.l.b16 %v917
        %v1647 = vunpack.c.h.b16 %v917
        %v1648 = vunpack.c.l.b16 %v918
        %v1649 = vunpack.c.h.b16 %v918
        %v1650 = vunpack.c.l.b16 %v919
        %v1651 = vunpack.c.h.b16 %v919
        %v1652 = vunpack.c.l.b16 %v920
        %v1653 = vunpack.c.h.b16 %v920
        %v1654 = vunpack.c.l.b16 %v921
        %v1655 = vunpack.c.h.b16 %v921
        %v1656 = vunpack.c.l.b16 %v922
        %v1657 = vunpack.c.h.b16 %v922
        %v1658 = vunpack.c.l.b16 %v923
        %v1659 = vunpack.c.h.b16 %v923
        %v1660 = vunpack.c.l.b16 %v924
        %v1661 = vunpack.c.h.b16 %v924
        %v1662 = vunpack.c.l.b16 %v925
        %v1663 = vunpack.c.h.b16 %v925
        %v1664 = vunpack.c.l.b16 %v926
        %v1665 = vunpack.c.h.b16 %v926
        %v1666 = vunpack.c.l.b16 %v927
        %v1667 = vunpack.c.h.b16 %v927
        %v1668 = vunpack.c.l.b16 %v928
        %v1669 = vunpack.c.h.b16 %v928
        %v1670 = vunpack.c.l.b16 %v929
        %v1671 = vunpack.c.h.b16 %v929
        %v1672 = vunpack.c.l.b16 %v930
        %v1673 = vunpack.c.h.b16 %v930
        %v1674 = vunpack.c.l.b16 %v931
        %v1675 = vunpack.c.h.b16 %v931
        %v1676 = vunpack.c.l.b16 %v932
        %v1677 = vunpack.c.h.b16 %v932
        %v1678 = vunpack.c.l.b16 %v933
        %v1679 = vunpack.c.h.b16 %v933
        %v1680 = vunpack.c.l.b16 %v934
        %v1681 = vunpack.c.h.b16 %v934
        %v1682 = vunpack.c.l.b16 %v935
        %v1683 = vunpack.c.h.b16 %v935
        %v1684 = vunpack.c.l.b16 %v936
        %v1685 = vunpack.c.h.b16 %v936
        %v1686 = vunpack.c.l.b16 %v937
        %v1687 = vunpack.c.h.b16 %v937
        %v1688 = vunpack.c.l.b16 %v938
        %v1689 = vunpack.c.h.b16 %v938
        %v1690 = vunpack.c.l.b16 %v939
        %v1691 = vunpack.c.h.b16 %v939
        %v1692 = vunpack.c.l.b16 %v940
        %v1693 = vunpack.c.h.b16 %v940
        %v1694 = vunpack.c.l.b16 %v941
        %v1695 = vunpack.c.h.b16 %v941
        %v1696 = vunpack.c.l.b16 %v942
        %v1697 = vunpack.c.h.b16 %v942
        %v1698 = vunpack.c.l.b16 %v943
        %v1699 = vunpack.c.h.b16 %v943
        %v1700 = vunpack.c.l.b16 %v944
        %v1701 = vunpack.c.h.b16 %v944
        %v1702 = vunpack.c.l.b16 %v945
        %v1703 = vunpack.c.h.b16 %v945
        %v1704 = vunpack.c.l.b16 %v946
        %v1705 = vunpack.c.h.b16 %v946
        %v1706 = vunpack.c.l.b16 %v947
        %v1707 = vunpack.c.h.b16 %v947
        %v1708 = vunpack.c.l.b16 %v948
        %v1709 = vunpack.c.h.b16 %v948
        %v1710 = vunpack.c.l.b16 %v949
        %v1711 = vunpack.c.h.b16 %v949
        %v1712 = vunpack.c.l.b16 %v950
        %v1713 = vunpack.c.h.b16 %v950
        %v1714 = vunpack.c.l.b16 %v951
        %v1715 = vunpack.c.h.b16 %v951
        %v1716 = vunpack.c.l.b16 %v952
        %v1717 = vunpack.c.h.b16 %v952
        %v1718 = vunpack.c.l.b16 %v953
        %v1719 = vunpack.c.h.b16 %v953
        %v1720 = vunpack.c.l.b16 %v954
        %v1721 = vunpack.c.h.b16 %v954
        %v1722 = vunpack.c.l.b16 %v955
        %v1723 = vunpack.c.h.b16 %v955
        %v1724 = vunpack.c.l.b16 %v956
        %v1725 = vunpack.c.h.b16 %v956
        %v1726 = vunpack.c.l.b16 %v957
        %v1727 = vunpack.c.h.b16 %v957
        %v1728 = vunpack.c.l.b16 %v958
        %v1729 = vunpack.c.h.b16 %v958
        %v1730 = vunpack.c.l.b16 %v959
        %v1731 = vunpack.c.h.b16 %v959
        %v1732 = vunpack.c.l.b16 %v960
        %v1733 = vunpack.c.h.b16 %v960
        %v1734 = vunpack.c.l.b16 %v961
        %v1735 = vunpack.c.h.b16 %v961
        %v1736 = vunpack.c.l.b16 %v962
        %v1737 = vunpack.c.h.b16 %v962
        %v1738 = vunpack.c.l.b16 %v963
        %v1739 = vunpack.c.h.b16 %v963
        %v1740 = vunpack.c.l.b16 %v964
        %v1741 = vunpack.c.h.b16 %v964
        %v1742 = vunpack.c.l.b16 %v965
        %v1743 = vunpack.c.h.b16 %v965
        %v1744 = vpack.c.b16 %v1236, %v1232
        %v1745 = vpack.c.b16 %v1237, %v1233
        %v1746 = vpack.c.b16 %v1238, %v1234
        %v1747 = vpack.c.b16 %v1239, %v1235
        %v1748 = vpack.c.b16 %v1244, %v1240
        %v1749 = vpack.c.b16 %v1245, %v1241
        %v1750 = vpack.c.b16 %v1246, %v1242
        %v1751 = vpack.c.b16 %v1247, %v1243
        %v1752 = vpack.c.b16 %v1252, %v1248
        %v1753 = vpack.c.b16 %v1253, %v1249
        %v1754 = vpack.c.b16 %v1254, %v1250
        %v1755 = vpack.c.b16 %v1255, %v1251
        %v1756 = vpack.c.b16 %v1260, %v1256
        %v1757 = vpack.c.b16 %v1261, %v1257
        %v1758 = vpack.c.b16 %v1262, %v1258
        %v1759 = vpack.c.b16 %v1263, %v1259
        %v1760 = vpack.c.b16 %v1268, %v1264
        %v1761 = vpack.c.b16 %v1269, %v1265
        %v1762 = vpack.c.b16 %v1270, %v1266
        %v1763 = vpack.c.b16 %v1271, %v1267
        %v1764 = vpack.c.b16 %v1276, %v1272
        %v1765 = vpack.c.b16 %v1277, %v1273
        %v1766 = vpack.c.b16 %v1278, %v1274
        %v1767 = vpack.c.b16 %v1279, %v1275
        %v1768 = vpack.c.b16 %v1284, %v1280
        %v1769 = vpack.c.b16 %v1285, %v1281
        %v1770 = vpack.c.b16 %v1286, %v1282
        %v1771 = vpack.c.b16 %v1287, %v1283
        %v1772 = vpack.c.b16 %v1292, %v1288
        %v1773 = vpack.c.b16 %v1293, %v1289
        %v1774 = vpack.c.b16 %v1294, %v1290
        %v1775 = vpack.c.b16 %v1295, %v1291
        %v1776 = vpack.c.b16 %v1300, %v1296
        %v1777 = vpack.c.b16 %v1301, %v1297
        %v1778 = vpack.c.b16 %v1302, %v1298
        %v1779 = vpack.c.b16 %v1303, %v1299
        %v1780 = vpack.c.b16 %v1308, %v1304
        %v1781 = vpack.c.b16 %v1309, %v1305
        %v1782 = vpack.c.b16 %v1310, %v1306
        %v1783 = vpack.c.b16 %v1311, %v1307
        %v1784 = vpack.c.b16 %v1316, %v1312
        %v1785 = vpack.c.b16 %v1317, %v1313
        %v1786 = vpack.c.b16 %v1318, %v1314
        %v1787 = vpack.c.b16 %v1319, %v1315
        %v1788 = vpack.c.b16 %v1324, %v1320
        %v1789 = vpack.c.b16 %v1325, %v1321
        %v1790 = vpack.c.b16 %v1326, %v1322
        %v1791 = vpack.c.b16 %v1327, %v1323
        %v1792 = vpack.c.b16 %v1332, %v1328
        %v1793 = vpack.c.b16 %v1333, %v1329
        %v1794 = vpack.c.b16 %v1334, %v1330
        %v1795 = vpack.c.b16 %v1335, %v1331
        %v1796 = vpack.c.b16 %v1340, %v1336
        %v1797 = vpack.c.b16 %v1341, %v1337
        %v1798 = vpack.c.b16 %v1342, %v1338
        %v1799 = vpack.c.b16 %v1343, %v1339
        %v1800 = vpack.c.b16 %v1348, %v1344
        %v1801 = vpack.c.b16 %v1349, %v1345
        %v1802 = vpack.c.b16 %v1350, %v1346
        %v1803 = vpack.c.b16 %v1351, %v1347
        %v1804 = vpack.c.b16 %v1356, %v1352
        %v1805 = vpack.c.b16 %v1357, %v1353
        %v1806 = vpack.c.b16 %v1358, %v1354
        %v1807 = vpack.c.b16 %v1359, %v1355
        %v1808 = vpack.c.b16 %v1364, %v1360
        %v1809 = vpack.c.b16 %v1365, %v1361
        %v1810 = vpack.c.b16 %v1366, %v1362
        %v1811 = vpack.c.b16 %v1367, %v1363
        %v1812 = vpack.c.b16 %v1372, %v1368
        %v1813 = vpack.c.b16 %v1373, %v1369
        %v1814 = vpack.c.b16 %v1374, %v1370
        %v1815 = vpack.c.b16 %v1375, %v1371
        %v1816 = vpack.c.b16 %v1380, %v1376
        %v1817 = vpack.c.b16 %v1381, %v1377
        %v1818 = vpack.c.b16 %v1382, %v1378
        %v1819 = vpack.c.b16 %v1383, %v1379
        %v1820 = vpack.c.b16 %v1388, %v1384
        %v1821 = vpack.c.b16 %v1389, %v1385
        %v1822 = vpack.c.b16 %v1390, %v1386
        %v1823 = vpack.c.b16 %v1391, %v1387
        %v1824 = vpack.c.b16 %v1396, %v1392
        %v1825 = vpack.c.b16 %v1397, %v1393
        %v1826 = vpack.c.b16 %v1398, %v1394
        %v1827 = vpack.c.b16 %v1399, %v1395
        %v1828 = vpack.c.b16 %v1404, %v1400
        %v1829 = vpack.c.b16 %v1405, %v1401
        %v1830 = vpack.c.b16 %v1406, %v1402
        %v1831 = vpack.c.b16 %v1407, %v1403
        %v1832 = vpack.c.b16 %v1412, %v1408
        %v1833 = vpack.c.b16 %v1413, %v1409
        %v1834 = vpack.c.b16 %v1414, %v1410
        %v1835 = vpack.c.b16 %v1415, %v1411
        %v1836 = vpack.c.b16 %v1420, %v1416
        %v1837 = vpack.c.b16 %v1421, %v1417
        %v1838 = vpack.c.b16 %v1422, %v1418
        %v1839 = vpack.c.b16 %v1423, %v1419
        %v1840 = vpack.c.b16 %v1428, %v1424
        %v1841 = vpack.c.b16 %v1429, %v1425
        %v1842 = vpack.c.b16 %v1430, %v1426
        %v1843 = vpack.c.b16 %v1431, %v1427
        %v1844 = vpack.c.b16 %v1436, %v1432
        %v1845 = vpack.c.b16 %v1437, %v1433
        %v1846 = vpack.c.b16 %v1438, %v1434
        %v1847 = vpack.c.b16 %v1439, %v1435
        %v1848 = vpack.c.b16 %v1444, %v1440
        %v1849 = vpack.c.b16 %v1445, %v1441
        %v1850 = vpack.c.b16 %v1446, %v1442
        %v1851 = vpack.c.b16 %v1447, %v1443
        %v1852 = vpack.c.b16 %v1452, %v1448
        %v1853 = vpack.c.b16 %v1453, %v1449
        %v1854 = vpack.c.b16 %v1454, %v1450
        %v1855 = vpack.c.b16 %v1455, %v1451
        %v1856 = vpack.c.b16 %v1460, %v1456
        %v1857 = vpack.c.b16 %v1461, %v1457
        %v1858 = vpack.c.b16 %v1462, %v1458
        %v1859 = vpack.c.b16 %v1463, %v1459
        %v1860 = vpack.c.b16 %v1468, %v1464
        %v1861 = vpack.c.b16 %v1469, %v1465
        %v1862 = vpack.c.b16 %v1470, %v1466
        %v1863 = vpack.c.b16 %v1471, %v1467
        %v1864 = vpack.c.b16 %v1476, %v1472
        %v1865 = vpack.c.b16 %v1477, %v1473
        %v1866 = vpack.c.b16 %v1478, %v1474
        %v1867 = vpack.c.b16 %v1479, %v1475
        %v1868 = vpack.c.b16 %v1484, %v1480
        %v1869 = vpack.c.b16 %v1485, %v1481
        %v1870 = vpack.c.b16 %v1486, %v1482
        %v1871 = vpack.c.b16 %v1487, %v1483
        %v1872 = vpack.c.b16 %v1492, %v1488
        %v1873 = vpack.c.b16 %v1493, %v1489
        %v1874 = vpack.c.b16 %v1494, %v1490
        %v1875 = vpack.c.b16 %v1495, %v1491
        %v1876 = vpack.c.b16 %v1500, %v1496
        %v1877 = vpack.c.b16 %v1501, %v1497
        %v1878 = vpack.c.b16 %v1502, %v1498
        %v1879 = vpack.c.b16 %v1503, %v1499
        %v1880 = vpack.c.b16 %v1508, %v1504
        %v1881 = vpack.c.b16 %v1509, %v1505
        %v1882 = vpack.c.b16 %v1510, %v1506
        %v1883 = vpack.c.b16 %v1511, %v1507
        %v1884 = vpack.c.b16 %v1516, %v1512
        %v1885 = vpack.c.b16 %v1517, %v1513
        %v1886 = vpack.c.b16 %v1518, %v1514
        %v1887 = vpack.c.b16 %v1519, %v1515
        %v1888 = vpack.c.b16 %v1524, %v1520
        %v1889 = vpack.c.b16 %v1525, %v1521
        %v1890 = vpack.c.b16 %v1526, %v1522
        %v1891 = vpack.c.b16 %v1527, %v1523
        %v1892 = vpack.c.b16 %v1532, %v1528
        %v1893 = vpack.c.b16 %v1533, %v1529
        %v1894 = vpack.c.b16 %v1534, %v1530
        %v1895 = vpack.c.b16 %v1535, %v1531
        %v1896 = vpack.c.b16 %v1540, %v1536
        %v1897 = vpack.c.b16 %v1541, %v1537
        %v1898 = vpack.c.b16 %v1542, %v1538
        %v1899 = vpack.c.b16 %v1543, %v1539
        %v1900 = vpack.c.b16 %v1548, %v1544
        %v1901 = vpack.c.b16 %v1549, %v1545
        %v1902 = vpack.c.b16 %v1550, %v1546
        %v1903 = vpack.c.b16 %v1551, %v1547
        %v1904 = vpack.c.b16 %v1556, %v1552
        %v1905 = vpack.c.b16 %v1557, %v1553
        %v1906 = vpack.c.b16 %v1558, %v1554
        %v1907 = vpack.c.b16 %v1559, %v1555
        %v1908 = vpack.c.b16 %v1564, %v1560
        %v1909 = vpack.c.b16 %v1565, %v1561
        %v1910 = vpack.c.b16 %v1566, %v1562
        %v1911 = vpack.c.b16 %v1567, %v1563
        %v1912 = vpack.c.b16 %v1572, %v1568
        %v1913 = vpack.c.b16 %v1573, %v1569
        %v1914 = vpack.c.b16 %v1574, %v1570
        %v1915 = vpack.c.b16 %v1575, %v1571
        %v1916 = vpack.c.b16 %v1580, %v1576
        %v1917 = vpack.c.b16 %v1581, %v1577
        %v1918 = vpack.c.b16 %v1582, %v1578
        %v1919 = vpack.c.b16 %v1583, %v1579
        %v1920 = vpack.c.b16 %v1588, %v1584
        %v1921 = vpack.c.b16 %v1589, %v1585
        %v1922 = vpack.c.b16 %v1590, %v1586
        %v1923 = vpack.c.b16 %v1591, %v1587
        %v1924 = vpack.c.b16 %v1596, %v1592
        %v1925 = vpack.c.b16 %v1597, %v1593
        %v1926 = vpack.c.b16 %v1598, %v1594
        %v1927 = vpack.c.b16 %v1599, %v1595
        %v1928 = vpack.c.b16 %v1604, %v1600
        %v1929 = vpack.c.b16 %v1605, %v1601
        %v1930 = vpack.c.b16 %v1606, %v1602
        %v1931 = vpack.c.b16 %v1607, %v1603
        %v1932 = vpack.c.b16 %v1612, %v1608
        %v1933 = vpack.c.b16 %v1613, %v1609
        %v1934 = vpack.c.b16 %v1614, %v1610
        %v1935 = vpack.c.b16 %v1615, %v1611
        %v1936 = vpack.c.b16 %v1620, %v1616
        %v1937 = vpack.c.b16 %v1621, %v1617
        %v1938 = vpack.c.b16 %v1622, %v1618
        %v1939 = vpack.c.b16 %v1623, %v1619
        %v1940 = vpack.c.b16 %v1628, %v1624
        %v1941 = vpack.c.b16 %v1629, %v1625
        %v1942 = vpack.c.b16 %v1630, %v1626
        %v1943 = vpack.c.b16 %v1631, %v1627
        %v1944 = vpack.c.b16 %v1636, %v1632
        %v1945 = vpack.c.b16 %v1637, %v1633
        %v1946 = vpack.c.b16 %v1638, %v1634
        %v1947 = vpack.c.b16 %v1639, %v1635
        %v1948 = vpack.c.b16 %v1644, %v1640
        %v1949 = vpack.c.b16 %v1645, %v1641
        %v1950 = vpack.c.b16 %v1646, %v1642
        %v1951 = vpack.c.b16 %v1647, %v1643
        %v1952 = vpack.c.b16 %v1652, %v1648
        %v1953 = vpack.c.b16 %v1653, %v1649
        %v1954 = vpack.c.b16 %v1654, %v1650
        %v1955 = vpack.c.b16 %v1655, %v1651
        %v1956 = vpack.c.b16 %v1660, %v1656
        %v1957 = vpack.c.b16 %v1661, %v1657
        %v1958 = vpack.c.b16 %v1662, %v1658
        %v1959 = vpack.c.b16 %v1663, %v1659
        %v1960 = vpack.c.b16 %v1668, %v1664
        %v1961 = vpack.c.b16 %v1669, %v1665
        %v1962 = vpack.c.b16 %v1670, %v1666
        %v1963 = vpack.c.b16 %v1671, %v1667
        %v1964 = vpack.c.b16 %v1676, %v1672
        %v1965 = vpack.c.b16 %v1677, %v1673
        %v1966 = vpack.c.b16 %v1678, %v1674
        %v1967 = vpack.c.b16 %v1679, %v1675
        %v1968 = vpack.c.b16 %v1684, %v1680
        %v1969 = vpack.c.b16 %v1685, %v1681
        %v1970 = vpack.c.b16 %v1686, %v1682
        %v1971 = vpack.c.b16 %v1687, %v1683
        %v1972 = vpack.c.b16 %v1692, %v1688
        %v1973 = vpack.c.b16 %v1693, %v1689
        %v1974 = vpack.c.b16 %v1694, %v1690
        %v1975 = vpack.c.b16 %v1695, %v1691
        %v1976 = vpack.c.b16 %v1700, %v1696
        %v1977 = vpack.c.b16 %v1701, %v1697
        %v1978 = vpack.c.b16 %v1702, %v1698
        %v1979 = vpack.c.b16 %v1703, %v1699
        %v1980 = vpack.c.b16 %v1708, %v1704
        %v1981 = vpack.c.b16 %v1709, %v1705
        %v1982 = vpack.c.b16 %v1710, %v1706
        %v1983 = vpack.c.b16 %v1711, %v1707
        %v1984 = vpack.c.b16 %v1716, %v1712
        %v1985 = vpack.c.b16 %v1717, %v1713
        %v1986 = vpack.c.b16 %v1718, %v1714
        %v1987 = vpack.c.b16 %v1719, %v1715
        %v1988 = vpack.c.b16 %v1724, %v1720
        %v1989 = vpack.c.b16 %v1725, %v1721
        %v1990 = vpack.c.b16 %v1726, %v1722
        %v1991 = vpack.c.b16 %v1727, %v1723
        %v1992 = vpack.c.b16 %v1732, %v1728
        %v1993 = vpack.c.b16 %v1733, %v1729
        %v1994 = vpack.c.b16 %v1734, %v1730
        %v1995 = vpack.c.b16 %v1735, %v1731
        %v1996 = vpack.c.b16 %v1740, %v1736
        %v1997 = vpack.c.b16 %v1741, %v1737
        %v1998 = vpack.c.b16 %v1742, %v1738
        %v1999 = vpack.c.b16 %v1743, %v1739
        %2256 = vmatpush.bf16.msra.mxu0 %v1772
        %2257 = vmatpush.bf16.msra.mxu0 %v1768
        %2258 = vmatpush.bf16.msra.mxu0 %v1764
        %2259 = vmatpush.bf16.msra.mxu0 %v1760
        %2260 = vmatpush.bf16.msra.mxu0 %v1756
        %2261 = vmatpush.bf16.msra.mxu0 %v1752
        %2262 = vmatpush.bf16.msra.mxu0 %v1748
        %2263 = vmatpush.bf16.msra.mxu0 %v1744
        %2264 = vmatmul.bf16.gmra.mxu0 %v702
        %v2265 = vpop.f32.mrf.mxu0
        %v2266 = vadd.f32 %v968, %v2265
        %v2267 = vpop.f32.mrf.mxu0
        %2268 = vdwg.mxu0
        %2269 = vmatpush.bf16.msra.mxu0 %v1804
        %2270 = vmatpush.bf16.msra.mxu0 %v1800
        %2271 = vmatpush.bf16.msra.mxu0 %v1796
        %2272 = vmatpush.bf16.msra.mxu0 %v1792
        %2273 = vmatpush.bf16.msra.mxu0 %v1788
        %2274 = vmatpush.bf16.msra.mxu0 %v1784
        %2275 = vmatpush.bf16.msra.mxu0 %v1780
        %2276 = vmatpush.bf16.msra.mxu0 %v1776
        %2277 = vmatmul.bf16.gmra.mxu0 %v703
        %v2278 = vpop.f32.mrf.mxu0
        %v2279 = vadd.f32 %v2266, %v2278
        %v2280 = vpop.f32.mrf.mxu0
        %2281 = vdwg.mxu0
        %2282 = vmatpush.bf16.msra.mxu0 %v1836
        %2283 = vmatpush.bf16.msra.mxu0 %v1832
        %2284 = vmatpush.bf16.msra.mxu0 %v1828
        %2285 = vmatpush.bf16.msra.mxu0 %v1824
        %2286 = vmatpush.bf16.msra.mxu0 %v1820
        %2287 = vmatpush.bf16.msra.mxu0 %v1816
        %2288 = vmatpush.bf16.msra.mxu0 %v1812
        %2289 = vmatpush.bf16.msra.mxu0 %v1808
        %2290 = vmatmul.bf16.gmra.mxu0 %v704
        %v2291 = vpop.f32.mrf.mxu0
        %v2292 = vadd.f32 %v2279, %v2291
        %v2293 = vpop.f32.mrf.mxu0
        %2294 = vdwg.mxu0
        %2295 = vmatpush.bf16.msra.mxu0 %v1868
        %2296 = vmatpush.bf16.msra.mxu0 %v1864
        %2297 = vmatpush.bf16.msra.mxu0 %v1860
        %2298 = vmatpush.bf16.msra.mxu0 %v1856
        %2299 = vmatpush.bf16.msra.mxu0 %v1852
        %2300 = vmatpush.bf16.msra.mxu0 %v1848
        %2301 = vmatpush.bf16.msra.mxu0 %v1844
        %2302 = vmatpush.bf16.msra.mxu0 %v1840
        %2303 = vmatmul.bf16.gmra.mxu0 %v705
        %v2304 = vpop.f32.mrf.mxu0
        %v2305 = vadd.f32 %v2292, %v2304
        %v2306 = vpop.f32.mrf.mxu0
        %2307 = vdwg.mxu0
        %2308 = vmatpush.bf16.msra.mxu0 %v1900
        %2309 = vmatpush.bf16.msra.mxu0 %v1896
        %2310 = vmatpush.bf16.msra.mxu0 %v1892
        %2311 = vmatpush.bf16.msra.mxu0 %v1888
        %2312 = vmatpush.bf16.msra.mxu0 %v1884
        %2313 = vmatpush.bf16.msra.mxu0 %v1880
        %2314 = vmatpush.bf16.msra.mxu0 %v1876
        %2315 = vmatpush.bf16.msra.mxu0 %v1872
        %2316 = vmatmul.bf16.gmra.mxu0 %v706
        %v2317 = vpop.f32.mrf.mxu0
        %v2318 = vadd.f32 %v2305, %v2317
        %v2319 = vpop.f32.mrf.mxu0
        %2320 = vdwg.mxu0
        %2321 = vmatpush.bf16.msra.mxu0 %v1932
        %2322 = vmatpush.bf16.msra.mxu0 %v1928
        %2323 = vmatpush.bf16.msra.mxu0 %v1924
        %2324 = vmatpush.bf16.msra.mxu0 %v1920
        %2325 = vmatpush.bf16.msra.mxu0 %v1916
        %2326 = vmatpush.bf16.msra.mxu0 %v1912
        %2327 = vmatpush.bf16.msra.mxu0 %v1908
        %2328 = vmatpush.bf16.msra.mxu0 %v1904
        %2329 = vmatmul.bf16.gmra.mxu0 %v707
        %v2330 = vpop.f32.mrf.mxu0
        %v2331 = vadd.f32 %v2318, %v2330
        %v2332 = vpop.f32.mrf.mxu0
        %2333 = vdwg.mxu0
        %2334 = vmatpush.bf16.msra.mxu0 %v1964
        %2335 = vmatpush.bf16.msra.mxu0 %v1960
        %2336 = vmatpush.bf16.msra.mxu0 %v1956
        %2337 = vmatpush.bf16.msra.mxu0 %v1952
        %2338 = vmatpush.bf16.msra.mxu0 %v1948
        %2339 = vmatpush.bf16.msra.mxu0 %v1944
        %2340 = vmatpush.bf16.msra.mxu0 %v1940
        %2341 = vmatpush.bf16.msra.mxu0 %v1936
        %2342 = vmatmul.bf16.gmra.mxu0 %v708
        %v2343 = vpop.f32.mrf.mxu0
        %v2344 = vadd.f32 %v2331, %v2343
        %v2345 = vpop.f32.mrf.mxu0
        %2346 = vdwg.mxu0
        %2347 = vmatpush.bf16.msra.mxu0 %v1996
        %2348 = vmatpush.bf16.msra.mxu0 %v1992
        %2349 = vmatpush.bf16.msra.mxu0 %v1988
        %2350 = vmatpush.bf16.msra.mxu0 %v1984
        %2351 = vmatpush.bf16.msra.mxu0 %v1980
        %2352 = vmatpush.bf16.msra.mxu0 %v1976
        %2353 = vmatpush.bf16.msra.mxu0 %v1972
        %2354 = vmatpush.bf16.msra.mxu0 %v1968
        %2355 = vmatmul.bf16.gmra.mxu0 %v709
        %v2356 = vpop.f32.mrf.mxu0
        %v2357 = vadd.f32 %v2344, %v2356
        %v2358 = vpop.f32.mrf.mxu0
        %2359 = vdwg.mxu0
        %2360 = vmatpush.bf16.msra.mxu0 %v1773
        %2361 = vmatpush.bf16.msra.mxu0 %v1769
        %2362 = vmatpush.bf16.msra.mxu0 %v1765
        %2363 = vmatpush.bf16.msra.mxu0 %v1761
        %2364 = vmatpush.bf16.msra.mxu0 %v1757
        %2365 = vmatpush.bf16.msra.mxu0 %v1753
        %2366 = vmatpush.bf16.msra.mxu0 %v1749
        %2367 = vmatpush.bf16.msra.mxu0 %v1745
        %2368 = vmatmul.bf16.gmra.mxu0 %v702
        %v2369 = vpop.f32.mrf.mxu0
        %v2370 = vadd.f32 %v969, %v2369
        %v2371 = vpop.f32.mrf.mxu0
        %2372 = vdwg.mxu0
        %2373 = vmatpush.bf16.msra.mxu0 %v1805
        %2374 = vmatpush.bf16.msra.mxu0 %v1801
        %2375 = vmatpush.bf16.msra.mxu0 %v1797
        %2376 = vmatpush.bf16.msra.mxu0 %v1793
        %2377 = vmatpush.bf16.msra.mxu0 %v1789
        %2378 = vmatpush.bf16.msra.mxu0 %v1785
        %2379 = vmatpush.bf16.msra.mxu0 %v1781
        %2380 = vmatpush.bf16.msra.mxu0 %v1777
        %2381 = vmatmul.bf16.gmra.mxu0 %v703
        %v2382 = vpop.f32.mrf.mxu0
        %v2383 = vadd.f32 %v2370, %v2382
        %v2384 = vpop.f32.mrf.mxu0
        %2385 = vdwg.mxu0
        %2386 = vmatpush.bf16.msra.mxu0 %v1837
        %2387 = vmatpush.bf16.msra.mxu0 %v1833
        %2388 = vmatpush.bf16.msra.mxu0 %v1829
        %2389 = vmatpush.bf16.msra.mxu0 %v1825
        %2390 = vmatpush.bf16.msra.mxu0 %v1821
        %2391 = vmatpush.bf16.msra.mxu0 %v1817
        %2392 = vmatpush.bf16.msra.mxu0 %v1813
        %2393 = vmatpush.bf16.msra.mxu0 %v1809
        %2394 = vmatmul.bf16.gmra.mxu0 %v704
        %v2395 = vpop.f32.mrf.mxu0
        %v2396 = vadd.f32 %v2383, %v2395
        %v2397 = vpop.f32.mrf.mxu0
        %2398 = vdwg.mxu0
        %2399 = vmatpush.bf16.msra.mxu0 %v1869
        %2400 = vmatpush.bf16.msra.mxu0 %v1865
        %2401 = vmatpush.bf16.msra.mxu0 %v1861
        %2402 = vmatpush.bf16.msra.mxu0 %v1857
        %2403 = vmatpush.bf16.msra.mxu0 %v1853
        %2404 = vmatpush.bf16.msra.mxu0 %v1849
        %2405 = vmatpush.bf16.msra.mxu0 %v1845
        %2406 = vmatpush.bf16.msra.mxu0 %v1841
        %2407 = vmatmul.bf16.gmra.mxu0 %v705
        %v2408 = vpop.f32.mrf.mxu0
        %v2409 = vadd.f32 %v2396, %v2408
        %v2410 = vpop.f32.mrf.mxu0
        %2411 = vdwg.mxu0
        %2412 = vmatpush.bf16.msra.mxu0 %v1901
        %2413 = vmatpush.bf16.msra.mxu0 %v1897
        %2414 = vmatpush.bf16.msra.mxu0 %v1893
        %2415 = vmatpush.bf16.msra.mxu0 %v1889
        %2416 = vmatpush.bf16.msra.mxu0 %v1885
        %2417 = vmatpush.bf16.msra.mxu0 %v1881
        %2418 = vmatpush.bf16.msra.mxu0 %v1877
        %2419 = vmatpush.bf16.msra.mxu0 %v1873
        %2420 = vmatmul.bf16.gmra.mxu0 %v706
        %v2421 = vpop.f32.mrf.mxu0
        %v2422 = vadd.f32 %v2409, %v2421
        %v2423 = vpop.f32.mrf.mxu0
        %2424 = vdwg.mxu0
        %2425 = vmatpush.bf16.msra.mxu0 %v1933
        %2426 = vmatpush.bf16.msra.mxu0 %v1929
        %2427 = vmatpush.bf16.msra.mxu0 %v1925
        %2428 = vmatpush.bf16.msra.mxu0 %v1921
        %2429 = vmatpush.bf16.msra.mxu0 %v1917
        %2430 = vmatpush.bf16.msra.mxu0 %v1913
        %2431 = vmatpush.bf16.msra.mxu0 %v1909
        %2432 = vmatpush.bf16.msra.mxu0 %v1905
        %2433 = vmatmul.bf16.gmra.mxu0 %v707
        %v2434 = vpop.f32.mrf.mxu0
        %v2435 = vadd.f32 %v2422, %v2434
        %v2436 = vpop.f32.mrf.mxu0
        %2437 = vdwg.mxu0
        %2438 = vmatpush.bf16.msra.mxu0 %v1965
        %2439 = vmatpush.bf16.msra.mxu0 %v1961
        %2440 = vmatpush.bf16.msra.mxu0 %v1957
        %2441 = vmatpush.bf16.msra.mxu0 %v1953
        %2442 = vmatpush.bf16.msra.mxu0 %v1949
        %2443 = vmatpush.bf16.msra.mxu0 %v1945
        %2444 = vmatpush.bf16.msra.mxu0 %v1941
        %2445 = vmatpush.bf16.msra.mxu0 %v1937
        %2446 = vmatmul.bf16.gmra.mxu0 %v708
        %v2447 = vpop.f32.mrf.mxu0
        %v2448 = vadd.f32 %v2435, %v2447
        %v2449 = vpop.f32.mrf.mxu0
        %2450 = vdwg.mxu0
        %2451 = vmatpush.bf16.msra.mxu0 %v1997
        %2452 = vmatpush.bf16.msra.mxu0 %v1993
        %2453 = vmatpush.bf16.msra.mxu0 %v1989
        %2454 = vmatpush.bf16.msra.mxu0 %v1985
        %2455 = vmatpush.bf16.msra.mxu0 %v1981
        %2456 = vmatpush.bf16.msra.mxu0 %v1977
        %2457 = vmatpush.bf16.msra.mxu0 %v1973
        %2458 = vmatpush.bf16.msra.mxu0 %v1969
        %2459 = vmatmul.bf16.gmra.mxu0 %v709
        %v2460 = vpop.f32.mrf.mxu0
        %v2461 = vadd.f32 %v2448, %v2460
        %v2462 = vpop.f32.mrf.mxu0
        %2463 = vdwg.mxu0
        %2464 = vmatpush.bf16.msra.mxu0 %v1774
        %2465 = vmatpush.bf16.msra.mxu0 %v1770
        %2466 = vmatpush.bf16.msra.mxu0 %v1766
        %2467 = vmatpush.bf16.msra.mxu0 %v1762
        %2468 = vmatpush.bf16.msra.mxu0 %v1758
        %2469 = vmatpush.bf16.msra.mxu0 %v1754
        %2470 = vmatpush.bf16.msra.mxu0 %v1750
        %2471 = vmatpush.bf16.msra.mxu0 %v1746
        %2472 = vmatmul.bf16.gmra.mxu0 %v702
        %v2473 = vpop.f32.mrf.mxu0
        %v2474 = vadd.f32 %v970, %v2473
        %v2475 = vpop.f32.mrf.mxu0
        %2476 = vdwg.mxu0
        %2477 = vmatpush.bf16.msra.mxu0 %v1806
        %2478 = vmatpush.bf16.msra.mxu0 %v1802
        %2479 = vmatpush.bf16.msra.mxu0 %v1798
        %2480 = vmatpush.bf16.msra.mxu0 %v1794
        %2481 = vmatpush.bf16.msra.mxu0 %v1790
        %2482 = vmatpush.bf16.msra.mxu0 %v1786
        %2483 = vmatpush.bf16.msra.mxu0 %v1782
        %2484 = vmatpush.bf16.msra.mxu0 %v1778
        %2485 = vmatmul.bf16.gmra.mxu0 %v703
        %v2486 = vpop.f32.mrf.mxu0
        %v2487 = vadd.f32 %v2474, %v2486
        %v2488 = vpop.f32.mrf.mxu0
        %2489 = vdwg.mxu0
        %2490 = vmatpush.bf16.msra.mxu0 %v1838
        %2491 = vmatpush.bf16.msra.mxu0 %v1834
        %2492 = vmatpush.bf16.msra.mxu0 %v1830
        %2493 = vmatpush.bf16.msra.mxu0 %v1826
        %2494 = vmatpush.bf16.msra.mxu0 %v1822
        %2495 = vmatpush.bf16.msra.mxu0 %v1818
        %2496 = vmatpush.bf16.msra.mxu0 %v1814
        %2497 = vmatpush.bf16.msra.mxu0 %v1810
        %2498 = vmatmul.bf16.gmra.mxu0 %v704
        %v2499 = vpop.f32.mrf.mxu0
        %v2500 = vadd.f32 %v2487, %v2499
        %v2501 = vpop.f32.mrf.mxu0
        %2502 = vdwg.mxu0
        %2503 = vmatpush.bf16.msra.mxu0 %v1870
        %2504 = vmatpush.bf16.msra.mxu0 %v1866
        %2505 = vmatpush.bf16.msra.mxu0 %v1862
        %2506 = vmatpush.bf16.msra.mxu0 %v1858
        %2507 = vmatpush.bf16.msra.mxu0 %v1854
        %2508 = vmatpush.bf16.msra.mxu0 %v1850
        %2509 = vmatpush.bf16.msra.mxu0 %v1846
        %2510 = vmatpush.bf16.msra.mxu0 %v1842
        %2511 = vmatmul.bf16.gmra.mxu0 %v705
        %v2512 = vpop.f32.mrf.mxu0
        %v2513 = vadd.f32 %v2500, %v2512
        %v2514 = vpop.f32.mrf.mxu0
        %2515 = vdwg.mxu0
        %2516 = vmatpush.bf16.msra.mxu0 %v1902
        %2517 = vmatpush.bf16.msra.mxu0 %v1898
        %2518 = vmatpush.bf16.msra.mxu0 %v1894
        %2519 = vmatpush.bf16.msra.mxu0 %v1890
        %2520 = vmatpush.bf16.msra.mxu0 %v1886
        %2521 = vmatpush.bf16.msra.mxu0 %v1882
        %2522 = vmatpush.bf16.msra.mxu0 %v1878
        %2523 = vmatpush.bf16.msra.mxu0 %v1874
        %2524 = vmatmul.bf16.gmra.mxu0 %v706
        %v2525 = vpop.f32.mrf.mxu0
        %v2526 = vadd.f32 %v2513, %v2525
        %v2527 = vpop.f32.mrf.mxu0
        %2528 = vdwg.mxu0
        %2529 = vmatpush.bf16.msra.mxu0 %v1934
        %2530 = vmatpush.bf16.msra.mxu0 %v1930
        %2531 = vmatpush.bf16.msra.mxu0 %v1926
        %2532 = vmatpush.bf16.msra.mxu0 %v1922
        %2533 = vmatpush.bf16.msra.mxu0 %v1918
        %2534 = vmatpush.bf16.msra.mxu0 %v1914
        %2535 = vmatpush.bf16.msra.mxu0 %v1910
        %2536 = vmatpush.bf16.msra.mxu0 %v1906
        %2537 = vmatmul.bf16.gmra.mxu0 %v707
        %v2538 = vpop.f32.mrf.mxu0
        %v2539 = vadd.f32 %v2526, %v2538
        %v2540 = vpop.f32.mrf.mxu0
        %2541 = vdwg.mxu0
        %2542 = vmatpush.bf16.msra.mxu0 %v1966
        %2543 = vmatpush.bf16.msra.mxu0 %v1962
        %2544 = vmatpush.bf16.msra.mxu0 %v1958
        %2545 = vmatpush.bf16.msra.mxu0 %v1954
        %2546 = vmatpush.bf16.msra.mxu0 %v1950
        %2547 = vmatpush.bf16.msra.mxu0 %v1946
        %2548 = vmatpush.bf16.msra.mxu0 %v1942
        %2549 = vmatpush.bf16.msra.mxu0 %v1938
        %2550 = vmatmul.bf16.gmra.mxu0 %v708
        %v2551 = vpop.f32.mrf.mxu0
        %v2552 = vadd.f32 %v2539, %v2551
        %v2553 = vpop.f32.mrf.mxu0
        %2554 = vdwg.mxu0
        %2555 = vmatpush.bf16.msra.mxu0 %v1998
        %2556 = vmatpush.bf16.msra.mxu0 %v1994
        %2557 = vmatpush.bf16.msra.mxu0 %v1990
        %2558 = vmatpush.bf16.msra.mxu0 %v1986
        %2559 = vmatpush.bf16.msra.mxu0 %v1982
        %2560 = vmatpush.bf16.msra.mxu0 %v1978
        %2561 = vmatpush.bf16.msra.mxu0 %v1974
        %2562 = vmatpush.bf16.msra.mxu0 %v1970
        %2563 = vmatmul.bf16.gmra.mxu0 %v709
        %v2564 = vpop.f32.mrf.mxu0
        %v2565 = vadd.f32 %v2552, %v2564
        %v2566 = vpop.f32.mrf.mxu0
        %2567 = vdwg.mxu0
        %2568 = vmatpush.bf16.msra.mxu0 %v1775
        %2569 = vmatpush.bf16.msra.mxu0 %v1771
        %2570 = vmatpush.bf16.msra.mxu0 %v1767
        %2571 = vmatpush.bf16.msra.mxu0 %v1763
        %2572 = vmatpush.bf16.msra.mxu0 %v1759
        %2573 = vmatpush.bf16.msra.mxu0 %v1755
        %2574 = vmatpush.bf16.msra.mxu0 %v1751
        %2575 = vmatpush.bf16.msra.mxu0 %v1747
        %2576 = vmatmul.bf16.gmra.mxu0 %v702
        %v2577 = vpop.f32.mrf.mxu0
        %v2578 = vadd.f32 %v971, %v2577
        %v2579 = vpop.f32.mrf.mxu0
        %2580 = vdwg.mxu0
        %2581 = vmatpush.bf16.msra.mxu0 %v1807
        %2582 = vmatpush.bf16.msra.mxu0 %v1803
        %2583 = vmatpush.bf16.msra.mxu0 %v1799
        %2584 = vmatpush.bf16.msra.mxu0 %v1795
        %2585 = vmatpush.bf16.msra.mxu0 %v1791
        %2586 = vmatpush.bf16.msra.mxu0 %v1787
        %2587 = vmatpush.bf16.msra.mxu0 %v1783
        %2588 = vmatpush.bf16.msra.mxu0 %v1779
        %2589 = vmatmul.bf16.gmra.mxu0 %v703
        %v2590 = vpop.f32.mrf.mxu0
        %v2591 = vadd.f32 %v2578, %v2590
        %v2592 = vpop.f32.mrf.mxu0
        %2593 = vdwg.mxu0
        %2594 = vmatpush.bf16.msra.mxu0 %v1839
        %2595 = vmatpush.bf16.msra.mxu0 %v1835
        %2596 = vmatpush.bf16.msra.mxu0 %v1831
        %2597 = vmatpush.bf16.msra.mxu0 %v1827
        %2598 = vmatpush.bf16.msra.mxu0 %v1823
        %2599 = vmatpush.bf16.msra.mxu0 %v1819
        %2600 = vmatpush.bf16.msra.mxu0 %v1815
        %2601 = vmatpush.bf16.msra.mxu0 %v1811
        %2602 = vmatmul.bf16.gmra.mxu0 %v704
        %v2603 = vpop.f32.mrf.mxu0
        %v2604 = vadd.f32 %v2591, %v2603
        %v2605 = vpop.f32.mrf.mxu0
        %2606 = vdwg.mxu0
        %2607 = vmatpush.bf16.msra.mxu0 %v1871
        %2608 = vmatpush.bf16.msra.mxu0 %v1867
        %2609 = vmatpush.bf16.msra.mxu0 %v1863
        %2610 = vmatpush.bf16.msra.mxu0 %v1859
        %2611 = vmatpush.bf16.msra.mxu0 %v1855
        %2612 = vmatpush.bf16.msra.mxu0 %v1851
        %2613 = vmatpush.bf16.msra.mxu0 %v1847
        %2614 = vmatpush.bf16.msra.mxu0 %v1843
        %2615 = vmatmul.bf16.gmra.mxu0 %v705
        %v2616 = vpop.f32.mrf.mxu0
        %v2617 = vadd.f32 %v2604, %v2616
        %v2618 = vpop.f32.mrf.mxu0
        %2619 = vdwg.mxu0
        %2620 = vmatpush.bf16.msra.mxu0 %v1903
        %2621 = vmatpush.bf16.msra.mxu0 %v1899
        %2622 = vmatpush.bf16.msra.mxu0 %v1895
        %2623 = vmatpush.bf16.msra.mxu0 %v1891
        %2624 = vmatpush.bf16.msra.mxu0 %v1887
        %2625 = vmatpush.bf16.msra.mxu0 %v1883
        %2626 = vmatpush.bf16.msra.mxu0 %v1879
        %2627 = vmatpush.bf16.msra.mxu0 %v1875
        %2628 = vmatmul.bf16.gmra.mxu0 %v706
        %v2629 = vpop.f32.mrf.mxu0
        %v2630 = vadd.f32 %v2617, %v2629
        %v2631 = vpop.f32.mrf.mxu0
        %2632 = vdwg.mxu0
        %2633 = vmatpush.bf16.msra.mxu0 %v1935
        %2634 = vmatpush.bf16.msra.mxu0 %v1931
        %2635 = vmatpush.bf16.msra.mxu0 %v1927
        %2636 = vmatpush.bf16.msra.mxu0 %v1923
        %2637 = vmatpush.bf16.msra.mxu0 %v1919
        %2638 = vmatpush.bf16.msra.mxu0 %v1915
        %2639 = vmatpush.bf16.msra.mxu0 %v1911
        %2640 = vmatpush.bf16.msra.mxu0 %v1907
        %2641 = vmatmul.bf16.gmra.mxu0 %v707
        %v2642 = vpop.f32.mrf.mxu0
        %v2643 = vadd.f32 %v2630, %v2642
        %v2644 = vpop.f32.mrf.mxu0
        %2645 = vdwg.mxu0
        %2646 = vmatpush.bf16.msra.mxu0 %v1967
        %2647 = vmatpush.bf16.msra.mxu0 %v1963
        %2648 = vmatpush.bf16.msra.mxu0 %v1959
        %2649 = vmatpush.bf16.msra.mxu0 %v1955
        %2650 = vmatpush.bf16.msra.mxu0 %v1951
        %2651 = vmatpush.bf16.msra.mxu0 %v1947
        %2652 = vmatpush.bf16.msra.mxu0 %v1943
        %2653 = vmatpush.bf16.msra.mxu0 %v1939
        %2654 = vmatmul.bf16.gmra.mxu0 %v708
        %v2655 = vpop.f32.mrf.mxu0
        %v2656 = vadd.f32 %v2643, %v2655
        %v2657 = vpop.f32.mrf.mxu0
        %2658 = vdwg.mxu0
        %2659 = vmatpush.bf16.msra.mxu0 %v1999
        %2660 = vmatpush.bf16.msra.mxu0 %v1995
        %2661 = vmatpush.bf16.msra.mxu0 %v1991
        %2662 = vmatpush.bf16.msra.mxu0 %v1987
        %2663 = vmatpush.bf16.msra.mxu0 %v1983
        %2664 = vmatpush.bf16.msra.mxu0 %v1979
        %2665 = vmatpush.bf16.msra.mxu0 %v1975
        %2666 = vmatpush.bf16.msra.mxu0 %v1971
        %2667 = vmatmul.bf16.gmra.mxu0 %v709
        %v2668 = vpop.f32.mrf.mxu0
        %v2669 = vadd.f32 %v2656, %v2668
        %v2670 = vpop.f32.mrf.mxu0
        %2671 = vdwg.mxu0
        %v2672 = vmax.f32 %v2357, 0.0
        %v2673 = vmax.f32 %v2461, 0.0
        %v2674 = vmax.f32 %v2565, 0.0
        %v2675 = vmax.f32 %v2669, 0.0
        %v2676 = vpack.c.bf16 %v2672, %v2672
        %v2677 = vpack.c.bf16 %v2673, %v2673
        %v2678 = vpack.c.bf16 %v2674, %v2674
        %v2679 = vpack.c.bf16 %v2675, %v2675
        %v2680 = vld [vmem:[%s6] sm:$0xff]
        %v2681 = vld [vmem:[%s6 + $0x8] sm:$0xff]
        %v2682 = vld [vmem:[%s6 + $0x10] sm:$0xff]
        %v2683 = vld [vmem:[%s6 + $0x18] sm:$0xff]
        %v2684 = vld [vmem:[%s6 + $0x20] sm:$0xff]
        %v2685 = vld [vmem:[%s6 + $0x28] sm:$0xff]
        %v2686 = vld [vmem:[%s6 + $0x30] sm:$0xff]
        %v2687 = vld [vmem:[%s6 + $0x38] sm:$0xff]
        %v2688 = vld [vmem:[%s6 + $0x40] sm:$0xff]
        %v2689 = vld [vmem:[%s6 + $0x48] sm:$0xff]
        %v2690 = vld [vmem:[%s6 + $0x50] sm:$0xff]
        %v2691 = vld [vmem:[%s6 + $0x58] sm:$0xff]
        %v2692 = vld [vmem:[%s6 + $0x60] sm:$0xff]
        %v2693 = vld [vmem:[%s6 + $0x68] sm:$0xff]
        %v2694 = vld [vmem:[%s6 + $0x70] sm:$0xff]
        %v2695 = vld [vmem:[%s6 + $0x78] sm:$0xff]
        %v2696 = vld [vmem:[%s6 + $0x80] sm:$0xff]
        %v2697 = vld [vmem:[%s6 + $0x88] sm:$0xff]
        %v2698 = vld [vmem:[%s6 + $0x90] sm:$0xff]
        %v2699 = vld [vmem:[%s6 + $0x98] sm:$0xff]
        %v2700 = vld [vmem:[%s6 + $0xa0] sm:$0xff]
        %v2701 = vld [vmem:[%s6 + $0xa8] sm:$0xff]
        %v2702 = vld [vmem:[%s6 + $0xb0] sm:$0xff]
        %v2703 = vld [vmem:[%s6 + $0xb8] sm:$0xff]
        %v2704 = vld [vmem:[%s6 + $0xc0] sm:$0xff]
        %v2705 = vld [vmem:[%s6 + $0xc8] sm:$0xff]
        %v2706 = vld [vmem:[%s6 + $0xd0] sm:$0xff]
        %v2707 = vld [vmem:[%s6 + $0xd8] sm:$0xff]
        %v2708 = vld [vmem:[%s6 + $0xe0] sm:$0xff]
        %v2709 = vld [vmem:[%s6 + $0xe8] sm:$0xff]
        %v2710 = vld [vmem:[%s6 + $0xf0] sm:$0xff]
        %v2711 = vld [vmem:[%s6 + $0xf8] sm:$0xff]
        %v2712 = vld [vmem:[%s6 + $0x100] sm:$0xff]
        %v2713 = vld [vmem:[%s6 + $0x108] sm:$0xff]
        %v2714 = vld [vmem:[%s6 + $0x110] sm:$0xff]
        %v2715 = vld [vmem:[%s6 + $0x118] sm:$0xff]
        %v2716 = vld [vmem:[%s6 + $0x120] sm:$0xff]
        %v2717 = vld [vmem:[%s6 + $0x128] sm:$0xff]
        %v2718 = vld [vmem:[%s6 + $0x130] sm:$0xff]
        %v2719 = vld [vmem:[%s6 + $0x138] sm:$0xff]
        %v2720 = vld [vmem:[%s6 + $0x140] sm:$0xff]
        %v2721 = vld [vmem:[%s6 + $0x148] sm:$0xff]
        %v2722 = vld [vmem:[%s6 + $0x150] sm:$0xff]
        %v2723 = vld [vmem:[%s6 + $0x158] sm:$0xff]
        %v2724 = vld [vmem:[%s6 + $0x160] sm:$0xff]
        %v2725 = vld [vmem:[%s6 + $0x168] sm:$0xff]
        %v2726 = vld [vmem:[%s6 + $0x170] sm:$0xff]
        %v2727 = vld [vmem:[%s6 + $0x178] sm:$0xff]
        %v2728 = vld [vmem:[%s6 + $0x180] sm:$0xff]
        %v2729 = vld [vmem:[%s6 + $0x188] sm:$0xff]
        %v2730 = vld [vmem:[%s6 + $0x190] sm:$0xff]
        %v2731 = vld [vmem:[%s6 + $0x198] sm:$0xff]
        %v2732 = vld [vmem:[%s6 + $0x1a0] sm:$0xff]
        %v2733 = vld [vmem:[%s6 + $0x1a8] sm:$0xff]
        %v2734 = vld [vmem:[%s6 + $0x1b0] sm:$0xff]
        %v2735 = vld [vmem:[%s6 + $0x1b8] sm:$0xff]
        %v2736 = vld [vmem:[%s6 + $0x1c0] sm:$0xff]
        %v2737 = vld [vmem:[%s6 + $0x1c8] sm:$0xff]
        %v2738 = vld [vmem:[%s6 + $0x1d0] sm:$0xff]
        %v2739 = vld [vmem:[%s6 + $0x1d8] sm:$0xff]
        %v2740 = vld [vmem:[%s6 + $0x1e0] sm:$0xff]
        %v2741 = vld [vmem:[%s6 + $0x1e8] sm:$0xff]
        %v2742 = vld [vmem:[%s6 + $0x1f0] sm:$0xff]
        %v2743 = vld [vmem:[%s6 + $0x1f8] sm:$0xff]
        %v2744 = vld [vmem:[%s7] sm:$0x3]
        %v2746 = vperm.slane %v2744, 0
        %v2747 = vperm.slane %v2744, 1
        %v2814 = vunpack.c.l.b16 %v2680
        %v2815 = vunpack.c.h.b16 %v2680
        %v2816 = vunpack.c.l.b16 %v2681
        %v2817 = vunpack.c.h.b16 %v2681
        %v2818 = vunpack.c.l.b16 %v2682
        %v2819 = vunpack.c.h.b16 %v2682
        %v2820 = vunpack.c.l.b16 %v2683
        %v2821 = vunpack.c.h.b16 %v2683
        %v2822 = vunpack.c.l.b16 %v2684
        %v2823 = vunpack.c.h.b16 %v2684
        %v2824 = vunpack.c.l.b16 %v2685
        %v2825 = vunpack.c.h.b16 %v2685
        %v2826 = vunpack.c.l.b16 %v2686
        %v2827 = vunpack.c.h.b16 %v2686
        %v2828 = vunpack.c.l.b16 %v2687
        %v2829 = vunpack.c.h.b16 %v2687
        %v2830 = vunpack.c.l.b16 %v2688
        %v2831 = vunpack.c.h.b16 %v2688
        %v2832 = vunpack.c.l.b16 %v2689
        %v2833 = vunpack.c.h.b16 %v2689
        %v2834 = vunpack.c.l.b16 %v2690
        %v2835 = vunpack.c.h.b16 %v2690
        %v2836 = vunpack.c.l.b16 %v2691
        %v2837 = vunpack.c.h.b16 %v2691
        %v2838 = vunpack.c.l.b16 %v2692
        %v2839 = vunpack.c.h.b16 %v2692
        %v2840 = vunpack.c.l.b16 %v2693
        %v2841 = vunpack.c.h.b16 %v2693
        %v2842 = vunpack.c.l.b16 %v2694
        %v2843 = vunpack.c.h.b16 %v2694
        %v2844 = vunpack.c.l.b16 %v2695
        %v2845 = vunpack.c.h.b16 %v2695
        %v2846 = vunpack.c.l.b16 %v2696
        %v2847 = vunpack.c.h.b16 %v2696
        %v2848 = vunpack.c.l.b16 %v2697
        %v2849 = vunpack.c.h.b16 %v2697
        %v2850 = vunpack.c.l.b16 %v2698
        %v2851 = vunpack.c.h.b16 %v2698
        %v2852 = vunpack.c.l.b16 %v2699
        %v2853 = vunpack.c.h.b16 %v2699
        %v2854 = vunpack.c.l.b16 %v2700
        %v2855 = vunpack.c.h.b16 %v2700
        %v2856 = vunpack.c.l.b16 %v2701
        %v2857 = vunpack.c.h.b16 %v2701
        %v2858 = vunpack.c.l.b16 %v2702
        %v2859 = vunpack.c.h.b16 %v2702
        %v2860 = vunpack.c.l.b16 %v2703
        %v2861 = vunpack.c.h.b16 %v2703
        %v2862 = vunpack.c.l.b16 %v2704
        %v2863 = vunpack.c.h.b16 %v2704
        %v2864 = vunpack.c.l.b16 %v2705
        %v2865 = vunpack.c.h.b16 %v2705
        %v2866 = vunpack.c.l.b16 %v2706
        %v2867 = vunpack.c.h.b16 %v2706
        %v2868 = vunpack.c.l.b16 %v2707
        %v2869 = vunpack.c.h.b16 %v2707
        %v2870 = vunpack.c.l.b16 %v2708
        %v2871 = vunpack.c.h.b16 %v2708
        %v2872 = vunpack.c.l.b16 %v2709
        %v2873 = vunpack.c.h.b16 %v2709
        %v2874 = vunpack.c.l.b16 %v2710
        %v2875 = vunpack.c.h.b16 %v2710
        %v2876 = vunpack.c.l.b16 %v2711
        %v2877 = vunpack.c.h.b16 %v2711
        %v2878 = vunpack.c.l.b16 %v2712
        %v2879 = vunpack.c.h.b16 %v2712
        %v2880 = vunpack.c.l.b16 %v2713
        %v2881 = vunpack.c.h.b16 %v2713
        %v2882 = vunpack.c.l.b16 %v2714
        %v2883 = vunpack.c.h.b16 %v2714
        %v2884 = vunpack.c.l.b16 %v2715
        %v2885 = vunpack.c.h.b16 %v2715
        %v2886 = vunpack.c.l.b16 %v2716
        %v2887 = vunpack.c.h.b16 %v2716
        %v2888 = vunpack.c.l.b16 %v2717
        %v2889 = vunpack.c.h.b16 %v2717
        %v2890 = vunpack.c.l.b16 %v2718
        %v2891 = vunpack.c.h.b16 %v2718
        %v2892 = vunpack.c.l.b16 %v2719
        %v2893 = vunpack.c.h.b16 %v2719
        %v2894 = vunpack.c.l.b16 %v2720
        %v2895 = vunpack.c.h.b16 %v2720
        %v2896 = vunpack.c.l.b16 %v2721
        %v2897 = vunpack.c.h.b16 %v2721
        %v2898 = vunpack.c.l.b16 %v2722
        %v2899 = vunpack.c.h.b16 %v2722
        %v2900 = vunpack.c.l.b16 %v2723
        %v2901 = vunpack.c.h.b16 %v2723
        %v2902 = vunpack.c.l.b16 %v2724
        %v2903 = vunpack.c.h.b16 %v2724
        %v2904 = vunpack.c.l.b16 %v2725
        %v2905 = vunpack.c.h.b16 %v2725
        %v2906 = vunpack.c.l.b16 %v2726
        %v2907 = vunpack.c.h.b16 %v2726
        %v2908 = vunpack.c.l.b16 %v2727
        %v2909 = vunpack.c.h.b16 %v2727
        %v2910 = vunpack.c.l.b16 %v2728
        %v2911 = vunpack.c.h.b16 %v2728
        %v2912 = vunpack.c.l.b16 %v2729
        %v2913 = vunpack.c.h.b16 %v2729
        %v2914 = vunpack.c.l.b16 %v2730
        %v2915 = vunpack.c.h.b16 %v2730
        %v2916 = vunpack.c.l.b16 %v2731
        %v2917 = vunpack.c.h.b16 %v2731
        %v2918 = vunpack.c.l.b16 %v2732
        %v2919 = vunpack.c.h.b16 %v2732
        %v2920 = vunpack.c.l.b16 %v2733
        %v2921 = vunpack.c.h.b16 %v2733
        %v2922 = vunpack.c.l.b16 %v2734
        %v2923 = vunpack.c.h.b16 %v2734
        %v2924 = vunpack.c.l.b16 %v2735
        %v2925 = vunpack.c.h.b16 %v2735
        %v2926 = vunpack.c.l.b16 %v2736
        %v2927 = vunpack.c.h.b16 %v2736
        %v2928 = vunpack.c.l.b16 %v2737
        %v2929 = vunpack.c.h.b16 %v2737
        %v2930 = vunpack.c.l.b16 %v2738
        %v2931 = vunpack.c.h.b16 %v2738
        %v2932 = vunpack.c.l.b16 %v2739
        %v2933 = vunpack.c.h.b16 %v2739
        %v2934 = vunpack.c.l.b16 %v2740
        %v2935 = vunpack.c.h.b16 %v2740
        %v2936 = vunpack.c.l.b16 %v2741
        %v2937 = vunpack.c.h.b16 %v2741
        %v2938 = vunpack.c.l.b16 %v2742
        %v2939 = vunpack.c.h.b16 %v2742
        %v2940 = vunpack.c.l.b16 %v2743
        %v2941 = vunpack.c.h.b16 %v2743
        %v2942 = vpack.c.b16 %v2816, %v2814
        %v2943 = vpack.c.b16 %v2817, %v2815
        %v2944 = vpack.c.b16 %v2820, %v2818
        %v2945 = vpack.c.b16 %v2821, %v2819
        %v2946 = vpack.c.b16 %v2824, %v2822
        %v2947 = vpack.c.b16 %v2825, %v2823
        %v2948 = vpack.c.b16 %v2828, %v2826
        %v2949 = vpack.c.b16 %v2829, %v2827
        %v2950 = vpack.c.b16 %v2832, %v2830
        %v2951 = vpack.c.b16 %v2833, %v2831
        %v2952 = vpack.c.b16 %v2836, %v2834
        %v2953 = vpack.c.b16 %v2837, %v2835
        %v2954 = vpack.c.b16 %v2840, %v2838
        %v2955 = vpack.c.b16 %v2841, %v2839
        %v2956 = vpack.c.b16 %v2844, %v2842
        %v2957 = vpack.c.b16 %v2845, %v2843
        %v2958 = vpack.c.b16 %v2848, %v2846
        %v2959 = vpack.c.b16 %v2849, %v2847
        %v2960 = vpack.c.b16 %v2852, %v2850
        %v2961 = vpack.c.b16 %v2853, %v2851
        %v2962 = vpack.c.b16 %v2856, %v2854
        %v2963 = vpack.c.b16 %v2857, %v2855
        %v2964 = vpack.c.b16 %v2860, %v2858
        %v2965 = vpack.c.b16 %v2861, %v2859
        %v2966 = vpack.c.b16 %v2864, %v2862
        %v2967 = vpack.c.b16 %v2865, %v2863
        %v2968 = vpack.c.b16 %v2868, %v2866
        %v2969 = vpack.c.b16 %v2869, %v2867
        %v2970 = vpack.c.b16 %v2872, %v2870
        %v2971 = vpack.c.b16 %v2873, %v2871
        %v2972 = vpack.c.b16 %v2876, %v2874
        %v2973 = vpack.c.b16 %v2877, %v2875
        %v2974 = vpack.c.b16 %v2880, %v2878
        %v2975 = vpack.c.b16 %v2881, %v2879
        %v2976 = vpack.c.b16 %v2884, %v2882
        %v2977 = vpack.c.b16 %v2885, %v2883
        %v2978 = vpack.c.b16 %v2888, %v2886
        %v2979 = vpack.c.b16 %v2889, %v2887
        %v2980 = vpack.c.b16 %v2892, %v2890
        %v2981 = vpack.c.b16 %v2893, %v2891
        %v2982 = vpack.c.b16 %v2896, %v2894
        %v2983 = vpack.c.b16 %v2897, %v2895
        %v2984 = vpack.c.b16 %v2900, %v2898
        %v2985 = vpack.c.b16 %v2901, %v2899
        %v2986 = vpack.c.b16 %v2904, %v2902
        %v2987 = vpack.c.b16 %v2905, %v2903
        %v2988 = vpack.c.b16 %v2908, %v2906
        %v2989 = vpack.c.b16 %v2909, %v2907
        %v2990 = vpack.c.b16 %v2912, %v2910
        %v2991 = vpack.c.b16 %v2913, %v2911
        %v2992 = vpack.c.b16 %v2916, %v2914
        %v2993 = vpack.c.b16 %v2917, %v2915
        %v2994 = vpack.c.b16 %v2920, %v2918
        %v2995 = vpack.c.b16 %v2921, %v2919
        %v2996 = vpack.c.b16 %v2924, %v2922
        %v2997 = vpack.c.b16 %v2925, %v2923
        %v2998 = vpack.c.b16 %v2928, %v2926
        %v2999 = vpack.c.b16 %v2929, %v2927
        %v3000 = vpack.c.b16 %v2932, %v2930
        %v3001 = vpack.c.b16 %v2933, %v2931
        %v3002 = vpack.c.b16 %v2936, %v2934
        %v3003 = vpack.c.b16 %v2937, %v2935
        %v3004 = vpack.c.b16 %v2940, %v2938
        %v3005 = vpack.c.b16 %v2941, %v2939
        %3070 = vmatpush.bf16.msra.mxu0 %v2956
        %3071 = vmatpush.bf16.msra.mxu0 %v2954
        %3072 = vmatpush.bf16.msra.mxu0 %v2952
        %3073 = vmatpush.bf16.msra.mxu0 %v2950
        %3074 = vmatpush.bf16.msra.mxu0 %v2948
        %3075 = vmatpush.bf16.msra.mxu0 %v2946
        %3076 = vmatpush.bf16.msra.mxu0 %v2944
        %3077 = vmatpush.bf16.msra.mxu0 %v2942
        %3078 = vmatmul.bf16.gmra.mxu0 %v2676
        %v3079 = vpop.f32.mrf.mxu0
        %v3080 = vadd.f32 %v2746, %v3079
        %v3081 = vpop.f32.mrf.mxu0
        %3082 = vdwg.mxu0
        %3083 = vmatpush.bf16.msra.mxu0 %v2972
        %3084 = vmatpush.bf16.msra.mxu0 %v2970
        %3085 = vmatpush.bf16.msra.mxu0 %v2968
        %3086 = vmatpush.bf16.msra.mxu0 %v2966
        %3087 = vmatpush.bf16.msra.mxu0 %v2964
        %3088 = vmatpush.bf16.msra.mxu0 %v2962
        %3089 = vmatpush.bf16.msra.mxu0 %v2960
        %3090 = vmatpush.bf16.msra.mxu0 %v2958
        %3091 = vmatmul.bf16.gmra.mxu0 %v2677
        %v3092 = vpop.f32.mrf.mxu0
        %v3093 = vadd.f32 %v3080, %v3092
        %v3094 = vpop.f32.mrf.mxu0
        %3095 = vdwg.mxu0
        %3096 = vmatpush.bf16.msra.mxu0 %v2988
        %3097 = vmatpush.bf16.msra.mxu0 %v2986
        %3098 = vmatpush.bf16.msra.mxu0 %v2984
        %3099 = vmatpush.bf16.msra.mxu0 %v2982
        %3100 = vmatpush.bf16.msra.mxu0 %v2980
        %3101 = vmatpush.bf16.msra.mxu0 %v2978
        %3102 = vmatpush.bf16.msra.mxu0 %v2976
        %3103 = vmatpush.bf16.msra.mxu0 %v2974
        %3104 = vmatmul.bf16.gmra.mxu0 %v2678
        %v3105 = vpop.f32.mrf.mxu0
        %v3106 = vadd.f32 %v3093, %v3105
        %v3107 = vpop.f32.mrf.mxu0
        %3108 = vdwg.mxu0
        %3109 = vmatpush.bf16.msra.mxu0 %v3004
        %3110 = vmatpush.bf16.msra.mxu0 %v3002
        %3111 = vmatpush.bf16.msra.mxu0 %v3000
        %3112 = vmatpush.bf16.msra.mxu0 %v2998
        %3113 = vmatpush.bf16.msra.mxu0 %v2996
        %3114 = vmatpush.bf16.msra.mxu0 %v2994
        %3115 = vmatpush.bf16.msra.mxu0 %v2992
        %3116 = vmatpush.bf16.msra.mxu0 %v2990
        %3117 = vmatmul.bf16.gmra.mxu0 %v2679
        %v3118 = vpop.f32.mrf.mxu0
        %v3119 = vadd.f32 %v3106, %v3118
        %v3120 = vpop.f32.mrf.mxu0
        %3121 = vdwg.mxu0
        %3122 = vmatpush.bf16.msra.mxu0 %v2957
        %3123 = vmatpush.bf16.msra.mxu0 %v2955
        %3124 = vmatpush.bf16.msra.mxu0 %v2953
        %3125 = vmatpush.bf16.msra.mxu0 %v2951
        %3126 = vmatpush.bf16.msra.mxu0 %v2949
        %3127 = vmatpush.bf16.msra.mxu0 %v2947
        %3128 = vmatpush.bf16.msra.mxu0 %v2945
        %3129 = vmatpush.bf16.msra.mxu0 %v2943
        %3130 = vmatmul.bf16.gmra.mxu0 %v2676
        %v3131 = vpop.f32.mrf.mxu0
        %v3132 = vadd.f32 %v2747, %v3131
        %v3133 = vpop.f32.mrf.mxu0
        %3134 = vdwg.mxu0
        %3135 = vmatpush.bf16.msra.mxu0 %v2973
        %3136 = vmatpush.bf16.msra.mxu0 %v2971
        %3137 = vmatpush.bf16.msra.mxu0 %v2969
        %3138 = vmatpush.bf16.msra.mxu0 %v2967
        %3139 = vmatpush.bf16.msra.mxu0 %v2965
        %3140 = vmatpush.bf16.msra.mxu0 %v2963
        %3141 = vmatpush.bf16.msra.mxu0 %v2961
        %3142 = vmatpush.bf16.msra.mxu0 %v2959
        %3143 = vmatmul.bf16.gmra.mxu0 %v2677
        %v3144 = vpop.f32.mrf.mxu0
        %v3145 = vadd.f32 %v3132, %v3144
        %v3146 = vpop.f32.mrf.mxu0
        %3147 = vdwg.mxu0
        %3148 = vmatpush.bf16.msra.mxu0 %v2989
        %3149 = vmatpush.bf16.msra.mxu0 %v2987
        %3150 = vmatpush.bf16.msra.mxu0 %v2985
        %3151 = vmatpush.bf16.msra.mxu0 %v2983
        %3152 = vmatpush.bf16.msra.mxu0 %v2981
        %3153 = vmatpush.bf16.msra.mxu0 %v2979
        %3154 = vmatpush.bf16.msra.mxu0 %v2977
        %3155 = vmatpush.bf16.msra.mxu0 %v2975
        %3156 = vmatmul.bf16.gmra.mxu0 %v2678
        %v3157 = vpop.f32.mrf.mxu0
        %v3158 = vadd.f32 %v3145, %v3157
        %v3159 = vpop.f32.mrf.mxu0
        %3160 = vdwg.mxu0
        %3161 = vmatpush.bf16.msra.mxu0 %v3005
        %3162 = vmatpush.bf16.msra.mxu0 %v3003
        %3163 = vmatpush.bf16.msra.mxu0 %v3001
        %3164 = vmatpush.bf16.msra.mxu0 %v2999
        %3165 = vmatpush.bf16.msra.mxu0 %v2997
        %3166 = vmatpush.bf16.msra.mxu0 %v2995
        %3167 = vmatpush.bf16.msra.mxu0 %v2993
        %3168 = vmatpush.bf16.msra.mxu0 %v2991
        %3169 = vmatmul.bf16.gmra.mxu0 %v2679
        %v3170 = vpop.f32.mrf.mxu0
        %v3171 = vadd.f32 %v3158, %v3170
        %v3172 = vpop.f32.mrf.mxu0
        %3173 = vdwg.mxu0
        %v3174 = vmax.f32 %v3119, 0.0
        %v3175 = vmax.f32 %v3171, 0.0
        %v3176 = vpack.c.bf16 %v3174, %v3174
        %v3177 = vpack.c.bf16 %v3175, %v3175
        %v3178 = vld [vmem:[#allocation2] sm:$0xff]
        %v3179 = vld [vmem:[#allocation2 + $0x8] sm:$0xff]
        %v3180 = vld [vmem:[#allocation2 + $0x10] sm:$0xff]
        %v3181 = vld [vmem:[#allocation2 + $0x18] sm:$0xff]
        %v3182 = vld [vmem:[#allocation2 + $0x20] sm:$0xff]
        %v3183 = vld [vmem:[#allocation2 + $0x28] sm:$0xff]
        %v3184 = vld [vmem:[#allocation2 + $0x30] sm:$0xff]
        %v3185 = vld [vmem:[#allocation2 + $0x38] sm:$0xff]
        %v3186 = vld [vmem:[#allocation2 + $0x40] sm:$0xff]
        %v3187 = vld [vmem:[#allocation2 + $0x48] sm:$0xff]
        %v3188 = vld [vmem:[#allocation2 + $0x50] sm:$0xff]
        %v3189 = vld [vmem:[#allocation2 + $0x58] sm:$0xff]
        %v3190 = vld [vmem:[#allocation2 + $0x60] sm:$0xff]
        %v3191 = vld [vmem:[#allocation2 + $0x68] sm:$0xff]
        %v3192 = vld [vmem:[#allocation2 + $0x70] sm:$0xff]
        %v3193 = vld [vmem:[#allocation2 + $0x78] sm:$0xff]
        %v3194 = vld [vmem:[#allocation2 + $0x80] sm:$0xff]
        %v3195 = vld [vmem:[#allocation2 + $0x88] sm:$0xff]
        %v3196 = vld [vmem:[#allocation2 + $0x90] sm:$0xff]
        %v3197 = vld [vmem:[#allocation2 + $0x98] sm:$0xff]
        %v3198 = vld [vmem:[#allocation2 + $0xa0] sm:$0xff]
        %v3199 = vld [vmem:[#allocation2 + $0xa8] sm:$0xff]
        %v3200 = vld [vmem:[#allocation2 + $0xb0] sm:$0xff]
        %v3201 = vld [vmem:[#allocation2 + $0xb8] sm:$0xff]
        %v3202 = vld [vmem:[#allocation2 + $0xc0] sm:$0xff]
        %v3203 = vld [vmem:[#allocation2 + $0xc8] sm:$0xff]
        %v3204 = vld [vmem:[#allocation2 + $0xd0] sm:$0xff]
        %v3205 = vld [vmem:[#allocation2 + $0xd8] sm:$0xff]
        %v3206 = vld [vmem:[#allocation2 + $0xe0] sm:$0xff]
        %v3207 = vld [vmem:[#allocation2 + $0xe8] sm:$0xff]
        %v3208 = vld [vmem:[#allocation2 + $0xf0] sm:$0xff]
        %v3209 = vld [vmem:[#allocation2 + $0xf8] sm:$0xff]
        %v3210 = vld [vmem:[#allocation2 + $0x100] sm:$0xff]
        %v3211 = vld [vmem:[#allocation2 + $0x108] sm:$0xff]
        %v3212 = vld [vmem:[#allocation2 + $0x110] sm:$0xff]
        %v3213 = vld [vmem:[#allocation2 + $0x118] sm:$0xff]
        %v3214 = vld [vmem:[#allocation2 + $0x120] sm:$0xff]
        %v3215 = vld [vmem:[#allocation2 + $0x128] sm:$0xff]
        %v3216 = vld [vmem:[#allocation2 + $0x130] sm:$0xff]
        %v3217 = vld [vmem:[#allocation2 + $0x138] sm:$0xff]
        %v3218 = vld [vmem:[#allocation2 + $0x140] sm:$0xff]
        %v3219 = vld [vmem:[#allocation2 + $0x148] sm:$0xff]
        %v3220 = vld [vmem:[#allocation2 + $0x150] sm:$0xff]
        %v3221 = vld [vmem:[#allocation2 + $0x158] sm:$0xff]
        %v3222 = vld [vmem:[#allocation2 + $0x160] sm:$0xff]
        %v3223 = vld [vmem:[#allocation2 + $0x168] sm:$0xff]
        %v3224 = vld [vmem:[#allocation2 + $0x170] sm:$0xff]
        %v3225 = vld [vmem:[#allocation2 + $0x178] sm:$0xff]
        %v3226 = vld [vmem:[#allocation2 + $0x180] sm:$0xff]
        %v3227 = vld [vmem:[#allocation2 + $0x188] sm:$0xff]
        %v3228 = vld [vmem:[#allocation2 + $0x190] sm:$0xff]
        %v3229 = vld [vmem:[#allocation2 + $0x198] sm:$0xff]
        %v3230 = vld [vmem:[#allocation2 + $0x1a0] sm:$0xff]
        %v3231 = vld [vmem:[#allocation2 + $0x1a8] sm:$0xff]
        %v3232 = vld [vmem:[#allocation2 + $0x1b0] sm:$0xff]
        %v3233 = vld [vmem:[#allocation2 + $0x1b8] sm:$0xff]
        %v3234 = vld [vmem:[#allocation2 + $0x1c0] sm:$0xff]
        %v3235 = vld [vmem:[#allocation2 + $0x1c8] sm:$0xff]
        %v3236 = vld [vmem:[#allocation2 + $0x1d0] sm:$0xff]
        %v3237 = vld [vmem:[#allocation2 + $0x1d8] sm:$0xff]
        %v3238 = vld [vmem:[#allocation2 + $0x1e0] sm:$0xff]
        %v3239 = vld [vmem:[#allocation2 + $0x1e8] sm:$0xff]
        %v3240 = vld [vmem:[#allocation2 + $0x1f0] sm:$0xff]
        %v3241 = vld [vmem:[#allocation2 + $0x1f8] sm:$0xff]
        %v3242 = vld [vmem:[#allocation2 + $0x200] sm:$0xff]
        %v3243 = vld [vmem:[#allocation2 + $0x208] sm:$0xff]
        %v3244 = vld [vmem:[#allocation2 + $0x210] sm:$0xff]
        %v3245 = vld [vmem:[#allocation2 + $0x218] sm:$0xff]
        %v3246 = vld [vmem:[#allocation2 + $0x220] sm:$0xff]
        %v3247 = vld [vmem:[#allocation2 + $0x228] sm:$0xff]
        %v3248 = vld [vmem:[#allocation2 + $0x230] sm:$0xff]
        %v3249 = vld [vmem:[#allocation2 + $0x238] sm:$0xff]
        %v3250 = vld [vmem:[#allocation2 + $0x240] sm:$0xff]
        %v3251 = vld [vmem:[#allocation2 + $0x248] sm:$0xff]
        %v3252 = vld [vmem:[#allocation2 + $0x250] sm:$0xff]
        %v3253 = vld [vmem:[#allocation2 + $0x258] sm:$0xff]
        %v3254 = vld [vmem:[#allocation2 + $0x260] sm:$0xff]
        %v3255 = vld [vmem:[#allocation2 + $0x268] sm:$0xff]
        %v3256 = vld [vmem:[#allocation2 + $0x270] sm:$0xff]
        %v3257 = vld [vmem:[#allocation2 + $0x278] sm:$0xff]
        %v3258 = vld [vmem:[#allocation2 + $0x280] sm:$0xff]
        %v3259 = vld [vmem:[#allocation2 + $0x288] sm:$0xff]
        %v3260 = vld [vmem:[#allocation2 + $0x290] sm:$0xff]
        %v3261 = vld [vmem:[#allocation2 + $0x298] sm:$0xff]
        %v3262 = vld [vmem:[#allocation2 + $0x2a0] sm:$0xff]
        %v3263 = vld [vmem:[#allocation2 + $0x2a8] sm:$0xff]
        %v3264 = vld [vmem:[#allocation2 + $0x2b0] sm:$0xff]
        %v3265 = vld [vmem:[#allocation2 + $0x2b8] sm:$0xff]
        %v3266 = vld [vmem:[#allocation2 + $0x2c0] sm:$0xff]
        %v3267 = vld [vmem:[#allocation2 + $0x2c8] sm:$0xff]
        %v3268 = vld [vmem:[#allocation2 + $0x2d0] sm:$0xff]
        %v3269 = vld [vmem:[#allocation2 + $0x2d8] sm:$0xff]
        %v3270 = vld [vmem:[#allocation2 + $0x2e0] sm:$0xff]
        %v3271 = vld [vmem:[#allocation2 + $0x2e8] sm:$0xff]
        %v3272 = vld [vmem:[#allocation2 + $0x2f0] sm:$0xff]
        %v3273 = vld [vmem:[#allocation2 + $0x2f8] sm:$0xff]
        %v3274 = vld [vmem:[#allocation2 + $0x300] sm:$0xff]
        %v3275 = vld [vmem:[#allocation2 + $0x308] sm:$0xff]
        %v3276 = vld [vmem:[#allocation2 + $0x310] sm:$0xff]
        %v3277 = vld [vmem:[#allocation2 + $0x318] sm:$0xff]
        %v3278 = vld [vmem:[#allocation2 + $0x320] sm:$0xff]
        %v3279 = vld [vmem:[#allocation2 + $0x328] sm:$0xff]
        %v3280 = vld [vmem:[#allocation2 + $0x330] sm:$0xff]
        %v3281 = vld [vmem:[#allocation2 + $0x338] sm:$0xff]
        %v3282 = vld [vmem:[#allocation2 + $0x340] sm:$0xff]
        %v3283 = vld [vmem:[#allocation2 + $0x348] sm:$0xff]
        %v3284 = vld [vmem:[#allocation2 + $0x350] sm:$0xff]
        %v3285 = vld [vmem:[#allocation2 + $0x358] sm:$0xff]
        %v3286 = vld [vmem:[#allocation2 + $0x360] sm:$0xff]
        %v3287 = vld [vmem:[#allocation2 + $0x368] sm:$0xff]
        %v3288 = vld [vmem:[#allocation2 + $0x370] sm:$0xff]
        %v3289 = vld [vmem:[#allocation2 + $0x378] sm:$0xff]
        %v3290 = vld [vmem:[#allocation2 + $0x380] sm:$0xff]
        %v3291 = vld [vmem:[#allocation2 + $0x388] sm:$0xff]
        %v3292 = vld [vmem:[#allocation2 + $0x390] sm:$0xff]
        %v3293 = vld [vmem:[#allocation2 + $0x398] sm:$0xff]
        %v3294 = vld [vmem:[#allocation2 + $0x3a0] sm:$0xff]
        %v3295 = vld [vmem:[#allocation2 + $0x3a8] sm:$0xff]
        %v3296 = vld [vmem:[#allocation2 + $0x3b0] sm:$0xff]
        %v3297 = vld [vmem:[#allocation2 + $0x3b8] sm:$0xff]
        %v3298 = vld [vmem:[#allocation2 + $0x3c0] sm:$0xff]
        %v3299 = vld [vmem:[#allocation2 + $0x3c8] sm:$0xff]
        %v3300 = vld [vmem:[#allocation2 + $0x3d0] sm:$0xff]
        %v3301 = vld [vmem:[#allocation2 + $0x3d8] sm:$0xff]
        %v3302 = vld [vmem:[#allocation2 + $0x3e0] sm:$0xff]
        %v3303 = vld [vmem:[#allocation2 + $0x3e8] sm:$0xff]
        %v3304 = vld [vmem:[#allocation2 + $0x3f0] sm:$0xff]
        %v3305 = vld [vmem:[#allocation2 + $0x3f8] sm:$0xff]
        %v3306 = vld [vmem:[#allocation2 + $0x400] sm:$0xff]
        %v3307 = vld [vmem:[#allocation2 + $0x408] sm:$0xff]
        %v3308 = vld [vmem:[#allocation2 + $0x410] sm:$0xff]
        %v3309 = vld [vmem:[#allocation2 + $0x418] sm:$0xff]
        %v3310 = vld [vmem:[#allocation2 + $0x420] sm:$0xff]
        %v3311 = vld [vmem:[#allocation2 + $0x428] sm:$0xff]
        %v3312 = vld [vmem:[#allocation2 + $0x430] sm:$0xff]
        %v3313 = vld [vmem:[#allocation2 + $0x438] sm:$0xff]
        %v3314 = vld [vmem:[#allocation2 + $0x440] sm:$0xff]
        %v3315 = vld [vmem:[#allocation2 + $0x448] sm:$0xff]
        %v3316 = vld [vmem:[#allocation2 + $0x450] sm:$0xff]
        %v3317 = vld [vmem:[#allocation2 + $0x458] sm:$0xff]
        %v3318 = vld [vmem:[#allocation2 + $0x460] sm:$0xff]
        %v3319 = vld [vmem:[#allocation2 + $0x468] sm:$0xff]
        %v3320 = vld [vmem:[#allocation2 + $0x470] sm:$0xff]
        %v3321 = vld [vmem:[#allocation2 + $0x478] sm:$0xff]
        %v3322 = vld [vmem:[#allocation2 + $0x480] sm:$0xff]
        %v3323 = vld [vmem:[#allocation2 + $0x488] sm:$0xff]
        %v3324 = vld [vmem:[#allocation2 + $0x490] sm:$0xff]
        %v3325 = vld [vmem:[#allocation2 + $0x498] sm:$0xff]
        %v3326 = vld [vmem:[#allocation2 + $0x4a0] sm:$0xff]
        %v3327 = vld [vmem:[#allocation2 + $0x4a8] sm:$0xff]
        %v3328 = vld [vmem:[#allocation2 + $0x4b0] sm:$0xff]
        %v3329 = vld [vmem:[#allocation2 + $0x4b8] sm:$0xff]
        %v3330 = vld [vmem:[#allocation2 + $0x4c0] sm:$0xff]
        %v3331 = vld [vmem:[#allocation2 + $0x4c8] sm:$0xff]
        %v3332 = vld [vmem:[#allocation2 + $0x4d0] sm:$0xff]
        %v3333 = vld [vmem:[#allocation2 + $0x4d8] sm:$0xff]
        %v3334 = vld [vmem:[#allocation2 + $0x4e0] sm:$0xff]
        %v3335 = vld [vmem:[#allocation2 + $0x4e8] sm:$0xff]
        %v3336 = vld [vmem:[#allocation2 + $0x4f0] sm:$0xff]
        %v3337 = vld [vmem:[#allocation2 + $0x4f8] sm:$0xff]
        %v3338 = vld [vmem:[%s9] sm:$0xff]
        %v3339 = vld [vmem:[%s9 + $0x8] sm:$0x3]
        %v3342 = vperm.slane %v3338, 0
        %v3343 = vperm.slane %v3338, 1
        %v3344 = vperm.slane %v3338, 2
        %v3345 = vperm.slane %v3338, 3
        %v3346 = vperm.slane %v3338, 4
        %v3347 = vperm.slane %v3338, 5
        %v3348 = vperm.slane %v3338, 6
        %v3349 = vperm.slane %v3338, 7
        %v3350 = vperm.slane %v3339, 0
        %v3351 = vperm.slane %v3339, 1
        %v3522 = vunpack.c.l.b16 %v3178
        %v3523 = vunpack.c.h.b16 %v3178
        %v3524 = vunpack.c.l.b16 %v3179
        %v3525 = vunpack.c.h.b16 %v3179
        %v3526 = vunpack.c.l.b16 %v3180
        %v3527 = vunpack.c.h.b16 %v3180
        %v3528 = vunpack.c.l.b16 %v3181
        %v3529 = vunpack.c.h.b16 %v3181
        %v3530 = vunpack.c.l.b16 %v3182
        %v3531 = vunpack.c.h.b16 %v3182
        %v3532 = vunpack.c.l.b16 %v3183
        %v3533 = vunpack.c.h.b16 %v3183
        %v3534 = vunpack.c.l.b16 %v3184
        %v3535 = vunpack.c.h.b16 %v3184
        %v3536 = vunpack.c.l.b16 %v3185
        %v3537 = vunpack.c.h.b16 %v3185
        %v3538 = vunpack.c.l.b16 %v3186
        %v3539 = vunpack.c.h.b16 %v3186
        %v3540 = vunpack.c.l.b16 %v3187
        %v3541 = vunpack.c.h.b16 %v3187
        %v3542 = vunpack.c.l.b16 %v3188
        %v3543 = vunpack.c.h.b16 %v3188
        %v3544 = vunpack.c.l.b16 %v3189
        %v3545 = vunpack.c.h.b16 %v3189
        %v3546 = vunpack.c.l.b16 %v3190
        %v3547 = vunpack.c.h.b16 %v3190
        %v3548 = vunpack.c.l.b16 %v3191
        %v3549 = vunpack.c.h.b16 %v3191
        %v3550 = vunpack.c.l.b16 %v3192
        %v3551 = vunpack.c.h.b16 %v3192
        %v3552 = vunpack.c.l.b16 %v3193
        %v3553 = vunpack.c.h.b16 %v3193
        %v3554 = vunpack.c.l.b16 %v3194
        %v3555 = vunpack.c.h.b16 %v3194
        %v3556 = vunpack.c.l.b16 %v3195
        %v3557 = vunpack.c.h.b16 %v3195
        %v3558 = vunpack.c.l.b16 %v3196
        %v3559 = vunpack.c.h.b16 %v3196
        %v3560 = vunpack.c.l.b16 %v3197
        %v3561 = vunpack.c.h.b16 %v3197
        %v3562 = vunpack.c.l.b16 %v3198
        %v3563 = vunpack.c.h.b16 %v3198
        %v3564 = vunpack.c.l.b16 %v3199
        %v3565 = vunpack.c.h.b16 %v3199
        %v3566 = vunpack.c.l.b16 %v3200
        %v3567 = vunpack.c.h.b16 %v3200
        %v3568 = vunpack.c.l.b16 %v3201
        %v3569 = vunpack.c.h.b16 %v3201
        %v3570 = vunpack.c.l.b16 %v3202
        %v3571 = vunpack.c.h.b16 %v3202
        %v3572 = vunpack.c.l.b16 %v3203
        %v3573 = vunpack.c.h.b16 %v3203
        %v3574 = vunpack.c.l.b16 %v3204
        %v3575 = vunpack.c.h.b16 %v3204
        %v3576 = vunpack.c.l.b16 %v3205
        %v3577 = vunpack.c.h.b16 %v3205
        %v3578 = vunpack.c.l.b16 %v3206
        %v3579 = vunpack.c.h.b16 %v3206
        %v3580 = vunpack.c.l.b16 %v3207
        %v3581 = vunpack.c.h.b16 %v3207
        %v3582 = vunpack.c.l.b16 %v3208
        %v3583 = vunpack.c.h.b16 %v3208
        %v3584 = vunpack.c.l.b16 %v3209
        %v3585 = vunpack.c.h.b16 %v3209
        %v3586 = vunpack.c.l.b16 %v3210
        %v3587 = vunpack.c.h.b16 %v3210
        %v3588 = vunpack.c.l.b16 %v3211
        %v3589 = vunpack.c.h.b16 %v3211
        %v3590 = vunpack.c.l.b16 %v3212
        %v3591 = vunpack.c.h.b16 %v3212
        %v3592 = vunpack.c.l.b16 %v3213
        %v3593 = vunpack.c.h.b16 %v3213
        %v3594 = vunpack.c.l.b16 %v3214
        %v3595 = vunpack.c.h.b16 %v3214
        %v3596 = vunpack.c.l.b16 %v3215
        %v3597 = vunpack.c.h.b16 %v3215
        %v3598 = vunpack.c.l.b16 %v3216
        %v3599 = vunpack.c.h.b16 %v3216
        %v3600 = vunpack.c.l.b16 %v3217
        %v3601 = vunpack.c.h.b16 %v3217
        %v3602 = vunpack.c.l.b16 %v3218
        %v3603 = vunpack.c.h.b16 %v3218
        %v3604 = vunpack.c.l.b16 %v3219
        %v3605 = vunpack.c.h.b16 %v3219
        %v3606 = vunpack.c.l.b16 %v3220
        %v3607 = vunpack.c.h.b16 %v3220
        %v3608 = vunpack.c.l.b16 %v3221
        %v3609 = vunpack.c.h.b16 %v3221
        %v3610 = vunpack.c.l.b16 %v3222
        %v3611 = vunpack.c.h.b16 %v3222
        %v3612 = vunpack.c.l.b16 %v3223
        %v3613 = vunpack.c.h.b16 %v3223
        %v3614 = vunpack.c.l.b16 %v3224
        %v3615 = vunpack.c.h.b16 %v3224
        %v3616 = vunpack.c.l.b16 %v3225
        %v3617 = vunpack.c.h.b16 %v3225
        %v3618 = vunpack.c.l.b16 %v3226
        %v3619 = vunpack.c.h.b16 %v3226
        %v3620 = vunpack.c.l.b16 %v3227
        %v3621 = vunpack.c.h.b16 %v3227
        %v3622 = vunpack.c.l.b16 %v3228
        %v3623 = vunpack.c.h.b16 %v3228
        %v3624 = vunpack.c.l.b16 %v3229
        %v3625 = vunpack.c.h.b16 %v3229
        %v3626 = vunpack.c.l.b16 %v3230
        %v3627 = vunpack.c.h.b16 %v3230
        %v3628 = vunpack.c.l.b16 %v3231
        %v3629 = vunpack.c.h.b16 %v3231
        %v3630 = vunpack.c.l.b16 %v3232
        %v3631 = vunpack.c.h.b16 %v3232
        %v3632 = vunpack.c.l.b16 %v3233
        %v3633 = vunpack.c.h.b16 %v3233
        %v3634 = vunpack.c.l.b16 %v3234
        %v3635 = vunpack.c.h.b16 %v3234
        %v3636 = vunpack.c.l.b16 %v3235
        %v3637 = vunpack.c.h.b16 %v3235
        %v3638 = vunpack.c.l.b16 %v3236
        %v3639 = vunpack.c.h.b16 %v3236
        %v3640 = vunpack.c.l.b16 %v3237
        %v3641 = vunpack.c.h.b16 %v3237
        %v3642 = vunpack.c.l.b16 %v3238
        %v3643 = vunpack.c.h.b16 %v3238
        %v3644 = vunpack.c.l.b16 %v3239
        %v3645 = vunpack.c.h.b16 %v3239
        %v3646 = vunpack.c.l.b16 %v3240
        %v3647 = vunpack.c.h.b16 %v3240
        %v3648 = vunpack.c.l.b16 %v3241
        %v3649 = vunpack.c.h.b16 %v3241
        %v3650 = vunpack.c.l.b16 %v3242
        %v3651 = vunpack.c.h.b16 %v3242
        %v3652 = vunpack.c.l.b16 %v3243
        %v3653 = vunpack.c.h.b16 %v3243
        %v3654 = vunpack.c.l.b16 %v3244
        %v3655 = vunpack.c.h.b16 %v3244
        %v3656 = vunpack.c.l.b16 %v3245
        %v3657 = vunpack.c.h.b16 %v3245
        %v3658 = vunpack.c.l.b16 %v3246
        %v3659 = vunpack.c.h.b16 %v3246
        %v3660 = vunpack.c.l.b16 %v3247
        %v3661 = vunpack.c.h.b16 %v3247
        %v3662 = vunpack.c.l.b16 %v3248
        %v3663 = vunpack.c.h.b16 %v3248
        %v3664 = vunpack.c.l.b16 %v3249
        %v3665 = vunpack.c.h.b16 %v3249
        %v3666 = vunpack.c.l.b16 %v3250
        %v3667 = vunpack.c.h.b16 %v3250
        %v3668 = vunpack.c.l.b16 %v3251
        %v3669 = vunpack.c.h.b16 %v3251
        %v3670 = vunpack.c.l.b16 %v3252
        %v3671 = vunpack.c.h.b16 %v3252
        %v3672 = vunpack.c.l.b16 %v3253
        %v3673 = vunpack.c.h.b16 %v3253
        %v3674 = vunpack.c.l.b16 %v3254
        %v3675 = vunpack.c.h.b16 %v3254
        %v3676 = vunpack.c.l.b16 %v3255
        %v3677 = vunpack.c.h.b16 %v3255
        %v3678 = vunpack.c.l.b16 %v3256
        %v3679 = vunpack.c.h.b16 %v3256
        %v3680 = vunpack.c.l.b16 %v3257
        %v3681 = vunpack.c.h.b16 %v3257
        %v3682 = vunpack.c.l.b16 %v3258
        %v3683 = vunpack.c.h.b16 %v3258
        %v3684 = vunpack.c.l.b16 %v3259
        %v3685 = vunpack.c.h.b16 %v3259
        %v3686 = vunpack.c.l.b16 %v3260
        %v3687 = vunpack.c.h.b16 %v3260
        %v3688 = vunpack.c.l.b16 %v3261
        %v3689 = vunpack.c.h.b16 %v3261
        %v3690 = vunpack.c.l.b16 %v3262
        %v3691 = vunpack.c.h.b16 %v3262
        %v3692 = vunpack.c.l.b16 %v3263
        %v3693 = vunpack.c.h.b16 %v3263
        %v3694 = vunpack.c.l.b16 %v3264
        %v3695 = vunpack.c.h.b16 %v3264
        %v3696 = vunpack.c.l.b16 %v3265
        %v3697 = vunpack.c.h.b16 %v3265
        %v3698 = vunpack.c.l.b16 %v3266
        %v3699 = vunpack.c.h.b16 %v3266
        %v3700 = vunpack.c.l.b16 %v3267
        %v3701 = vunpack.c.h.b16 %v3267
        %v3702 = vunpack.c.l.b16 %v3268
        %v3703 = vunpack.c.h.b16 %v3268
        %v3704 = vunpack.c.l.b16 %v3269
        %v3705 = vunpack.c.h.b16 %v3269
        %v3706 = vunpack.c.l.b16 %v3270
        %v3707 = vunpack.c.h.b16 %v3270
        %v3708 = vunpack.c.l.b16 %v3271
        %v3709 = vunpack.c.h.b16 %v3271
        %v3710 = vunpack.c.l.b16 %v3272
        %v3711 = vunpack.c.h.b16 %v3272
        %v3712 = vunpack.c.l.b16 %v3273
        %v3713 = vunpack.c.h.b16 %v3273
        %v3714 = vunpack.c.l.b16 %v3274
        %v3715 = vunpack.c.h.b16 %v3274
        %v3716 = vunpack.c.l.b16 %v3275
        %v3717 = vunpack.c.h.b16 %v3275
        %v3718 = vunpack.c.l.b16 %v3276
        %v3719 = vunpack.c.h.b16 %v3276
        %v3720 = vunpack.c.l.b16 %v3277
        %v3721 = vunpack.c.h.b16 %v3277
        %v3722 = vunpack.c.l.b16 %v3278
        %v3723 = vunpack.c.h.b16 %v3278
        %v3724 = vunpack.c.l.b16 %v3279
        %v3725 = vunpack.c.h.b16 %v3279
        %v3726 = vunpack.c.l.b16 %v3280
        %v3727 = vunpack.c.h.b16 %v3280
        %v3728 = vunpack.c.l.b16 %v3281
        %v3729 = vunpack.c.h.b16 %v3281
        %v3730 = vunpack.c.l.b16 %v3282
        %v3731 = vunpack.c.h.b16 %v3282
        %v3732 = vunpack.c.l.b16 %v3283
        %v3733 = vunpack.c.h.b16 %v3283
        %v3734 = vunpack.c.l.b16 %v3284
        %v3735 = vunpack.c.h.b16 %v3284
        %v3736 = vunpack.c.l.b16 %v3285
        %v3737 = vunpack.c.h.b16 %v3285
        %v3738 = vunpack.c.l.b16 %v3286
        %v3739 = vunpack.c.h.b16 %v3286
        %v3740 = vunpack.c.l.b16 %v3287
        %v3741 = vunpack.c.h.b16 %v3287
        %v3742 = vunpack.c.l.b16 %v3288
        %v3743 = vunpack.c.h.b16 %v3288
        %v3744 = vunpack.c.l.b16 %v3289
        %v3745 = vunpack.c.h.b16 %v3289
        %v3746 = vunpack.c.l.b16 %v3290
        %v3747 = vunpack.c.h.b16 %v3290
        %v3748 = vunpack.c.l.b16 %v3291
        %v3749 = vunpack.c.h.b16 %v3291
        %v3750 = vunpack.c.l.b16 %v3292
        %v3751 = vunpack.c.h.b16 %v3292
        %v3752 = vunpack.c.l.b16 %v3293
        %v3753 = vunpack.c.h.b16 %v3293
        %v3754 = vunpack.c.l.b16 %v3294
        %v3755 = vunpack.c.h.b16 %v3294
        %v3756 = vunpack.c.l.b16 %v3295
        %v3757 = vunpack.c.h.b16 %v3295
        %v3758 = vunpack.c.l.b16 %v3296
        %v3759 = vunpack.c.h.b16 %v3296
        %v3760 = vunpack.c.l.b16 %v3297
        %v3761 = vunpack.c.h.b16 %v3297
        %v3762 = vunpack.c.l.b16 %v3298
        %v3763 = vunpack.c.h.b16 %v3298
        %v3764 = vunpack.c.l.b16 %v3299
        %v3765 = vunpack.c.h.b16 %v3299
        %v3766 = vunpack.c.l.b16 %v3300
        %v3767 = vunpack.c.h.b16 %v3300
        %v3768 = vunpack.c.l.b16 %v3301
        %v3769 = vunpack.c.h.b16 %v3301
        %v3770 = vunpack.c.l.b16 %v3302
        %v3771 = vunpack.c.h.b16 %v3302
        %v3772 = vunpack.c.l.b16 %v3303
        %v3773 = vunpack.c.h.b16 %v3303
        %v3774 = vunpack.c.l.b16 %v3304
        %v3775 = vunpack.c.h.b16 %v3304
        %v3776 = vunpack.c.l.b16 %v3305
        %v3777 = vunpack.c.h.b16 %v3305
        %v3778 = vunpack.c.l.b16 %v3306
        %v3779 = vunpack.c.h.b16 %v3306
        %v3780 = vunpack.c.l.b16 %v3307
        %v3781 = vunpack.c.h.b16 %v3307
        %v3782 = vunpack.c.l.b16 %v3308
        %v3783 = vunpack.c.h.b16 %v3308
        %v3784 = vunpack.c.l.b16 %v3309
        %v3785 = vunpack.c.h.b16 %v3309
        %v3786 = vunpack.c.l.b16 %v3310
        %v3787 = vunpack.c.h.b16 %v3310
        %v3788 = vunpack.c.l.b16 %v3311
        %v3789 = vunpack.c.h.b16 %v3311
        %v3790 = vunpack.c.l.b16 %v3312
        %v3791 = vunpack.c.h.b16 %v3312
        %v3792 = vunpack.c.l.b16 %v3313
        %v3793 = vunpack.c.h.b16 %v3313
        %v3794 = vunpack.c.l.b16 %v3314
        %v3795 = vunpack.c.h.b16 %v3314
        %v3796 = vunpack.c.l.b16 %v3315
        %v3797 = vunpack.c.h.b16 %v3315
        %v3798 = vunpack.c.l.b16 %v3316
        %v3799 = vunpack.c.h.b16 %v3316
        %v3800 = vunpack.c.l.b16 %v3317
        %v3801 = vunpack.c.h.b16 %v3317
        %v3802 = vunpack.c.l.b16 %v3318
        %v3803 = vunpack.c.h.b16 %v3318
        %v3804 = vunpack.c.l.b16 %v3319
        %v3805 = vunpack.c.h.b16 %v3319
        %v3806 = vunpack.c.l.b16 %v3320
        %v3807 = vunpack.c.h.b16 %v3320
        %v3808 = vunpack.c.l.b16 %v3321
        %v3809 = vunpack.c.h.b16 %v3321
        %v3810 = vunpack.c.l.b16 %v3322
        %v3811 = vunpack.c.h.b16 %v3322
        %v3812 = vunpack.c.l.b16 %v3323
        %v3813 = vunpack.c.h.b16 %v3323
        %v3814 = vunpack.c.l.b16 %v3324
        %v3815 = vunpack.c.h.b16 %v3324
        %v3816 = vunpack.c.l.b16 %v3325
        %v3817 = vunpack.c.h.b16 %v3325
        %v3818 = vunpack.c.l.b16 %v3326
        %v3819 = vunpack.c.h.b16 %v3326
        %v3820 = vunpack.c.l.b16 %v3327
        %v3821 = vunpack.c.h.b16 %v3327
        %v3822 = vunpack.c.l.b16 %v3328
        %v3823 = vunpack.c.h.b16 %v3328
        %v3824 = vunpack.c.l.b16 %v3329
        %v3825 = vunpack.c.h.b16 %v3329
        %v3826 = vunpack.c.l.b16 %v3330
        %v3827 = vunpack.c.h.b16 %v3330
        %v3828 = vunpack.c.l.b16 %v3331
        %v3829 = vunpack.c.h.b16 %v3331
        %v3830 = vunpack.c.l.b16 %v3332
        %v3831 = vunpack.c.h.b16 %v3332
        %v3832 = vunpack.c.l.b16 %v3333
        %v3833 = vunpack.c.h.b16 %v3333
        %v3834 = vunpack.c.l.b16 %v3334
        %v3835 = vunpack.c.h.b16 %v3334
        %v3836 = vunpack.c.l.b16 %v3335
        %v3837 = vunpack.c.h.b16 %v3335
        %v3838 = vunpack.c.l.b16 %v3336
        %v3839 = vunpack.c.h.b16 %v3336
        %v3840 = vunpack.c.l.b16 %v3337
        %v3841 = vunpack.c.h.b16 %v3337
        %v3842 = vpack.c.b16 %v3532, %v3522
        %v3843 = vpack.c.b16 %v3533, %v3523
        %v3844 = vpack.c.b16 %v3534, %v3524
        %v3845 = vpack.c.b16 %v3535, %v3525
        %v3846 = vpack.c.b16 %v3536, %v3526
        %v3847 = vpack.c.b16 %v3537, %v3527
        %v3848 = vpack.c.b16 %v3538, %v3528
        %v3849 = vpack.c.b16 %v3539, %v3529
        %v3850 = vpack.c.b16 %v3540, %v3530
        %v3851 = vpack.c.b16 %v3541, %v3531
        %v3852 = vpack.c.b16 %v3552, %v3542
        %v3853 = vpack.c.b16 %v3553, %v3543
        %v3854 = vpack.c.b16 %v3554, %v3544
        %v3855 = vpack.c.b16 %v3555, %v3545
        %v3856 = vpack.c.b16 %v3556, %v3546
        %v3857 = vpack.c.b16 %v3557, %v3547
        %v3858 = vpack.c.b16 %v3558, %v3548
        %v3859 = vpack.c.b16 %v3559, %v3549
        %v3860 = vpack.c.b16 %v3560, %v3550
        %v3861 = vpack.c.b16 %v3561, %v3551
        %v3862 = vpack.c.b16 %v3572, %v3562
        %v3863 = vpack.c.b16 %v3573, %v3563
        %v3864 = vpack.c.b16 %v3574, %v3564
        %v3865 = vpack.c.b16 %v3575, %v3565
        %v3866 = vpack.c.b16 %v3576, %v3566
        %v3867 = vpack.c.b16 %v3577, %v3567
        %v3868 = vpack.c.b16 %v3578, %v3568
        %v3869 = vpack.c.b16 %v3579, %v3569
        %v3870 = vpack.c.b16 %v3580, %v3570
        %v3871 = vpack.c.b16 %v3581, %v3571
        %v3872 = vpack.c.b16 %v3592, %v3582
        %v3873 = vpack.c.b16 %v3593, %v3583
        %v3874 = vpack.c.b16 %v3594, %v3584
        %v3875 = vpack.c.b16 %v3595, %v3585
        %v3876 = vpack.c.b16 %v3596, %v3586
        %v3877 = vpack.c.b16 %v3597, %v3587
        %v3878 = vpack.c.b16 %v3598, %v3588
        %v3879 = vpack.c.b16 %v3599, %v3589
        %v3880 = vpack.c.b16 %v3600, %v3590
        %v3881 = vpack.c.b16 %v3601, %v3591
        %v3882 = vpack.c.b16 %v3612, %v3602
        %v3883 = vpack.c.b16 %v3613, %v3603
        %v3884 = vpack.c.b16 %v3614, %v3604
        %v3885 = vpack.c.b16 %v3615, %v3605
        %v3886 = vpack.c.b16 %v3616, %v3606
        %v3887 = vpack.c.b16 %v3617, %v3607
        %v3888 = vpack.c.b16 %v3618, %v3608
        %v3889 = vpack.c.b16 %v3619, %v3609
        %v3890 = vpack.c.b16 %v3620, %v3610
        %v3891 = vpack.c.b16 %v3621, %v3611
        %v3892 = vpack.c.b16 %v3632, %v3622
        %v3893 = vpack.c.b16 %v3633, %v3623
        %v3894 = vpack.c.b16 %v3634, %v3624
        %v3895 = vpack.c.b16 %v3635, %v3625
        %v3896 = vpack.c.b16 %v3636, %v3626
        %v3897 = vpack.c.b16 %v3637, %v3627
        %v3898 = vpack.c.b16 %v3638, %v3628
        %v3899 = vpack.c.b16 %v3639, %v3629
        %v3900 = vpack.c.b16 %v3640, %v3630
        %v3901 = vpack.c.b16 %v3641, %v3631
        %v3902 = vpack.c.b16 %v3652, %v3642
        %v3903 = vpack.c.b16 %v3653, %v3643
        %v3904 = vpack.c.b16 %v3654, %v3644
        %v3905 = vpack.c.b16 %v3655, %v3645
        %v3906 = vpack.c.b16 %v3656, %v3646
        %v3907 = vpack.c.b16 %v3657, %v3647
        %v3908 = vpack.c.b16 %v3658, %v3648
        %v3909 = vpack.c.b16 %v3659, %v3649
        %v3910 = vpack.c.b16 %v3660, %v3650
        %v3911 = vpack.c.b16 %v3661, %v3651
        %v3912 = vpack.c.b16 %v3672, %v3662
        %v3913 = vpack.c.b16 %v3673, %v3663
        %v3914 = vpack.c.b16 %v3674, %v3664
        %v3915 = vpack.c.b16 %v3675, %v3665
        %v3916 = vpack.c.b16 %v3676, %v3666
        %v3917 = vpack.c.b16 %v3677, %v3667
        %v3918 = vpack.c.b16 %v3678, %v3668
        %v3919 = vpack.c.b16 %v3679, %v3669
        %v3920 = vpack.c.b16 %v3680, %v3670
        %v3921 = vpack.c.b16 %v3681, %v3671
        %v3922 = vpack.c.b16 %v3692, %v3682
        %v3923 = vpack.c.b16 %v3693, %v3683
        %v3924 = vpack.c.b16 %v3694, %v3684
        %v3925 = vpack.c.b16 %v3695, %v3685
        %v3926 = vpack.c.b16 %v3696, %v3686
        %v3927 = vpack.c.b16 %v3697, %v3687
        %v3928 = vpack.c.b16 %v3698, %v3688
        %v3929 = vpack.c.b16 %v3699, %v3689
        %v3930 = vpack.c.b16 %v3700, %v3690
        %v3931 = vpack.c.b16 %v3701, %v3691
        %v3932 = vpack.c.b16 %v3712, %v3702
        %v3933 = vpack.c.b16 %v3713, %v3703
        %v3934 = vpack.c.b16 %v3714, %v3704
        %v3935 = vpack.c.b16 %v3715, %v3705
        %v3936 = vpack.c.b16 %v3716, %v3706
        %v3937 = vpack.c.b16 %v3717, %v3707
        %v3938 = vpack.c.b16 %v3718, %v3708
        %v3939 = vpack.c.b16 %v3719, %v3709
        %v3940 = vpack.c.b16 %v3720, %v3710
        %v3941 = vpack.c.b16 %v3721, %v3711
        %v3942 = vpack.c.b16 %v3732, %v3722
        %v3943 = vpack.c.b16 %v3733, %v3723
        %v3944 = vpack.c.b16 %v3734, %v3724
        %v3945 = vpack.c.b16 %v3735, %v3725
        %v3946 = vpack.c.b16 %v3736, %v3726
        %v3947 = vpack.c.b16 %v3737, %v3727
        %v3948 = vpack.c.b16 %v3738, %v3728
        %v3949 = vpack.c.b16 %v3739, %v3729
        %v3950 = vpack.c.b16 %v3740, %v3730
        %v3951 = vpack.c.b16 %v3741, %v3731
        %v3952 = vpack.c.b16 %v3752, %v3742
        %v3953 = vpack.c.b16 %v3753, %v3743
        %v3954 = vpack.c.b16 %v3754, %v3744
        %v3955 = vpack.c.b16 %v3755, %v3745
        %v3956 = vpack.c.b16 %v3756, %v3746
        %v3957 = vpack.c.b16 %v3757, %v3747
        %v3958 = vpack.c.b16 %v3758, %v3748
        %v3959 = vpack.c.b16 %v3759, %v3749
        %v3960 = vpack.c.b16 %v3760, %v3750
        %v3961 = vpack.c.b16 %v3761, %v3751
        %v3962 = vpack.c.b16 %v3772, %v3762
        %v3963 = vpack.c.b16 %v3773, %v3763
        %v3964 = vpack.c.b16 %v3774, %v3764
        %v3965 = vpack.c.b16 %v3775, %v3765
        %v3966 = vpack.c.b16 %v3776, %v3766
        %v3967 = vpack.c.b16 %v3777, %v3767
        %v3968 = vpack.c.b16 %v3778, %v3768
        %v3969 = vpack.c.b16 %v3779, %v3769
        %v3970 = vpack.c.b16 %v3780, %v3770
        %v3971 = vpack.c.b16 %v3781, %v3771
        %v3972 = vpack.c.b16 %v3792, %v3782
        %v3973 = vpack.c.b16 %v3793, %v3783
        %v3974 = vpack.c.b16 %v3794, %v3784
        %v3975 = vpack.c.b16 %v3795, %v3785
        %v3976 = vpack.c.b16 %v3796, %v3786
        %v3977 = vpack.c.b16 %v3797, %v3787
        %v3978 = vpack.c.b16 %v3798, %v3788
        %v3979 = vpack.c.b16 %v3799, %v3789
        %v3980 = vpack.c.b16 %v3800, %v3790
        %v3981 = vpack.c.b16 %v3801, %v3791
        %v3982 = vpack.c.b16 %v3812, %v3802
        %v3983 = vpack.c.b16 %v3813, %v3803
        %v3984 = vpack.c.b16 %v3814, %v3804
        %v3985 = vpack.c.b16 %v3815, %v3805
        %v3986 = vpack.c.b16 %v3816, %v3806
        %v3987 = vpack.c.b16 %v3817, %v3807
        %v3988 = vpack.c.b16 %v3818, %v3808
        %v3989 = vpack.c.b16 %v3819, %v3809
        %v3990 = vpack.c.b16 %v3820, %v3810
        %v3991 = vpack.c.b16 %v3821, %v3811
        %v3992 = vpack.c.b16 %v3832, %v3822
        %v3993 = vpack.c.b16 %v3833, %v3823
        %v3994 = vpack.c.b16 %v3834, %v3824
        %v3995 = vpack.c.b16 %v3835, %v3825
        %v3996 = vpack.c.b16 %v3836, %v3826
        %v3997 = vpack.c.b16 %v3837, %v3827
        %v3998 = vpack.c.b16 %v3838, %v3828
        %v3999 = vpack.c.b16 %v3839, %v3829
        %v4000 = vpack.c.b16 %v3840, %v3830
        %v4001 = vpack.c.b16 %v3841, %v3831
        %4162 = vmatpush.bf16.msra.mxu0 %v3912
        %4163 = vmatpush.bf16.msra.mxu0 %v3902
        %4164 = vmatpush.bf16.msra.mxu0 %v3892
        %4165 = vmatpush.bf16.msra.mxu0 %v3882
        %4166 = vmatpush.bf16.msra.mxu0 %v3872
        %4167 = vmatpush.bf16.msra.mxu0 %v3862
        %4168 = vmatpush.bf16.msra.mxu0 %v3852
        %4169 = vmatpush.bf16.msra.mxu0 %v3842
        %4170 = vmatmul.bf16.gmra.mxu0 %v3176
        %v4171 = vpop.f32.mrf.mxu0
        %v4172 = vadd.f32 %v3342, %v4171
        %v4173 = vpop.f32.mrf.mxu0
        %4174 = vdwg.mxu0
        %4175 = vmatpush.bf16.msra.mxu0 %v3992
        %4176 = vmatpush.bf16.msra.mxu0 %v3982
        %4177 = vmatpush.bf16.msra.mxu0 %v3972
        %4178 = vmatpush.bf16.msra.mxu0 %v3962
        %4179 = vmatpush.bf16.msra.mxu0 %v3952
        %4180 = vmatpush.bf16.msra.mxu0 %v3942
        %4181 = vmatpush.bf16.msra.mxu0 %v3932
        %4182 = vmatpush.bf16.msra.mxu0 %v3922
        %4183 = vmatmul.bf16.gmra.mxu0 %v3177
        %v4184 = vpop.f32.mrf.mxu0
        %v4185 = vadd.f32 %v4172, %v4184
        %v4186 = vpop.f32.mrf.mxu0
        %4187 = vdwg.mxu0
        %4188 = vmatpush.bf16.msra.mxu0 %v3913
        %4189 = vmatpush.bf16.msra.mxu0 %v3903
        %4190 = vmatpush.bf16.msra.mxu0 %v3893
        %4191 = vmatpush.bf16.msra.mxu0 %v3883
        %4192 = vmatpush.bf16.msra.mxu0 %v3873
        %4193 = vmatpush.bf16.msra.mxu0 %v3863
        %4194 = vmatpush.bf16.msra.mxu0 %v3853
        %4195 = vmatpush.bf16.msra.mxu0 %v3843
        %4196 = vmatmul.bf16.gmra.mxu0 %v3176
        %v4197 = vpop.f32.mrf.mxu0
        %v4198 = vadd.f32 %v3343, %v4197
        %v4199 = vpop.f32.mrf.mxu0
        %4200 = vdwg.mxu0
        %4201 = vmatpush.bf16.msra.mxu0 %v3993
        %4202 = vmatpush.bf16.msra.mxu0 %v3983
        %4203 = vmatpush.bf16.msra.mxu0 %v3973
        %4204 = vmatpush.bf16.msra.mxu0 %v3963
        %4205 = vmatpush.bf16.msra.mxu0 %v3953
        %4206 = vmatpush.bf16.msra.mxu0 %v3943
        %4207 = vmatpush.bf16.msra.mxu0 %v3933
        %4208 = vmatpush.bf16.msra.mxu0 %v3923
        %4209 = vmatmul.bf16.gmra.mxu0 %v3177
        %v4210 = vpop.f32.mrf.mxu0
        %v4211 = vadd.f32 %v4198, %v4210
        %v4212 = vpop.f32.mrf.mxu0
        %4213 = vdwg.mxu0
        %4214 = vmatpush.bf16.msra.mxu0 %v3914
        %4215 = vmatpush.bf16.msra.mxu0 %v3904
        %4216 = vmatpush.bf16.msra.mxu0 %v3894
        %4217 = vmatpush.bf16.msra.mxu0 %v3884
        %4218 = vmatpush.bf16.msra.mxu0 %v3874
        %4219 = vmatpush.bf16.msra.mxu0 %v3864
        %4220 = vmatpush.bf16.msra.mxu0 %v3854
        %4221 = vmatpush.bf16.msra.mxu0 %v3844
        %4222 = vmatmul.bf16.gmra.mxu0 %v3176
        %v4223 = vpop.f32.mrf.mxu0
        %v4224 = vadd.f32 %v3344, %v4223
        %v4225 = vpop.f32.mrf.mxu0
        %4226 = vdwg.mxu0
        %4227 = vmatpush.bf16.msra.mxu0 %v3994
        %4228 = vmatpush.bf16.msra.mxu0 %v3984
        %4229 = vmatpush.bf16.msra.mxu0 %v3974
        %4230 = vmatpush.bf16.msra.mxu0 %v3964
        %4231 = vmatpush.bf16.msra.mxu0 %v3954
        %4232 = vmatpush.bf16.msra.mxu0 %v3944
        %4233 = vmatpush.bf16.msra.mxu0 %v3934
        %4234 = vmatpush.bf16.msra.mxu0 %v3924
        %4235 = vmatmul.bf16.gmra.mxu0 %v3177
        %v4236 = vpop.f32.mrf.mxu0
        %v4237 = vadd.f32 %v4224, %v4236
        %v4238 = vpop.f32.mrf.mxu0
        %4239 = vdwg.mxu0
        %4240 = vmatpush.bf16.msra.mxu0 %v3915
        %4241 = vmatpush.bf16.msra.mxu0 %v3905
        %4242 = vmatpush.bf16.msra.mxu0 %v3895
        %4243 = vmatpush.bf16.msra.mxu0 %v3885
        %4244 = vmatpush.bf16.msra.mxu0 %v3875
        %4245 = vmatpush.bf16.msra.mxu0 %v3865
        %4246 = vmatpush.bf16.msra.mxu0 %v3855
        %4247 = vmatpush.bf16.msra.mxu0 %v3845
        %4248 = vmatmul.bf16.gmra.mxu0 %v3176
        %v4249 = vpop.f32.mrf.mxu0
        %v4250 = vadd.f32 %v3345, %v4249
        %v4251 = vpop.f32.mrf.mxu0
        %4252 = vdwg.mxu0
        %4253 = vmatpush.bf16.msra.mxu0 %v3995
        %4254 = vmatpush.bf16.msra.mxu0 %v3985
        %4255 = vmatpush.bf16.msra.mxu0 %v3975
        %4256 = vmatpush.bf16.msra.mxu0 %v3965
        %4257 = vmatpush.bf16.msra.mxu0 %v3955
        %4258 = vmatpush.bf16.msra.mxu0 %v3945
        %4259 = vmatpush.bf16.msra.mxu0 %v3935
        %4260 = vmatpush.bf16.msra.mxu0 %v3925
        %4261 = vmatmul.bf16.gmra.mxu0 %v3177
        %v4262 = vpop.f32.mrf.mxu0
        %v4263 = vadd.f32 %v4250, %v4262
        %v4264 = vpop.f32.mrf.mxu0
        %4265 = vdwg.mxu0
        %4266 = vmatpush.bf16.msra.mxu0 %v3916
        %4267 = vmatpush.bf16.msra.mxu0 %v3906
        %4268 = vmatpush.bf16.msra.mxu0 %v3896
        %4269 = vmatpush.bf16.msra.mxu0 %v3886
        %4270 = vmatpush.bf16.msra.mxu0 %v3876
        %4271 = vmatpush.bf16.msra.mxu0 %v3866
        %4272 = vmatpush.bf16.msra.mxu0 %v3856
        %4273 = vmatpush.bf16.msra.mxu0 %v3846
        %4274 = vmatmul.bf16.gmra.mxu0 %v3176
        %v4275 = vpop.f32.mrf.mxu0
        %v4276 = vadd.f32 %v3346, %v4275
        %v4277 = vpop.f32.mrf.mxu0
        %4278 = vdwg.mxu0
        %4279 = vmatpush.bf16.msra.mxu0 %v3996
        %4280 = vmatpush.bf16.msra.mxu0 %v3986
        %4281 = vmatpush.bf16.msra.mxu0 %v3976
        %4282 = vmatpush.bf16.msra.mxu0 %v3966
        %4283 = vmatpush.bf16.msra.mxu0 %v3956
        %4284 = vmatpush.bf16.msra.mxu0 %v3946
        %4285 = vmatpush.bf16.msra.mxu0 %v3936
        %4286 = vmatpush.bf16.msra.mxu0 %v3926
        %4287 = vmatmul.bf16.gmra.mxu0 %v3177
        %v4288 = vpop.f32.mrf.mxu0
        %v4289 = vadd.f32 %v4276, %v4288
        %v4290 = vpop.f32.mrf.mxu0
        %4291 = vdwg.mxu0
        %4292 = vmatpush.bf16.msra.mxu0 %v3917
        %4293 = vmatpush.bf16.msra.mxu0 %v3907
        %4294 = vmatpush.bf16.msra.mxu0 %v3897
        %4295 = vmatpush.bf16.msra.mxu0 %v3887
        %4296 = vmatpush.bf16.msra.mxu0 %v3877
        %4297 = vmatpush.bf16.msra.mxu0 %v3867
        %4298 = vmatpush.bf16.msra.mxu0 %v3857
        %4299 = vmatpush.bf16.msra.mxu0 %v3847
        %4300 = vmatmul.bf16.gmra.mxu0 %v3176
        %v4301 = vpop.f32.mrf.mxu0
        %v4302 = vadd.f32 %v3347, %v4301
        %v4303 = vpop.f32.mrf.mxu0
        %4304 = vdwg.mxu0
        %4305 = vmatpush.bf16.msra.mxu0 %v3997
        %4306 = vmatpush.bf16.msra.mxu0 %v3987
        %4307 = vmatpush.bf16.msra.mxu0 %v3977
        %4308 = vmatpush.bf16.msra.mxu0 %v3967
        %4309 = vmatpush.bf16.msra.mxu0 %v3957
        %4310 = vmatpush.bf16.msra.mxu0 %v3947
        %4311 = vmatpush.bf16.msra.mxu0 %v3937
        %4312 = vmatpush.bf16.msra.mxu0 %v3927
        %4313 = vmatmul.bf16.gmra.mxu0 %v3177
        %v4314 = vpop.f32.mrf.mxu0
        %v4315 = vadd.f32 %v4302, %v4314
        %v4316 = vpop.f32.mrf.mxu0
        %4317 = vdwg.mxu0
        %4318 = vmatpush.bf16.msra.mxu0 %v3918
        %4319 = vmatpush.bf16.msra.mxu0 %v3908
        %4320 = vmatpush.bf16.msra.mxu0 %v3898
        %4321 = vmatpush.bf16.msra.mxu0 %v3888
        %4322 = vmatpush.bf16.msra.mxu0 %v3878
        %4323 = vmatpush.bf16.msra.mxu0 %v3868
        %4324 = vmatpush.bf16.msra.mxu0 %v3858
        %4325 = vmatpush.bf16.msra.mxu0 %v3848
        %4326 = vmatmul.bf16.gmra.mxu0 %v3176
        %v4327 = vpop.f32.mrf.mxu0
        %v4328 = vadd.f32 %v3348, %v4327
        %v4329 = vpop.f32.mrf.mxu0
        %4330 = vdwg.mxu0
        %4331 = vmatpush.bf16.msra.mxu0 %v3998
        %4332 = vmatpush.bf16.msra.mxu0 %v3988
        %4333 = vmatpush.bf16.msra.mxu0 %v3978
        %4334 = vmatpush.bf16.msra.mxu0 %v3968
        %4335 = vmatpush.bf16.msra.mxu0 %v3958
        %4336 = vmatpush.bf16.msra.mxu0 %v3948
        %4337 = vmatpush.bf16.msra.mxu0 %v3938
        %4338 = vmatpush.bf16.msra.mxu0 %v3928
        %4339 = vmatmul.bf16.gmra.mxu0 %v3177
        %v4340 = vpop.f32.mrf.mxu0
        %v4341 = vadd.f32 %v4328, %v4340
        %v4342 = vpop.f32.mrf.mxu0
        %4343 = vdwg.mxu0
        %4344 = vmatpush.bf16.msra.mxu0 %v3919
        %4345 = vmatpush.bf16.msra.mxu0 %v3909
        %4346 = vmatpush.bf16.msra.mxu0 %v3899
        %4347 = vmatpush.bf16.msra.mxu0 %v3889
        %4348 = vmatpush.bf16.msra.mxu0 %v3879
        %4349 = vmatpush.bf16.msra.mxu0 %v3869
        %4350 = vmatpush.bf16.msra.mxu0 %v3859
        %4351 = vmatpush.bf16.msra.mxu0 %v3849
        %4352 = vmatmul.bf16.gmra.mxu0 %v3176
        %v4353 = vpop.f32.mrf.mxu0
        %v4354 = vadd.f32 %v3349, %v4353
        %v4355 = vpop.f32.mrf.mxu0
        %4356 = vdwg.mxu0
        %4357 = vmatpush.bf16.msra.mxu0 %v3999
        %4358 = vmatpush.bf16.msra.mxu0 %v3989
        %4359 = vmatpush.bf16.msra.mxu0 %v3979
        %4360 = vmatpush.bf16.msra.mxu0 %v3969
        %4361 = vmatpush.bf16.msra.mxu0 %v3959
        %4362 = vmatpush.bf16.msra.mxu0 %v3949
        %4363 = vmatpush.bf16.msra.mxu0 %v3939
        %4364 = vmatpush.bf16.msra.mxu0 %v3929
        %4365 = vmatmul.bf16.gmra.mxu0 %v3177
        %v4366 = vpop.f32.mrf.mxu0
        %v4367 = vadd.f32 %v4354, %v4366
        %v4368 = vpop.f32.mrf.mxu0
        %4369 = vdwg.mxu0
        %4370 = vmatpush.bf16.msra.mxu0 %v3920
        %4371 = vmatpush.bf16.msra.mxu0 %v3910
        %4372 = vmatpush.bf16.msra.mxu0 %v3900
        %4373 = vmatpush.bf16.msra.mxu0 %v3890
        %4374 = vmatpush.bf16.msra.mxu0 %v3880
        %4375 = vmatpush.bf16.msra.mxu0 %v3870
        %4376 = vmatpush.bf16.msra.mxu0 %v3860
        %4377 = vmatpush.bf16.msra.mxu0 %v3850
        %4378 = vmatmul.bf16.gmra.mxu0 %v3176
        %v4379 = vpop.f32.mrf.mxu0
        %v4380 = vadd.f32 %v3350, %v4379
        %v4381 = vpop.f32.mrf.mxu0
        %4382 = vdwg.mxu0
        %4383 = vmatpush.bf16.msra.mxu0 %v4000
        %4384 = vmatpush.bf16.msra.mxu0 %v3990
        %4385 = vmatpush.bf16.msra.mxu0 %v3980
        %4386 = vmatpush.bf16.msra.mxu0 %v3970
        %4387 = vmatpush.bf16.msra.mxu0 %v3960
        %4388 = vmatpush.bf16.msra.mxu0 %v3950
        %4389 = vmatpush.bf16.msra.mxu0 %v3940
        %4390 = vmatpush.bf16.msra.mxu0 %v3930
        %4391 = vmatmul.bf16.gmra.mxu0 %v3177
        %v4392 = vpop.f32.mrf.mxu0
        %v4393 = vadd.f32 %v4380, %v4392
        %v4394 = vpop.f32.mrf.mxu0
        %4395 = vdwg.mxu0
        %4396 = vmatpush.bf16.msra.mxu0 %v3921
        %4397 = vmatpush.bf16.msra.mxu0 %v3911
        %4398 = vmatpush.bf16.msra.mxu0 %v3901
        %4399 = vmatpush.bf16.msra.mxu0 %v3891
        %4400 = vmatpush.bf16.msra.mxu0 %v3881
        %4401 = vmatpush.bf16.msra.mxu0 %v3871
        %4402 = vmatpush.bf16.msra.mxu0 %v3861
        %4403 = vmatpush.bf16.msra.mxu0 %v3851
        %4404 = vmatmul.bf16.gmra.mxu0 %v3176
        %v4405 = vpop.f32.mrf.mxu0
        %v4406 = vadd.f32 %v3351, %v4405
        %v4407 = vpop.f32.mrf.mxu0
        %4408 = vdwg.mxu0
        %4409 = vmatpush.bf16.msra.mxu0 %v4001
        %4410 = vmatpush.bf16.msra.mxu0 %v3991
        %4411 = vmatpush.bf16.msra.mxu0 %v3981
        %4412 = vmatpush.bf16.msra.mxu0 %v3971
        %4413 = vmatpush.bf16.msra.mxu0 %v3961
        %4414 = vmatpush.bf16.msra.mxu0 %v3951
        %4415 = vmatpush.bf16.msra.mxu0 %v3941
        %4416 = vmatpush.bf16.msra.mxu0 %v3931
        %4417 = vmatmul.bf16.gmra.mxu0 %v3177
        %v4418 = vpop.f32.mrf.mxu0
        %v4419 = vadd.f32 %v4406, %v4418
        %v4420 = vpop.f32.mrf.mxu0
        %4421 = vdwg.mxu0
        %v4422 = vmax.f32 %v4185, 0.0
        %v4423 = vmax.f32 %v4211, 0.0
        %v4424 = vmax.f32 %v4237, 0.0
        %v4425 = vmax.f32 %v4263, 0.0
        %v4426 = vmax.f32 %v4289, 0.0
        %v4427 = vmax.f32 %v4315, 0.0
        %v4428 = vmax.f32 %v4341, 0.0
        %v4429 = vmax.f32 %v4367, 0.0
        %v4430 = vmax.f32 %v4393, 0.0
        %v4431 = vmax.f32 %v4419, 0.0
        %v4432 = vld [vmem:[%s679] sm:$0xff]
        %v4433 = vpack.c.bf16 %v4432, %v4432
        %v4434 = vld [vmem:[%s10] sm:$0xf]
        %v4435 = vld [vmem:[%s10 + $0x4] sm:$0x1]
        %v4436 = vld [vmem:[%s20] sm:$0xff]
        %v4437 = vpack.c.bf16 %v4436, %v4436
        %v4438 = vld [vmem:[%s11] sm:$0xf]
        %v4439 = vld [vmem:[%s11 + $0x4] sm:$0xf]
        %v4440 = vld [vmem:[%s11 + $0x8] sm:$0xf]
        %v4441 = vld [vmem:[%s11 + $0xc] sm:$0xf]
        %v4442 = vld [vmem:[%s11 + $0x10] sm:$0xf]
        %v4443 = vld [vmem:[%s11 + $0x14] sm:$0xf]
        %v4444 = vld [vmem:[%s11 + $0x18] sm:$0xf]
        %v4445 = vld [vmem:[%s11 + $0x1c] sm:$0xf]
        %v4446 = vld [vmem:[%s11 + $0x20] sm:$0xf]
        %v4447 = vld [vmem:[%s11 + $0x24] sm:$0xf]
        %v4448 = vld [vmem:[%s11 + $0x28] sm:$0xf]
        %v4449 = vld [vmem:[%s11 + $0x2c] sm:$0xf]
        %v4450 = vld [vmem:[%s11 + $0x30] sm:$0xf]
        %v4451 = vld [vmem:[%s11 + $0x34] sm:$0xf]
        %v4452 = vld [vmem:[%s11 + $0x38] sm:$0xf]
        %v4453 = vld [vmem:[%s11 + $0x3c] sm:$0xf]
        %v4470 = vunpack.c.l.b16 %v4438
        %v4471 = vunpack.c.l.b16 %v4439
        %v4472 = vunpack.c.l.b16 %v4440
        %v4473 = vunpack.c.l.b16 %v4441
        %v4474 = vunpack.c.l.b16 %v4442
        %v4475 = vunpack.c.l.b16 %v4443
        %v4476 = vunpack.c.l.b16 %v4444
        %v4477 = vunpack.c.l.b16 %v4445
        %v4478 = vunpack.c.l.b16 %v4446
        %v4479 = vunpack.c.l.b16 %v4447
        %v4480 = vunpack.c.l.b16 %v4448
        %v4481 = vunpack.c.l.b16 %v4449
        %v4482 = vunpack.c.l.b16 %v4450
        %v4483 = vunpack.c.l.b16 %v4451
        %v4484 = vunpack.c.l.b16 %v4452
        %v4485 = vunpack.c.l.b16 %v4453
        %v4486 = vpack.c.b16 %v4471, %v4470
        %v4487 = vpack.c.b16 %v4473, %v4472
        %v4488 = vpack.c.b16 %v4475, %v4474
        %v4489 = vpack.c.b16 %v4477, %v4476
        %v4490 = vpack.c.b16 %v4479, %v4478
        %v4491 = vpack.c.b16 %v4481, %v4480
        %v4492 = vpack.c.b16 %v4483, %v4482
        %v4493 = vpack.c.b16 %v4485, %v4484
        %4502 = vmatpush.bf16.msra.mxu0 %v4493
        %4503 = vmatpush.bf16.msra.mxu0 %v4492
        %4504 = vmatpush.bf16.msra.mxu0 %v4491
        %4505 = vmatpush.bf16.msra.mxu0 %v4490
        %4506 = vmatpush.bf16.msra.mxu0 %v4489
        %4507 = vmatpush.bf16.msra.mxu0 %v4488
        %4508 = vmatpush.bf16.msra.mxu0 %v4487
        %4509 = vmatpush.bf16.msra.mxu0 %v4486
        %4510 = vmatmul.bf16.gmra.mxu0 %v4437
        %v4511 = vpop.f32.mrf.mxu0
        %v4512 = vadd.f32 0.0, %v4511
        %v4513 = vpop.f32.mrf.mxu0
        %4514 = vdwg.mxu0
        %v4517 = vunpack.c.l.b16 %v4434
        %v4518 = vunpack.c.l.b16 %v4435
        %v4519 = vpack.c.b16 %v4518, %v4517
        %vm4520 = vcmask 80896
        %v4522 = vsel %vm4520, %v4433, 0
        %vm4524 = vcmask 1044480
        %v4526 = vsel %vm4524, %v4519, 0
        %4528 = vmatpush.bf16.msra.mxu0 0
        %4529 = vmatpush.bf16.msra.mxu0 0
        %4530 = vmatpush.bf16.msra.mxu0 0
        %4531 = vmatpush.bf16.msra.mxu0 0
        %4532 = vmatpush.bf16.msra.mxu0 0
        %4533 = vmatpush.bf16.msra.mxu0 0
        %4534 = vmatpush.bf16.msra.mxu0 0
        %4535 = vmatpush.bf16.msra.mxu0 %v4526
        %4536 = vmatmul.bf16.gmra.mxu0 %v4522
        %v4537 = vpop.f32.mrf.mxu0
        %v4538 = vadd.f32 %v4512, %v4537
        %v4539 = vpop.f32.mrf.mxu0
        %4540 = vdwg.mxu0
        %v4541 = vld [vmem:[%s12] sm:$0x1]
        %v4543 = vperm.slane %v4541, 0
        %v4545 = vadd.f32 %v4538, %v4543
        %v4546 = vmax.f32 %v4545, 0.0
        %4547 = vst [vmem:[%s20] sm:$0xff] %v4546
        %v4548 = vpack.c.bf16 %v4422, %v4422
        %v4549 = vpack.c.bf16 %v4423, %v4423
        %v4550 = vpack.c.bf16 %v4424, %v4424
        %v4551 = vpack.c.bf16 %v4425, %v4425
        %v4552 = vpack.c.bf16 %v4426, %v4426
        %v4553 = vpack.c.bf16 %v4427, %v4427
        %v4554 = vpack.c.bf16 %v4428, %v4428
        %v4555 = vpack.c.bf16 %v4429, %v4429
        %v4556 = vpack.c.bf16 %v4430, %v4430
        %v4557 = vpack.c.bf16 %v4431, %v4431
        %v4558 = vld [vmem:[%s13] sm:$0xf]
        %v4559 = vld [vmem:[%s13 + $0x4] sm:$0xf]
        %v4560 = vld [vmem:[%s13 + $0x8] sm:$0xf]
        %v4561 = vld [vmem:[%s13 + $0xc] sm:$0xf]
        %v4562 = vld [vmem:[%s13 + $0x10] sm:$0xf]
        %v4563 = vld [vmem:[%s13 + $0x14] sm:$0xf]
        %v4564 = vld [vmem:[%s13 + $0x18] sm:$0xf]
        %v4565 = vld [vmem:[%s13 + $0x1c] sm:$0xf]
        %v4566 = vld [vmem:[%s13 + $0x20] sm:$0xf]
        %v4567 = vld [vmem:[%s13 + $0x24] sm:$0xf]
        %v4568 = vld [vmem:[%s13 + $0x28] sm:$0xf]
        %v4569 = vld [vmem:[%s13 + $0x2c] sm:$0xf]
        %v4570 = vld [vmem:[%s13 + $0x30] sm:$0xf]
        %v4571 = vld [vmem:[%s13 + $0x34] sm:$0xf]
        %v4572 = vld [vmem:[%s13 + $0x38] sm:$0xf]
        %v4573 = vld [vmem:[%s13 + $0x3c] sm:$0xf]
        %v4574 = vld [vmem:[%s13 + $0x40] sm:$0xf]
        %v4575 = vld [vmem:[%s13 + $0x44] sm:$0xf]
        %v4576 = vld [vmem:[%s13 + $0x48] sm:$0xf]
        %v4577 = vld [vmem:[%s13 + $0x4c] sm:$0xf]
        %v4578 = vld [vmem:[%s13 + $0x50] sm:$0xf]
        %v4579 = vld [vmem:[%s13 + $0x54] sm:$0xf]
        %v4580 = vld [vmem:[%s13 + $0x58] sm:$0xf]
        %v4581 = vld [vmem:[%s13 + $0x5c] sm:$0xf]
        %v4582 = vld [vmem:[%s13 + $0x60] sm:$0xf]
        %v4583 = vld [vmem:[%s13 + $0x64] sm:$0xf]
        %v4584 = vld [vmem:[%s13 + $0x68] sm:$0xf]
        %v4585 = vld [vmem:[%s13 + $0x6c] sm:$0xf]
        %v4586 = vld [vmem:[%s13 + $0x70] sm:$0xf]
        %v4587 = vld [vmem:[%s13 + $0x74] sm:$0xf]
        %v4588 = vld [vmem:[%s13 + $0x78] sm:$0xf]
        %v4589 = vld [vmem:[%s13 + $0x7c] sm:$0xf]
        %v4590 = vld [vmem:[%s13 + $0x80] sm:$0xf]
        %v4591 = vld [vmem:[%s13 + $0x84] sm:$0xf]
        %v4592 = vld [vmem:[%s13 + $0x88] sm:$0xf]
        %v4593 = vld [vmem:[%s13 + $0x8c] sm:$0xf]
        %v4594 = vld [vmem:[%s13 + $0x90] sm:$0xf]
        %v4595 = vld [vmem:[%s13 + $0x94] sm:$0xf]
        %v4596 = vld [vmem:[%s13 + $0x98] sm:$0xf]
        %v4597 = vld [vmem:[%s13 + $0x9c] sm:$0xf]
        %v4598 = vld [vmem:[%s13 + $0xa0] sm:$0xf]
        %v4599 = vld [vmem:[%s13 + $0xa4] sm:$0xf]
        %v4600 = vld [vmem:[%s13 + $0xa8] sm:$0xf]
        %v4601 = vld [vmem:[%s13 + $0xac] sm:$0xf]
        %v4602 = vld [vmem:[%s13 + $0xb0] sm:$0xf]
        %v4603 = vld [vmem:[%s13 + $0xb4] sm:$0xf]
        %v4604 = vld [vmem:[%s13 + $0xb8] sm:$0xf]
        %v4605 = vld [vmem:[%s13 + $0xbc] sm:$0xf]
        %v4606 = vld [vmem:[%s13 + $0xc0] sm:$0xf]
        %v4607 = vld [vmem:[%s13 + $0xc4] sm:$0xf]
        %v4608 = vld [vmem:[%s13 + $0xc8] sm:$0xf]
        %v4609 = vld [vmem:[%s13 + $0xcc] sm:$0xf]
        %v4610 = vld [vmem:[%s13 + $0xd0] sm:$0xf]
        %v4611 = vld [vmem:[%s13 + $0xd4] sm:$0xf]
        %v4612 = vld [vmem:[%s13 + $0xd8] sm:$0xf]
        %v4613 = vld [vmem:[%s13 + $0xdc] sm:$0xf]
        %v4614 = vld [vmem:[%s13 + $0xe0] sm:$0xf]
        %v4615 = vld [vmem:[%s13 + $0xe4] sm:$0xf]
        %v4616 = vld [vmem:[%s13 + $0xe8] sm:$0xf]
        %v4617 = vld [vmem:[%s13 + $0xec] sm:$0xf]
        %v4618 = vld [vmem:[%s13 + $0xf0] sm:$0xf]
        %v4619 = vld [vmem:[%s13 + $0xf4] sm:$0xf]
        %v4620 = vld [vmem:[%s13 + $0xf8] sm:$0xf]
        %v4621 = vld [vmem:[%s13 + $0xfc] sm:$0xf]
        %v4622 = vld [vmem:[%s13 + $0x100] sm:$0xf]
        %v4623 = vld [vmem:[%s13 + $0x104] sm:$0xf]
        %v4624 = vld [vmem:[%s13 + $0x108] sm:$0xf]
        %v4625 = vld [vmem:[%s13 + $0x10c] sm:$0xf]
        %v4626 = vld [vmem:[%s13 + $0x110] sm:$0xf]
        %v4627 = vld [vmem:[%s13 + $0x114] sm:$0xf]
        %v4628 = vld [vmem:[%s13 + $0x118] sm:$0xf]
        %v4629 = vld [vmem:[%s13 + $0x11c] sm:$0xf]
        %v4630 = vld [vmem:[%s13 + $0x120] sm:$0xf]
        %v4631 = vld [vmem:[%s13 + $0x124] sm:$0xf]
        %v4632 = vld [vmem:[%s13 + $0x128] sm:$0xf]
        %v4633 = vld [vmem:[%s13 + $0x12c] sm:$0xf]
        %v4634 = vld [vmem:[%s13 + $0x130] sm:$0xf]
        %v4635 = vld [vmem:[%s13 + $0x134] sm:$0xf]
        %v4636 = vld [vmem:[%s13 + $0x138] sm:$0xf]
        %v4637 = vld [vmem:[%s13 + $0x13c] sm:$0xf]
        %v4638 = vld [vmem:[%s13 + $0x140] sm:$0xf]
        %v4639 = vld [vmem:[%s13 + $0x144] sm:$0xf]
        %v4640 = vld [vmem:[%s13 + $0x148] sm:$0xf]
        %v4641 = vld [vmem:[%s13 + $0x14c] sm:$0xf]
        %v4642 = vld [vmem:[%s13 + $0x150] sm:$0xf]
        %v4643 = vld [vmem:[%s13 + $0x154] sm:$0xf]
        %v4644 = vld [vmem:[%s13 + $0x158] sm:$0xf]
        %v4645 = vld [vmem:[%s13 + $0x15c] sm:$0xf]
        %v4646 = vld [vmem:[%s13 + $0x160] sm:$0xf]
        %v4647 = vld [vmem:[%s13 + $0x164] sm:$0xf]
        %v4648 = vld [vmem:[%s13 + $0x168] sm:$0xf]
        %v4649 = vld [vmem:[%s13 + $0x16c] sm:$0xf]
        %v4650 = vld [vmem:[%s13 + $0x170] sm:$0xf]
        %v4651 = vld [vmem:[%s13 + $0x174] sm:$0xf]
        %v4652 = vld [vmem:[%s13 + $0x178] sm:$0xf]
        %v4653 = vld [vmem:[%s13 + $0x17c] sm:$0xf]
        %v4654 = vld [vmem:[%s13 + $0x180] sm:$0xf]
        %v4655 = vld [vmem:[%s13 + $0x184] sm:$0xf]
        %v4656 = vld [vmem:[%s13 + $0x188] sm:$0xf]
        %v4657 = vld [vmem:[%s13 + $0x18c] sm:$0xf]
        %v4658 = vld [vmem:[%s13 + $0x190] sm:$0xf]
        %v4659 = vld [vmem:[%s13 + $0x194] sm:$0xf]
        %v4660 = vld [vmem:[%s13 + $0x198] sm:$0xf]
        %v4661 = vld [vmem:[%s13 + $0x19c] sm:$0xf]
        %v4662 = vld [vmem:[%s13 + $0x1a0] sm:$0xf]
        %v4663 = vld [vmem:[%s13 + $0x1a4] sm:$0xf]
        %v4664 = vld [vmem:[%s13 + $0x1a8] sm:$0xf]
        %v4665 = vld [vmem:[%s13 + $0x1ac] sm:$0xf]
        %v4666 = vld [vmem:[%s13 + $0x1b0] sm:$0xf]
        %v4667 = vld [vmem:[%s13 + $0x1b4] sm:$0xf]
        %v4668 = vld [vmem:[%s13 + $0x1b8] sm:$0xf]
        %v4669 = vld [vmem:[%s13 + $0x1bc] sm:$0xf]
        %v4670 = vld [vmem:[%s13 + $0x1c0] sm:$0xf]
        %v4671 = vld [vmem:[%s13 + $0x1c4] sm:$0xf]
        %v4672 = vld [vmem:[%s13 + $0x1c8] sm:$0xf]
        %v4673 = vld [vmem:[%s13 + $0x1cc] sm:$0xf]
        %v4674 = vld [vmem:[%s13 + $0x1d0] sm:$0xf]
        %v4675 = vld [vmem:[%s13 + $0x1d4] sm:$0xf]
        %v4676 = vld [vmem:[%s13 + $0x1d8] sm:$0xf]
        %v4677 = vld [vmem:[%s13 + $0x1dc] sm:$0xf]
        %v4678 = vld [vmem:[%s13 + $0x1e0] sm:$0xf]
        %v4679 = vld [vmem:[%s13 + $0x1e4] sm:$0xf]
        %v4680 = vld [vmem:[%s13 + $0x1e8] sm:$0xf]
        %v4681 = vld [vmem:[%s13 + $0x1ec] sm:$0xf]
        %v4682 = vld [vmem:[%s13 + $0x1f0] sm:$0xf]
        %v4683 = vld [vmem:[%s13 + $0x1f4] sm:$0xf]
        %v4684 = vld [vmem:[%s13 + $0x1f8] sm:$0xf]
        %v4685 = vld [vmem:[%s13 + $0x1fc] sm:$0xf]
        %v4686 = vld [vmem:[%s13 + $0x200] sm:$0xf]
        %v4687 = vld [vmem:[%s13 + $0x204] sm:$0xf]
        %v4688 = vld [vmem:[%s13 + $0x208] sm:$0xf]
        %v4689 = vld [vmem:[%s13 + $0x20c] sm:$0xf]
        %v4690 = vld [vmem:[%s13 + $0x210] sm:$0xf]
        %v4691 = vld [vmem:[%s13 + $0x214] sm:$0xf]
        %v4692 = vld [vmem:[%s13 + $0x218] sm:$0xf]
        %v4693 = vld [vmem:[%s13 + $0x21c] sm:$0xf]
        %v4694 = vld [vmem:[%s13 + $0x220] sm:$0xf]
        %v4695 = vld [vmem:[%s13 + $0x224] sm:$0xf]
        %v4696 = vld [vmem:[%s13 + $0x228] sm:$0xf]
        %v4697 = vld [vmem:[%s13 + $0x22c] sm:$0xf]
        %v4698 = vld [vmem:[%s13 + $0x230] sm:$0xf]
        %v4699 = vld [vmem:[%s13 + $0x234] sm:$0xf]
        %v4700 = vld [vmem:[%s13 + $0x238] sm:$0xf]
        %v4701 = vld [vmem:[%s13 + $0x23c] sm:$0xf]
        %v4702 = vld [vmem:[%s13 + $0x240] sm:$0xf]
        %v4703 = vld [vmem:[%s13 + $0x244] sm:$0xf]
        %v4704 = vld [vmem:[%s13 + $0x248] sm:$0xf]
        %v4705 = vld [vmem:[%s13 + $0x24c] sm:$0xf]
        %v4706 = vld [vmem:[%s13 + $0x250] sm:$0xf]
        %v4707 = vld [vmem:[%s13 + $0x254] sm:$0xf]
        %v4708 = vld [vmem:[%s13 + $0x258] sm:$0xf]
        %v4709 = vld [vmem:[%s13 + $0x25c] sm:$0xf]
        %v4710 = vld [vmem:[%s13 + $0x260] sm:$0xf]
        %v4711 = vld [vmem:[%s13 + $0x264] sm:$0xf]
        %v4712 = vld [vmem:[%s13 + $0x268] sm:$0xf]
        %v4713 = vld [vmem:[%s13 + $0x26c] sm:$0xf]
        %v4714 = vld [vmem:[%s13 + $0x270] sm:$0xf]
        %v4715 = vld [vmem:[%s13 + $0x274] sm:$0xf]
        %v4716 = vld [vmem:[%s13 + $0x278] sm:$0xf]
        %v4717 = vld [vmem:[%s13 + $0x27c] sm:$0xf]
        %v4718 = vpack.c.bf16 %v4546, %v4546
        %v4719 = vld [vmem:[%s14] sm:$0xf]
        %v4720 = vld [vmem:[%s14 + $0x4] sm:$0xf]
        %v4721 = vld [vmem:[%s14 + $0x8] sm:$0xf]
        %v4722 = vld [vmem:[%s14 + $0xc] sm:$0xf]
        %v4723 = vld [vmem:[%s14 + $0x10] sm:$0xf]
        %v4724 = vld [vmem:[%s14 + $0x14] sm:$0xf]
        %v4725 = vld [vmem:[%s14 + $0x18] sm:$0xf]
        %v4726 = vld [vmem:[%s14 + $0x1c] sm:$0xf]
        %v4727 = vld [vmem:[%s14 + $0x20] sm:$0xf]
        %v4728 = vld [vmem:[%s14 + $0x24] sm:$0xf]
        %v4729 = vld [vmem:[%s14 + $0x28] sm:$0xf]
        %v4730 = vld [vmem:[%s14 + $0x2c] sm:$0xf]
        %v4731 = vld [vmem:[%s14 + $0x30] sm:$0xf]
        %v4732 = vld [vmem:[%s14 + $0x34] sm:$0xf]
        %v4733 = vld [vmem:[%s14 + $0x38] sm:$0xf]
        %v4734 = vld [vmem:[%s14 + $0x3c] sm:$0xf]
        %v4751 = vunpack.c.l.b16 %v4719
        %v4752 = vunpack.c.l.b16 %v4720
        %v4753 = vunpack.c.l.b16 %v4721
        %v4754 = vunpack.c.l.b16 %v4722
        %v4755 = vunpack.c.l.b16 %v4723
        %v4756 = vunpack.c.l.b16 %v4724
        %v4757 = vunpack.c.l.b16 %v4725
        %v4758 = vunpack.c.l.b16 %v4726
        %v4759 = vunpack.c.l.b16 %v4727
        %v4760 = vunpack.c.l.b16 %v4728
        %v4761 = vunpack.c.l.b16 %v4729
        %v4762 = vunpack.c.l.b16 %v4730
        %v4763 = vunpack.c.l.b16 %v4731
        %v4764 = vunpack.c.l.b16 %v4732
        %v4765 = vunpack.c.l.b16 %v4733
        %v4766 = vunpack.c.l.b16 %v4734
        %v4767 = vpack.c.b16 %v4752, %v4751
        %v4768 = vpack.c.b16 %v4754, %v4753
        %v4769 = vpack.c.b16 %v4756, %v4755
        %v4770 = vpack.c.b16 %v4758, %v4757
        %v4771 = vpack.c.b16 %v4760, %v4759
        %v4772 = vpack.c.b16 %v4762, %v4761
        %v4773 = vpack.c.b16 %v4764, %v4763
        %v4774 = vpack.c.b16 %v4766, %v4765
        %4783 = vmatpush.bf16.msra.mxu0 %v4774
        %4784 = vmatpush.bf16.msra.mxu0 %v4773
        %4785 = vmatpush.bf16.msra.mxu0 %v4772
        %4786 = vmatpush.bf16.msra.mxu0 %v4771
        %4787 = vmatpush.bf16.msra.mxu0 %v4770
        %4788 = vmatpush.bf16.msra.mxu0 %v4769
        %4789 = vmatpush.bf16.msra.mxu0 %v4768
        %4790 = vmatpush.bf16.msra.mxu0 %v4767
        %4791 = vmatmul.bf16.gmra.mxu0 %v4718
        %v4792 = vpop.f32.mrf.mxu0
        %v4793 = vadd.f32 0.0, %v4792
        %v4794 = vpop.f32.mrf.mxu0
        %4795 = vdwg.mxu0
        %v4956 = vunpack.c.l.b16 %v4558
        %v4957 = vunpack.c.l.b16 %v4559
        %v4958 = vunpack.c.l.b16 %v4560
        %v4959 = vunpack.c.l.b16 %v4561
        %v4960 = vunpack.c.l.b16 %v4562
        %v4961 = vunpack.c.l.b16 %v4563
        %v4962 = vunpack.c.l.b16 %v4564
        %v4963 = vunpack.c.l.b16 %v4565
        %v4964 = vunpack.c.l.b16 %v4566
        %v4965 = vunpack.c.l.b16 %v4567
        %v4966 = vunpack.c.l.b16 %v4568
        %v4967 = vunpack.c.l.b16 %v4569
        %v4968 = vunpack.c.l.b16 %v4570
        %v4969 = vunpack.c.l.b16 %v4571
        %v4970 = vunpack.c.l.b16 %v4572
        %v4971 = vunpack.c.l.b16 %v4573
        %v4972 = vunpack.c.l.b16 %v4574
        %v4973 = vunpack.c.l.b16 %v4575
        %v4974 = vunpack.c.l.b16 %v4576
        %v4975 = vunpack.c.l.b16 %v4577
        %v4976 = vunpack.c.l.b16 %v4578
        %v4977 = vunpack.c.l.b16 %v4579
        %v4978 = vunpack.c.l.b16 %v4580
        %v4979 = vunpack.c.l.b16 %v4581
        %v4980 = vunpack.c.l.b16 %v4582
        %v4981 = vunpack.c.l.b16 %v4583
        %v4982 = vunpack.c.l.b16 %v4584
        %v4983 = vunpack.c.l.b16 %v4585
        %v4984 = vunpack.c.l.b16 %v4586
        %v4985 = vunpack.c.l.b16 %v4587
        %v4986 = vunpack.c.l.b16 %v4588
        %v4987 = vunpack.c.l.b16 %v4589
        %v4988 = vunpack.c.l.b16 %v4590
        %v4989 = vunpack.c.l.b16 %v4591
        %v4990 = vunpack.c.l.b16 %v4592
        %v4991 = vunpack.c.l.b16 %v4593
        %v4992 = vunpack.c.l.b16 %v4594
        %v4993 = vunpack.c.l.b16 %v4595
        %v4994 = vunpack.c.l.b16 %v4596
        %v4995 = vunpack.c.l.b16 %v4597
        %v4996 = vunpack.c.l.b16 %v4598
        %v4997 = vunpack.c.l.b16 %v4599
        %v4998 = vunpack.c.l.b16 %v4600
        %v4999 = vunpack.c.l.b16 %v4601
        %v5000 = vunpack.c.l.b16 %v4602
        %v5001 = vunpack.c.l.b16 %v4603
        %v5002 = vunpack.c.l.b16 %v4604
        %v5003 = vunpack.c.l.b16 %v4605
        %v5004 = vunpack.c.l.b16 %v4606
        %v5005 = vunpack.c.l.b16 %v4607
        %v5006 = vunpack.c.l.b16 %v4608
        %v5007 = vunpack.c.l.b16 %v4609
        %v5008 = vunpack.c.l.b16 %v4610
        %v5009 = vunpack.c.l.b16 %v4611
        %v5010 = vunpack.c.l.b16 %v4612
        %v5011 = vunpack.c.l.b16 %v4613
        %v5012 = vunpack.c.l.b16 %v4614
        %v5013 = vunpack.c.l.b16 %v4615
        %v5014 = vunpack.c.l.b16 %v4616
        %v5015 = vunpack.c.l.b16 %v4617
        %v5016 = vunpack.c.l.b16 %v4618
        %v5017 = vunpack.c.l.b16 %v4619
        %v5018 = vunpack.c.l.b16 %v4620
        %v5019 = vunpack.c.l.b16 %v4621
        %v5020 = vunpack.c.l.b16 %v4622
        %v5021 = vunpack.c.l.b16 %v4623
        %v5022 = vunpack.c.l.b16 %v4624
        %v5023 = vunpack.c.l.b16 %v4625
        %v5024 = vunpack.c.l.b16 %v4626
        %v5025 = vunpack.c.l.b16 %v4627
        %v5026 = vunpack.c.l.b16 %v4628
        %v5027 = vunpack.c.l.b16 %v4629
        %v5028 = vunpack.c.l.b16 %v4630
        %v5029 = vunpack.c.l.b16 %v4631
        %v5030 = vunpack.c.l.b16 %v4632
        %v5031 = vunpack.c.l.b16 %v4633
        %v5032 = vunpack.c.l.b16 %v4634
        %v5033 = vunpack.c.l.b16 %v4635
        %v5034 = vunpack.c.l.b16 %v4636
        %v5035 = vunpack.c.l.b16 %v4637
        %v5036 = vunpack.c.l.b16 %v4638
        %v5037 = vunpack.c.l.b16 %v4639
        %v5038 = vunpack.c.l.b16 %v4640
        %v5039 = vunpack.c.l.b16 %v4641
        %v5040 = vunpack.c.l.b16 %v4642
        %v5041 = vunpack.c.l.b16 %v4643
        %v5042 = vunpack.c.l.b16 %v4644
        %v5043 = vunpack.c.l.b16 %v4645
        %v5044 = vunpack.c.l.b16 %v4646
        %v5045 = vunpack.c.l.b16 %v4647
        %v5046 = vunpack.c.l.b16 %v4648
        %v5047 = vunpack.c.l.b16 %v4649
        %v5048 = vunpack.c.l.b16 %v4650
        %v5049 = vunpack.c.l.b16 %v4651
        %v5050 = vunpack.c.l.b16 %v4652
        %v5051 = vunpack.c.l.b16 %v4653
        %v5052 = vunpack.c.l.b16 %v4654
        %v5053 = vunpack.c.l.b16 %v4655
        %v5054 = vunpack.c.l.b16 %v4656
        %v5055 = vunpack.c.l.b16 %v4657
        %v5056 = vunpack.c.l.b16 %v4658
        %v5057 = vunpack.c.l.b16 %v4659
        %v5058 = vunpack.c.l.b16 %v4660
        %v5059 = vunpack.c.l.b16 %v4661
        %v5060 = vunpack.c.l.b16 %v4662
        %v5061 = vunpack.c.l.b16 %v4663
        %v5062 = vunpack.c.l.b16 %v4664
        %v5063 = vunpack.c.l.b16 %v4665
        %v5064 = vunpack.c.l.b16 %v4666
        %v5065 = vunpack.c.l.b16 %v4667
        %v5066 = vunpack.c.l.b16 %v4668
        %v5067 = vunpack.c.l.b16 %v4669
        %v5068 = vunpack.c.l.b16 %v4670
        %v5069 = vunpack.c.l.b16 %v4671
        %v5070 = vunpack.c.l.b16 %v4672
        %v5071 = vunpack.c.l.b16 %v4673
        %v5072 = vunpack.c.l.b16 %v4674
        %v5073 = vunpack.c.l.b16 %v4675
        %v5074 = vunpack.c.l.b16 %v4676
        %v5075 = vunpack.c.l.b16 %v4677
        %v5076 = vunpack.c.l.b16 %v4678
        %v5077 = vunpack.c.l.b16 %v4679
        %v5078 = vunpack.c.l.b16 %v4680
        %v5079 = vunpack.c.l.b16 %v4681
        %v5080 = vunpack.c.l.b16 %v4682
        %v5081 = vunpack.c.l.b16 %v4683
        %v5082 = vunpack.c.l.b16 %v4684
        %v5083 = vunpack.c.l.b16 %v4685
        %v5084 = vunpack.c.l.b16 %v4686
        %v5085 = vunpack.c.l.b16 %v4687
        %v5086 = vunpack.c.l.b16 %v4688
        %v5087 = vunpack.c.l.b16 %v4689
        %v5088 = vunpack.c.l.b16 %v4690
        %v5089 = vunpack.c.l.b16 %v4691
        %v5090 = vunpack.c.l.b16 %v4692
        %v5091 = vunpack.c.l.b16 %v4693
        %v5092 = vunpack.c.l.b16 %v4694
        %v5093 = vunpack.c.l.b16 %v4695
        %v5094 = vunpack.c.l.b16 %v4696
        %v5095 = vunpack.c.l.b16 %v4697
        %v5096 = vunpack.c.l.b16 %v4698
        %v5097 = vunpack.c.l.b16 %v4699
        %v5098 = vunpack.c.l.b16 %v4700
        %v5099 = vunpack.c.l.b16 %v4701
        %v5100 = vunpack.c.l.b16 %v4702
        %v5101 = vunpack.c.l.b16 %v4703
        %v5102 = vunpack.c.l.b16 %v4704
        %v5103 = vunpack.c.l.b16 %v4705
        %v5104 = vunpack.c.l.b16 %v4706
        %v5105 = vunpack.c.l.b16 %v4707
        %v5106 = vunpack.c.l.b16 %v4708
        %v5107 = vunpack.c.l.b16 %v4709
        %v5108 = vunpack.c.l.b16 %v4710
        %v5109 = vunpack.c.l.b16 %v4711
        %v5110 = vunpack.c.l.b16 %v4712
        %v5111 = vunpack.c.l.b16 %v4713
        %v5112 = vunpack.c.l.b16 %v4714
        %v5113 = vunpack.c.l.b16 %v4715
        %v5114 = vunpack.c.l.b16 %v4716
        %v5115 = vunpack.c.l.b16 %v4717
        %v5116 = vpack.c.b16 %v4957, %v4956
        %v5117 = vpack.c.b16 %v4959, %v4958
        %v5118 = vpack.c.b16 %v4961, %v4960
        %v5119 = vpack.c.b16 %v4963, %v4962
        %v5120 = vpack.c.b16 %v4965, %v4964
        %v5121 = vpack.c.b16 %v4967, %v4966
        %v5122 = vpack.c.b16 %v4969, %v4968
        %v5123 = vpack.c.b16 %v4971, %v4970
        %v5124 = vpack.c.b16 %v4973, %v4972
        %v5125 = vpack.c.b16 %v4975, %v4974
        %v5126 = vpack.c.b16 %v4977, %v4976
        %v5127 = vpack.c.b16 %v4979, %v4978
        %v5128 = vpack.c.b16 %v4981, %v4980
        %v5129 = vpack.c.b16 %v4983, %v4982
        %v5130 = vpack.c.b16 %v4985, %v4984
        %v5131 = vpack.c.b16 %v4987, %v4986
        %v5132 = vpack.c.b16 %v4989, %v4988
        %v5133 = vpack.c.b16 %v4991, %v4990
        %v5134 = vpack.c.b16 %v4993, %v4992
        %v5135 = vpack.c.b16 %v4995, %v4994
        %v5136 = vpack.c.b16 %v4997, %v4996
        %v5137 = vpack.c.b16 %v4999, %v4998
        %v5138 = vpack.c.b16 %v5001, %v5000
        %v5139 = vpack.c.b16 %v5003, %v5002
        %v5140 = vpack.c.b16 %v5005, %v5004
        %v5141 = vpack.c.b16 %v5007, %v5006
        %v5142 = vpack.c.b16 %v5009, %v5008
        %v5143 = vpack.c.b16 %v5011, %v5010
        %v5144 = vpack.c.b16 %v5013, %v5012
        %v5145 = vpack.c.b16 %v5015, %v5014
        %v5146 = vpack.c.b16 %v5017, %v5016
        %v5147 = vpack.c.b16 %v5019, %v5018
        %v5148 = vpack.c.b16 %v5021, %v5020
        %v5149 = vpack.c.b16 %v5023, %v5022
        %v5150 = vpack.c.b16 %v5025, %v5024
        %v5151 = vpack.c.b16 %v5027, %v5026
        %v5152 = vpack.c.b16 %v5029, %v5028
        %v5153 = vpack.c.b16 %v5031, %v5030
        %v5154 = vpack.c.b16 %v5033, %v5032
        %v5155 = vpack.c.b16 %v5035, %v5034
        %v5156 = vpack.c.b16 %v5037, %v5036
        %v5157 = vpack.c.b16 %v5039, %v5038
        %v5158 = vpack.c.b16 %v5041, %v5040
        %v5159 = vpack.c.b16 %v5043, %v5042
        %v5160 = vpack.c.b16 %v5045, %v5044
        %v5161 = vpack.c.b16 %v5047, %v5046
        %v5162 = vpack.c.b16 %v5049, %v5048
        %v5163 = vpack.c.b16 %v5051, %v5050
        %v5164 = vpack.c.b16 %v5053, %v5052
        %v5165 = vpack.c.b16 %v5055, %v5054
        %v5166 = vpack.c.b16 %v5057, %v5056
        %v5167 = vpack.c.b16 %v5059, %v5058
        %v5168 = vpack.c.b16 %v5061, %v5060
        %v5169 = vpack.c.b16 %v5063, %v5062
        %v5170 = vpack.c.b16 %v5065, %v5064
        %v5171 = vpack.c.b16 %v5067, %v5066
        %v5172 = vpack.c.b16 %v5069, %v5068
        %v5173 = vpack.c.b16 %v5071, %v5070
        %v5174 = vpack.c.b16 %v5073, %v5072
        %v5175 = vpack.c.b16 %v5075, %v5074
        %v5176 = vpack.c.b16 %v5077, %v5076
        %v5177 = vpack.c.b16 %v5079, %v5078
        %v5178 = vpack.c.b16 %v5081, %v5080
        %v5179 = vpack.c.b16 %v5083, %v5082
        %v5180 = vpack.c.b16 %v5085, %v5084
        %v5181 = vpack.c.b16 %v5087, %v5086
        %v5182 = vpack.c.b16 %v5089, %v5088
        %v5183 = vpack.c.b16 %v5091, %v5090
        %v5184 = vpack.c.b16 %v5093, %v5092
        %v5185 = vpack.c.b16 %v5095, %v5094
        %v5186 = vpack.c.b16 %v5097, %v5096
        %v5187 = vpack.c.b16 %v5099, %v5098
        %v5188 = vpack.c.b16 %v5101, %v5100
        %v5189 = vpack.c.b16 %v5103, %v5102
        %v5190 = vpack.c.b16 %v5105, %v5104
        %v5191 = vpack.c.b16 %v5107, %v5106
        %v5192 = vpack.c.b16 %v5109, %v5108
        %v5193 = vpack.c.b16 %v5111, %v5110
        %v5194 = vpack.c.b16 %v5113, %v5112
        %v5195 = vpack.c.b16 %v5115, %v5114
        %5276 = vmatpush.bf16.msra.mxu0 %v5123
        %5277 = vmatpush.bf16.msra.mxu0 %v5122
        %5278 = vmatpush.bf16.msra.mxu0 %v5121
        %5279 = vmatpush.bf16.msra.mxu0 %v5120
        %5280 = vmatpush.bf16.msra.mxu0 %v5119
        %5281 = vmatpush.bf16.msra.mxu0 %v5118
        %5282 = vmatpush.bf16.msra.mxu0 %v5117
        %5283 = vmatpush.bf16.msra.mxu0 %v5116
        %5284 = vmatmul.bf16.gmra.mxu0 %v4548
        %v5285 = vpop.f32.mrf.mxu0
        %v5286 = vadd.f32 %v4793, %v5285
        %v5287 = vpop.f32.mrf.mxu0
        %5288 = vdwg.mxu0
        %5289 = vmatpush.bf16.msra.mxu0 %v5131
        %5290 = vmatpush.bf16.msra.mxu0 %v5130
        %5291 = vmatpush.bf16.msra.mxu0 %v5129
        %5292 = vmatpush.bf16.msra.mxu0 %v5128
        %5293 = vmatpush.bf16.msra.mxu0 %v5127
        %5294 = vmatpush.bf16.msra.mxu0 %v5126
        %5295 = vmatpush.bf16.msra.mxu0 %v5125
        %5296 = vmatpush.bf16.msra.mxu0 %v5124
        %5297 = vmatmul.bf16.gmra.mxu0 %v4549
        %v5298 = vpop.f32.mrf.mxu0
        %v5299 = vadd.f32 %v5286, %v5298
        %v5300 = vpop.f32.mrf.mxu0
        %5301 = vdwg.mxu0
        %5302 = vmatpush.bf16.msra.mxu0 %v5139
        %5303 = vmatpush.bf16.msra.mxu0 %v5138
        %5304 = vmatpush.bf16.msra.mxu0 %v5137
        %5305 = vmatpush.bf16.msra.mxu0 %v5136
        %5306 = vmatpush.bf16.msra.mxu0 %v5135
        %5307 = vmatpush.bf16.msra.mxu0 %v5134
        %5308 = vmatpush.bf16.msra.mxu0 %v5133
        %5309 = vmatpush.bf16.msra.mxu0 %v5132
        %5310 = vmatmul.bf16.gmra.mxu0 %v4550
        %v5311 = vpop.f32.mrf.mxu0
        %v5312 = vadd.f32 %v5299, %v5311
        %v5313 = vpop.f32.mrf.mxu0
        %5314 = vdwg.mxu0
        %5315 = vmatpush.bf16.msra.mxu0 %v5147
        %5316 = vmatpush.bf16.msra.mxu0 %v5146
        %5317 = vmatpush.bf16.msra.mxu0 %v5145
        %5318 = vmatpush.bf16.msra.mxu0 %v5144
        %5319 = vmatpush.bf16.msra.mxu0 %v5143
        %5320 = vmatpush.bf16.msra.mxu0 %v5142
        %5321 = vmatpush.bf16.msra.mxu0 %v5141
        %5322 = vmatpush.bf16.msra.mxu0 %v5140
        %5323 = vmatmul.bf16.gmra.mxu0 %v4551
        %v5324 = vpop.f32.mrf.mxu0
        %v5325 = vadd.f32 %v5312, %v5324
        %v5326 = vpop.f32.mrf.mxu0
        %5327 = vdwg.mxu0
        %5328 = vmatpush.bf16.msra.mxu0 %v5155
        %5329 = vmatpush.bf16.msra.mxu0 %v5154
        %5330 = vmatpush.bf16.msra.mxu0 %v5153
        %5331 = vmatpush.bf16.msra.mxu0 %v5152
        %5332 = vmatpush.bf16.msra.mxu0 %v5151
        %5333 = vmatpush.bf16.msra.mxu0 %v5150
        %5334 = vmatpush.bf16.msra.mxu0 %v5149
        %5335 = vmatpush.bf16.msra.mxu0 %v5148
        %5336 = vmatmul.bf16.gmra.mxu0 %v4552
        %v5337 = vpop.f32.mrf.mxu0
        %v5338 = vadd.f32 %v5325, %v5337
        %v5339 = vpop.f32.mrf.mxu0
        %5340 = vdwg.mxu0
        %5341 = vmatpush.bf16.msra.mxu0 %v5163
        %5342 = vmatpush.bf16.msra.mxu0 %v5162
        %5343 = vmatpush.bf16.msra.mxu0 %v5161
        %5344 = vmatpush.bf16.msra.mxu0 %v5160
        %5345 = vmatpush.bf16.msra.mxu0 %v5159
        %5346 = vmatpush.bf16.msra.mxu0 %v5158
        %5347 = vmatpush.bf16.msra.mxu0 %v5157
        %5348 = vmatpush.bf16.msra.mxu0 %v5156
        %5349 = vmatmul.bf16.gmra.mxu0 %v4553
        %v5350 = vpop.f32.mrf.mxu0
        %v5351 = vadd.f32 %v5338, %v5350
        %v5352 = vpop.f32.mrf.mxu0
        %5353 = vdwg.mxu0
        %5354 = vmatpush.bf16.msra.mxu0 %v5171
        %5355 = vmatpush.bf16.msra.mxu0 %v5170
        %5356 = vmatpush.bf16.msra.mxu0 %v5169
        %5357 = vmatpush.bf16.msra.mxu0 %v5168
        %5358 = vmatpush.bf16.msra.mxu0 %v5167
        %5359 = vmatpush.bf16.msra.mxu0 %v5166
        %5360 = vmatpush.bf16.msra.mxu0 %v5165
        %5361 = vmatpush.bf16.msra.mxu0 %v5164
        %5362 = vmatmul.bf16.gmra.mxu0 %v4554
        %v5363 = vpop.f32.mrf.mxu0
        %v5364 = vadd.f32 %v5351, %v5363
        %v5365 = vpop.f32.mrf.mxu0
        %5366 = vdwg.mxu0
        %5367 = vmatpush.bf16.msra.mxu0 %v5179
        %5368 = vmatpush.bf16.msra.mxu0 %v5178
        %5369 = vmatpush.bf16.msra.mxu0 %v5177
        %5370 = vmatpush.bf16.msra.mxu0 %v5176
        %5371 = vmatpush.bf16.msra.mxu0 %v5175
        %5372 = vmatpush.bf16.msra.mxu0 %v5174
        %5373 = vmatpush.bf16.msra.mxu0 %v5173
        %5374 = vmatpush.bf16.msra.mxu0 %v5172
        %5375 = vmatmul.bf16.gmra.mxu0 %v4555
        %v5376 = vpop.f32.mrf.mxu0
        %v5377 = vadd.f32 %v5364, %v5376
        %v5378 = vpop.f32.mrf.mxu0
        %5379 = vdwg.mxu0
        %5380 = vmatpush.bf16.msra.mxu0 %v5187
        %5381 = vmatpush.bf16.msra.mxu0 %v5186
        %5382 = vmatpush.bf16.msra.mxu0 %v5185
        %5383 = vmatpush.bf16.msra.mxu0 %v5184
        %5384 = vmatpush.bf16.msra.mxu0 %v5183
        %5385 = vmatpush.bf16.msra.mxu0 %v5182
        %5386 = vmatpush.bf16.msra.mxu0 %v5181
        %5387 = vmatpush.bf16.msra.mxu0 %v5180
        %5388 = vmatmul.bf16.gmra.mxu0 %v4556
        %v5389 = vpop.f32.mrf.mxu0
        %v5390 = vadd.f32 %v5377, %v5389
        %v5391 = vpop.f32.mrf.mxu0
        %5392 = vdwg.mxu0
        %5393 = vmatpush.bf16.msra.mxu0 %v5195
        %5394 = vmatpush.bf16.msra.mxu0 %v5194
        %5395 = vmatpush.bf16.msra.mxu0 %v5193
        %5396 = vmatpush.bf16.msra.mxu0 %v5192
        %5397 = vmatpush.bf16.msra.mxu0 %v5191
        %5398 = vmatpush.bf16.msra.mxu0 %v5190
        %5399 = vmatpush.bf16.msra.mxu0 %v5189
        %5400 = vmatpush.bf16.msra.mxu0 %v5188
        %5401 = vmatmul.bf16.gmra.mxu0 %v4557
        %v5402 = vpop.f32.mrf.mxu0
        %v5403 = vadd.f32 %v5390, %v5402
        %v5404 = vpop.f32.mrf.mxu0
        %5405 = vdwg.mxu0
        %v5406 = vld [vmem:[%s21] sm:$0xff]
        %v5407 = vpack.c.bf16 %v5406, %v5406
        %v5408 = vld [vmem:[%s15] sm:$0xf]
        %v5409 = vld [vmem:[%s15 + $0x4] sm:$0xf]
        %v5410 = vld [vmem:[%s15 + $0x8] sm:$0xf]
        %v5411 = vld [vmem:[%s15 + $0xc] sm:$0xf]
        %v5416 = vunpack.c.l.b16 %v5408
        %v5417 = vunpack.c.l.b16 %v5409
        %v5418 = vunpack.c.l.b16 %v5410
        %v5419 = vunpack.c.l.b16 %v5411
        %v5420 = vpack.c.b16 %v5417, %v5416
        %v5421 = vpack.c.b16 %v5419, %v5418
        %vm5424 = vcmask 261120
        %v5426 = vsel %vm5424, %v5407, 0
        %5428 = vmatpush.bf16.msra.mxu0 0
        %5429 = vmatpush.bf16.msra.mxu0 0
        %5430 = vmatpush.bf16.msra.mxu0 0
        %5431 = vmatpush.bf16.msra.mxu0 0
        %5432 = vmatpush.bf16.msra.mxu0 0
        %5433 = vmatpush.bf16.msra.mxu0 0
        %5434 = vmatpush.bf16.msra.mxu0 %v5421
        %5435 = vmatpush.bf16.msra.mxu0 %v5420
        %5436 = vmatmul.bf16.gmra.mxu0 %v5426
        %v5437 = vpop.f32.mrf.mxu0
        %v5438 = vadd.f32 0.0, %v5437
        %v5439 = vpop.f32.mrf.mxu0
        %5440 = vdwg.mxu0
        %v5441 = vadd.f32 %v5403, %v5438
        %v5442 = vld [vmem:[%s16] sm:$0x1]
        %v5444 = vperm.slane %v5442, 0
        %v5446 = vadd.f32 %v5441, %v5444
        %v5447 = vmax.f32 %v5446, 0.0
        %5448 = vst.msk [vmem:[%s21] sm:$0xff] %vm5424, %v5447
        %v5449 = vpack.c.bf16 %v5447, %v5447
        %v5450 = vld [vmem:[%s17] sm:$0xf]
        %v5451 = vld [vmem:[%s17 + $0x4] sm:$0xf]
        %v5452 = vld [vmem:[%s17 + $0x8] sm:$0xf]
        %v5453 = vld [vmem:[%s17 + $0xc] sm:$0xf]
        %v5454 = vld [vmem:[%s18] sm:$0x1]
        %v5456 = vperm.slane %v5454, 0
        %v5462 = vunpack.c.l.b16 %v5450
        %v5463 = vunpack.c.l.b16 %v5451
        %v5464 = vunpack.c.l.b16 %v5452
        %v5465 = vunpack.c.l.b16 %v5453
        %v5466 = vpack.c.b16 %v5463, %v5462
        %v5467 = vpack.c.b16 %v5465, %v5464
        %v5471 = vsel %vm5424, %v5449, 0
        %5473 = vmatpush.bf16.msra.mxu0 0
        %5474 = vmatpush.bf16.msra.mxu0 0
        %5475 = vmatpush.bf16.msra.mxu0 0
        %5476 = vmatpush.bf16.msra.mxu0 0
        %5477 = vmatpush.bf16.msra.mxu0 0
        %5478 = vmatpush.bf16.msra.mxu0 0
        %5479 = vmatpush.bf16.msra.mxu0 %v5467
        %5480 = vmatpush.bf16.msra.mxu0 %v5466
        %5481 = vmatmul.bf16.gmra.mxu0 %v5471
        %v5482 = vpop.f32.mrf.mxu0
        %v5483 = vadd.f32 %v5456, %v5482
        %v5484 = vpop.f32.mrf.mxu0
        %5485 = vdwg.mxu0
        %vm5486 = vcmask 48128
        %v5487 = vsel %vm5486, %v5483, -inf
        %5488 = vmax.xlane.f32.xlu0 %v5487
        %v5489 = vpop.xlane.xlu0 %5488
        %v5490 = vsub.f32 %v5483, %v5489
        %v5491 = vmul.f32 %v5490, 1.442695
        %v5492 = vpow.pop %v5491
        %v5493 = vsel %vm5486, %v5492, 0.0
        %5494 = vadd.xlane.f32.xlu0 %v5493
        %v5495 = vpop.xlane.xlu0 %5494
        %v5496 = vrcp.pop %v5495
        %v5497 = vmul.f32 %v5492, %v5496
        %5498 = vst.msk [vmem:[%s683] sm:$0xff] %vm5486, %v5497
        %p5499 = scmp.lt.s32.totalorder %s34, 3
        %s5500 = scalar_select %p5499, %s34, 3
        %s5501 = smul.addr %s5500, 8
        %s5502 = scalar_lea.vmem %s19, %s5501
        // Predicated region
        $region105: #{fused_forward.1} parent=95 // pred_check
          %p5503 = pneg %p461
        $region106: #{fused_forward.1} parent=95 // pred_check_branch
          %5505 = sbr.rel (%p5503) target = $region108
        $region107: #{fused_forward.1} parent=95 // pred_region
          _
        $region108: #{fused_forward.1} parent=95 // pred_fallthru
          _
        // Predicated region
        $region109: #{fused_forward.1} parent=95 // pred_check
          %p5506 = pneg %p482
        $region110: #{fused_forward.1} parent=95 // pred_check_branch
          %5508 = sbr.rel (%p5506) target = $region112
        $region111: #{fused_forward.1} parent=95 // pred_region
          _
        $region112: #{fused_forward.1} parent=95 // pred_fallthru
          _
        // Predicated region
        $region113: #{fused_forward.1} parent=95 // pred_check
          %p5509 = pneg %p503
        $region114: #{fused_forward.1} parent=95 // pred_check_branch
          %5511 = sbr.rel (%p5509) target = $region116
        $region115: #{fused_forward.1} parent=95 // pred_region
          _
        $region116: #{fused_forward.1} parent=95 // pred_fallthru
          _
        // Predicated region
        $region117: #{fused_forward.1} parent=95 // pred_check
          %p5512 = pneg %p482
        $region118: #{fused_forward.1} parent=95 // pred_check_branch
          %5514 = sbr.rel (%p5512) target = $region120
        $region119: #{fused_forward.1} parent=95 // pred_region
          _
        $region120: #{fused_forward.1} parent=95 // pred_fallthru
          _
        // Predicated region
        $region121: #{fused_forward.1} parent=95 // pred_check
          %p5515 = pneg %p503
        $region122: #{fused_forward.1} parent=95 // pred_check_branch
          %5517 = sbr.rel (%p5515) target = $region124
        $region123: #{fused_forward.1} parent=95 // pred_region
          _
        $region124: #{fused_forward.1} parent=95 // pred_fallthru
          _
      $region96: #{fused_forward.1} parent=5 // pred_fallthru
        _
      %p5518 = scmp.le.s32.totalorder 2, %s29
      // Predicated region
      $region125: #{fused_forward.1} parent=5 // pred_check
        %p5519 = pneg %p5518
      $region126: #{fused_forward.1} parent=5 // pred_check_branch
        %5521 = sbr.rel (%p5519) target = $region128
      $region127: #{fused_forward.1} parent=5 // pred_region
        %s5522 = ssub.s32 %s29, 2
        // Predicated region
        $region129: #{fused_forward.1} parent=127 // pred_check
          %p5523 = pneg %p467
        $region130: #{fused_forward.1} parent=127 // pred_check_branch
          %5525 = sbr.rel (%p5523) target = $region132
        $region131: #{fused_forward.1} parent=127 // pred_region
          %p5526 = scmp.lt.s32.totalorder %s35, 3
          %s5527 = scalar_select %p5526, %s35, 3
          %s5528 = smul.addr %s5527, 8
          %s5529 = scalar_lea.vmem %s19, %s5528
        $region132: #{fused_forward.1} parent=127 // pred_fallthru
          _
      $region128: #{fused_forward.1} parent=5 // pred_fallthru
        _
    $region6: #{fused_forward.1} parent=1 // loop_footer
      %s33 = sadd.s32 1, %s29
    $region7: #{fused_forward.1} parent=1 // loop_footer_branch
      %28 = sbr.rel target = $region3
    $region8: #{fused_forward.1} parent=1 // loop_exit
      _
    %5530 = vsyncpa [#allocation3], 1
    %s5531 = scalar_lea.sflag [#allocation3], 1
    %5532 = vsyncpa %s5531, 1

</llo_original>
